<compile_context>
chip_gen: v7x
topology: tpu7x:2x2x1
jax: 0.10.0
libtpu: 0.0.40
codegen_flags: <defaults>
</compile_context>

<pallas_src>
import math

import jax
import jax.numpy as jnp
from jax.experimental import pallas as pl
from jax.experimental.pallas import tpu as pltpu


def _round_up(x, m):
    return ((x + m - 1) // m) * m


# ---------------------------------------------------------------------------
# Fused kernel: hop attention -> aggregation -> Linear/PReLU/Linear.
# ---------------------------------------------------------------------------
def _make_sga_kernel(K):
    def kernel(*refs):
        h_refs = refs[:K]                                   # K x [BN, F] (any float dtype)
        gw_ref, w1_ref, b1_ref, w2_ref, b2_ref, alpha_ref, out_ref = refs[K:]

        gw = gw_ref[...].astype(jnp.float32)                # [1, F]

        # Per-hop gate score: sigmoid(<h_k[n,:], gw>) via VPU mul + lane reduce.
        # Hop refs are read directly (one transient f32 upcast at a time);
        # only the [BN, 1] scores stay live.
        s = [jax.nn.sigmoid(
                jnp.sum(h_refs[k][...].astype(jnp.float32) * gw,
                        axis=-1, keepdims=True))
             for k in range(K)]                             # K x [BN, 1]

        # Softmax over the K hops: pure elementwise across K [BN,1] slabs.
        m = s[0]
        for k in range(1, K):
            m = jnp.maximum(m, s[k])
        e = [jnp.exp(sk - m) for sk in s]
        denom = e[0]
        for k in range(1, K):
            denom = denom + e[k]
        inv = pl.reciprocal(denom, approx=True)             # EUP slot, ~free

        # Weighted sum of hop features: unrolled VPU FMAs, re-reading the
        # already-resident hop VMEM buffers (3 vld/cycle; nearly free).
        acc = (e[0] * inv) * h_refs[0][...].astype(jnp.float32)
        for k in range(1, K):
            acc = acc + (e[k] * inv) * h_refs[k][...].astype(jnp.float32)

        # FeedForwardNet (n_layers=2): Linear -> PReLU -> Linear.
        # Dropout layers are identity at inference.  MXU runs bf16 x bf16 with
        # f32 accumulation; biases stay f32.
        h1 = jnp.dot(acc.astype(jnp.bfloat16), w1_ref[...],
                     preferred_element_type=jnp.float32)
        h1 = h1 + b1_ref[...]
        alpha = alpha_ref[0, 0]
        h1 = jnp.where(h1 >= 0.0, h1, alpha * h1)
        out = jnp.dot(h1.astype(jnp.bfloat16), w2_ref[...],
                      preferred_element_type=jnp.float32)
        out = out + b2_ref[...]
        out_ref[...] = out.astype(out_ref.dtype)

    return kernel


# ---------------------------------------------------------------------------
# One-time parameter preparation (hoisted out of the hot path).
# ---------------------------------------------------------------------------
def prepare_params(params):
    """Pad/cast weights once: Hp, Cp -> multiples of 128 lanes, W1/W2 -> bf16."""
    F, H = params["w1"].shape
    C = params["w2"].shape[1]
    Hp = _round_up(H, 128)
    Cp = _round_up(C, 128)

    w1, b1, w2, b2 = params["w1"], params["b1"], params["w2"], params["b2"]
    if Hp != H:
        w1 = jnp.pad(w1, ((0, 0), (0, Hp - H)))
        b1 = jnp.pad(b1, ((0, 0), (0, Hp - H)))
        w2 = jnp.pad(w2, ((0, Hp - H), (0, 0)))
    if Cp != C:
        w2 = jnp.pad(w2, ((0, 0), (0, Cp - C)))
        b2 = jnp.pad(b2, ((0, 0), (0, Cp - C)))

    return {
        "global_w": params["global_w"].reshape(1, F).astype(jnp.float32),
        "w1": w1.astype(jnp.bfloat16),                      # [F, Hp]
        "b1": b1.astype(jnp.float32),                       # [1, Hp]
        "w2": w2.astype(jnp.bfloat16),                      # [Hp, Cp]
        "b2": b2.astype(jnp.float32),                       # [1, Cp]
        "prelu_alpha": params["prelu_alpha"].reshape(1, 1).astype(jnp.float32),
        "nclass": int(C),
    }


# ---------------------------------------------------------------------------
# VMEM-aware node-block selection.
# ---------------------------------------------------------------------------
_VMEM_BUDGET = 28 << 20          # accounted working-set target (safe on v5e/v6e/v7x)
_VMEM_LIMIT = 48 << 20           # explicit scoped-VMEM limit passed to Mosaic


def _pick_block_rows(K, F, Hp, Cp, in_bytes, tile):
    # Grid-invariant bytes: global_w (f32) + bf16 W1/W2 (single-buffered) + f32 biases.
    fixed = F * 4 + (F * Hp + Hp * Cp) * 2 + (Hp + Cp) * 4
    # Per-node-row bytes: 2x-buffered hop streams + transient f32 upcast + f32 acc
    # + f32 h1 + bf16 h1 cast + f32 out tile (2x-buffered) + store temp.
    per_row = (2 * K * F * in_bytes
               + 2 * F * 4
               + Hp * 4 + Hp * 2
               + 3 * Cp * 4)
    avail = max(_VMEM_BUDGET - fixed, per_row * tile)
    bn = avail // per_row
    if bn >= 128:
        bn = (bn // 128) * 128          # clean MXU M-dim, unmasked sublanes
    else:
        bn = max(tile, (bn // tile) * tile)
    return int(min(bn, 1024))


# ---------------------------------------------------------------------------
# Wrapper: tiling over N (no input padding), cost estimate.
# ---------------------------------------------------------------------------
def sga_forward(feature_list, prepped, *, block_rows=None):
    K = len(feature_list)
    N, F = feature_list[0].shape
    gw, w1, b1 = prepped["global_w"], prepped["w1"], prepped["b1"]
    w2, b2, alpha = prepped["w2"], prepped["b2"], prepped["prelu_alpha"]
    Hp, Cp, C = w1.shape[1], w2.shape[1], prepped["nclass"]

    in_bytes = jnp.dtype(feature_list[0].dtype).itemsize
    tile = {4: 8, 2: 16, 1: 32}.get(in_bytes, 8)            # sublane tile per dtype

    if block_rows is None:
        block_rows = _pick_block_rows(K, F, Hp, Cp, in_bytes, tile)
    BN = min(int(block_rows), N)
    if BN < N:                                              # partial grid: keep tiles legal
        BN = max(tile, (BN // tile) * tile)
    grid = (pl.cdiv(N, BN),)                                # no jnp.pad of hop features

    cost = pl.CostEstimate(
        flops=(2 * N * K * F)                               # gate scores
        + (3 * N * K * F)                                   # softmax-weighted aggregation
        + (2 * N * F * Hp)                                  # Linear 1
        + (2 * N * Hp * Cp),                                # Linear 2
        transcendentals=2 * N * K,                          # sigmoid + exp per (node, hop)
        bytes_accessed=N * K * F * in_bytes + N * Cp * 4
        + F * 4 + (F * Hp + Hp * Cp) * 2 + (Hp + Cp) * 4,
    )

    h_spec = pl.BlockSpec((BN, F), lambda i: (i, 0))

    def build(single_buffer_weights):
        wkw = {"pipeline_mode": pl.Buffered(1)} if single_buffer_weights else {}

        def resident(shape):                                # grid-invariant, VMEM-resident
            return pl.BlockSpec(shape, lambda i: (0, 0), **wkw)

        return pl.pallas_call(
            _make_sga_kernel(K),
            out_shape=jax.ShapeDtypeStruct((N, Cp), jnp.float32),
            grid=grid,
            in_specs=[h_spec] * K + [
                resident((1, F)),                           # global_w
                resident((F, Hp)),                          # W1 (bf16)
                resident((1, Hp)),                          # b1
                resident((Hp, Cp)),                         # W2 (bf16)
                resident((1, Cp)),                          # b2
                pl.BlockSpec(memory_space=pltpu.MemorySpace.SMEM),  # PReLU alpha
            ],
            out_specs=pl.BlockSpec((BN, Cp), lambda i: (i, 0)),
            compiler_params=pltpu.CompilerParams(
                dimension_semantics=("parallel",),          # megacore-shard node blocks
                vmem_limit_bytes=_VMEM_LIMIT,
            ),
            cost_estimate=cost,
        )

    args = (*feature_list, gw, w1, b1, w2, b2, alpha)
    try:
        out = build(True)(*args)                            # single-buffered weights
    except Exception:
        out = build(False)(*args)                           # fallback: default buffering

    return out[:, :C] if Cp != C else out


# ---------------------------------------------------------------------------
# Deterministic parameter init (matches the PyTorch __init__ shapes)
# ---------------------------------------------------------------------------
def xavier_uniform(key, shape, gain):
    fan_in, fan_out = shape[0], shape[1]
    bound = gain * math.sqrt(6.0 / (fan_in + fan_out))
    return jax.random.uniform(key, shape, jnp.float32, -bound, bound)


def init_params(key, nfeat, hidden, nclass):
    k_gw, k_w1, k_w2 = jax.random.split(key, 3)
    gain_sigmoid = 1.0                # nn.init.calculate_gain('sigmoid')
    gain_relu = math.sqrt(2.0)        # nn.init.calculate_gain('relu')
    return {
        "global_w": xavier_uniform(k_gw, (nfeat, 1), gain_sigmoid),
        "w1": xavier_uniform(k_w1, (nfeat, hidden), gain_relu),
        "b1": jnp.zeros((1, hidden), jnp.float32),
        "prelu_alpha": jnp.full((1, 1), 0.25, jnp.float32),   # PReLU default
        "w2": xavier_uniform(k_w2, (hidden, nclass), gain_relu),
        "b2": jnp.zeros((1, nclass), jnp.float32),
    }


# ---------------------------------------------------------------------------
# Pure-JAX reference for correctness check (f32 math on the same hop features)
# ---------------------------------------------------------------------------
def sga_reference(feature_list, p):
    h = jnp.stack([f.astype(jnp.float32) for f in feature_list], axis=1)  # [N,K,F]
    s = jax.nn.sigmoid(jnp.matmul(h, p["global_w"]))[..., 0]              # [N,K]
    gvec = jax.nn.softmax(s, axis=-1)
    agg = jnp.einsum("nk,nkf->nf", gvec, h)
    h1 = agg @ p["w1"] + p["b1"]
    h1 = jnp.where(h1 >= 0.0, h1, p["prelu_alpha"][0, 0] * h1)
    return h1 @ p["w2"] + p["b2"]


if __name__ == "__main__":
    # Small shapes: N nodes (not a block multiple -> exercises the un-padded
    # tail block), K propagated hops, nfeat features, hidden, nclass.
    N, K, NFEAT, HIDDEN, NCLASS = 200, 3, 64, 64, 10

    key = jax.random.PRNGKey(0)
    k_params, k_feats = jax.random.split(key)
    params = init_params(k_params, NFEAT, HIDDEN, NCLASS)
    prepped = prepare_params(params)          # pad/cast weights once, off the hot path

    feat_keys = jax.random.split(k_feats, K)
    # Recommended HBM contract: bf16 hop features (the kernel is HBM-bound;
    # halving streamed bytes is the largest roofline lever).
    feature_list = [jax.random.normal(fk, (N, NFEAT), jnp.float32).astype(jnp.bfloat16)
                    for fk in feat_keys]

    # block_rows=128 forces a 2-block grid with a clipped 72-row tail block.
    out = sga_forward(feature_list, prepped, block_rows=128)
    out = jax.block_until_ready(out)

    ref = sga_reference(feature_list, params)
    assert out.shape == (N, NCLASS)
    # bf16 MXU operands + approx reciprocal => loosened tolerance vs the f32 ref.
    assert jnp.allclose(out, ref, atol=1e-1, rtol=5e-2), (
        f"mismatch vs reference (max abs err {float(jnp.max(jnp.abs(out - ref)))})")

    # TODO(synk): dropout layers (input_drop / dropout) are identity in eval mode;
    # training-mode stochastic dropout is not implemented.
    print("KERNEL_OK")
</pallas_src>

<mosaic_0001>
module attributes {stable_mosaic.version = 11 : i64} {
  func.func @kernel(%arg0: i32, %arg1: memref<128x64xbf16, #tpu.memory_space<vmem>>, %arg2: memref<128x64xbf16, #tpu.memory_space<vmem>>, %arg3: memref<128x64xbf16, #tpu.memory_space<vmem>>, %arg4: memref<1x64xf32, #tpu.memory_space<vmem>>, %arg5: memref<64x128xbf16, #tpu.memory_space<vmem>>, %arg6: memref<1x128xf32, #tpu.memory_space<vmem>>, %arg7: memref<128x128xbf16, #tpu.memory_space<vmem>>, %arg8: memref<1x128xf32, #tpu.memory_space<vmem>>, %arg9: memref<1x1xf32, #tpu.memory_space<smem>>, %arg10: memref<128x128xf32, #tpu.memory_space<vmem>>) attributes {dimension_semantics = [#tpu.dimension_semantics<parallel>], iteration_bounds = array<i64: 2>, scalar_prefetch = 0 : i64, scratch_operands = 0 : i64, tpu.core_type = #tpu.core_type<tc>, window_params = [{transform_indices = @transform_0, window_bounds = array<i64: 128, 64>}, {transform_indices = @transform_1, window_bounds = array<i64: 128, 64>}, {transform_indices = @transform_2, window_bounds = array<i64: 128, 64>}, {pipeline_mode = #tpu.pipeline_mode<synchronous>, transform_indices = @transform_3, window_bounds = array<i64: 1, 64>}, {pipeline_mode = #tpu.pipeline_mode<synchronous>, transform_indices = @transform_4, window_bounds = array<i64: 64, 128>}, {pipeline_mode = #tpu.pipeline_mode<synchronous>, transform_indices = @transform_5, window_bounds = array<i64: 1, 128>}, {pipeline_mode = #tpu.pipeline_mode<synchronous>, transform_indices = @transform_6, window_bounds = array<i64: 128, 128>}, {pipeline_mode = #tpu.pipeline_mode<synchronous>, transform_indices = @transform_7, window_bounds = array<i64: 1, 128>}, {transform_indices = @transform_8, window_bounds = array<i64: 1, 1>}, {transform_indices = @transform_9, window_bounds = array<i64: 128, 128>}]} {
    %c0 = arith.constant 0 : index
    %c0_0 = arith.constant 0 : index
    %0 = vector.load %arg4[%c0, %c0_0] : memref<1x64xf32, #tpu.memory_space<vmem>>, vector<1x64xf32>
    %c0_1 = arith.constant 0 : index
    %c0_2 = arith.constant 0 : index
    %1 = vector.load %arg1[%c0_1, %c0_2] : memref<128x64xbf16, #tpu.memory_space<vmem>>, vector<128x64xbf16>
    %2 = arith.extf %1 : vector<128x64xbf16> to vector<128x64xf32>
    %3 = vector.broadcast %0 : vector<1x64xf32> to vector<128x64xf32>
    %4 = arith.mulf %2, %3 : vector<128x64xf32>
    %cst = arith.constant dense<0.000000e+00> : vector<128xf32>
    %5 = vector.multi_reduction <add>, %4, %cst [1] : vector<128x64xf32> to vector<128xf32>
    %6 = vector.shape_cast %5 : vector<128xf32> to vector<128x1xf32>
    %7 = arith.negf %6 : vector<128x1xf32>
    %8 = math.exp %7 : vector<128x1xf32>
    %cst_3 = arith.constant 1.000000e+00 : f32
    %9 = vector.broadcast %cst_3 : f32 to vector<128x1xf32>
    %10 = arith.addf %9, %8 : vector<128x1xf32>
    %11 = arith.divf %9, %10 : vector<128x1xf32>
    %c0_4 = arith.constant 0 : index
    %c0_5 = arith.constant 0 : index
    %12 = vector.load %arg2[%c0_4, %c0_5] : memref<128x64xbf16, #tpu.memory_space<vmem>>, vector<128x64xbf16>
    %13 = arith.extf %12 : vector<128x64xbf16> to vector<128x64xf32>
    %14 = vector.broadcast %0 : vector<1x64xf32> to vector<128x64xf32>
    %15 = arith.mulf %13, %14 : vector<128x64xf32>
    %cst_6 = arith.constant dense<0.000000e+00> : vector<128xf32>
    %16 = vector.multi_reduction <add>, %15, %cst_6 [1] : vector<128x64xf32> to vector<128xf32>
    %17 = vector.shape_cast %16 : vector<128xf32> to vector<128x1xf32>
    %18 = arith.negf %17 : vector<128x1xf32>
    %19 = math.exp %18 : vector<128x1xf32>
    %cst_7 = arith.constant 1.000000e+00 : f32
    %20 = vector.broadcast %cst_7 : f32 to vector<128x1xf32>
    %21 = arith.addf %20, %19 : vector<128x1xf32>
    %22 = arith.divf %20, %21 : vector<128x1xf32>
    %c0_8 = arith.constant 0 : index
    %c0_9 = arith.constant 0 : index
    %23 = vector.load %arg3[%c0_8, %c0_9] : memref<128x64xbf16, #tpu.memory_space<vmem>>, vector<128x64xbf16>
    %24 = arith.extf %23 : vector<128x64xbf16> to vector<128x64xf32>
    %25 = vector.broadcast %0 : vector<1x64xf32> to vector<128x64xf32>
    %26 = arith.mulf %24, %25 : vector<128x64xf32>
    %cst_10 = arith.constant dense<0.000000e+00> : vector<128xf32>
    %27 = vector.multi_reduction <add>, %26, %cst_10 [1] : vector<128x64xf32> to vector<128xf32>
    %28 = vector.shape_cast %27 : vector<128xf32> to vector<128x1xf32>
    %29 = arith.negf %28 : vector<128x1xf32>
    %30 = math.exp %29 : vector<128x1xf32>
    %cst_11 = arith.constant 1.000000e+00 : f32
    %31 = vector.broadcast %cst_11 : f32 to vector<128x1xf32>
    %32 = arith.addf %31, %30 : vector<128x1xf32>
    %33 = arith.divf %31, %32 : vector<128x1xf32>
    %34 = arith.maximumf %11, %22 : vector<128x1xf32>
    %35 = arith.maximumf %34, %33 : vector<128x1xf32>
    %36 = arith.subf %11, %35 : vector<128x1xf32>
    %37 = math.exp %36 : vector<128x1xf32>
    %38 = arith.subf %22, %35 : vector<128x1xf32>
    %39 = math.exp %38 : vector<128x1xf32>
    %40 = arith.subf %33, %35 : vector<128x1xf32>
    %41 = math.exp %40 : vector<128x1xf32>
    %42 = arith.addf %37, %39 : vector<128x1xf32>
    %43 = arith.addf %42, %41 : vector<128x1xf32>
    %44 = tpu.reciprocal %43 {approx = true} : vector<128x1xf32> -> vector<128x1xf32>
    %45 = arith.mulf %37, %44 : vector<128x1xf32>
    %c0_12 = arith.constant 0 : index
    %c0_13 = arith.constant 0 : index
    %46 = vector.load %arg1[%c0_12, %c0_13] : memref<128x64xbf16, #tpu.memory_space<vmem>>, vector<128x64xbf16>
    %47 = arith.extf %46 : vector<128x64xbf16> to vector<128x64xf32>
    %48 = vector.broadcast %45 : vector<128x1xf32> to vector<128x64xf32>
    %49 = arith.mulf %48, %47 : vector<128x64xf32>
    %50 = arith.mulf %39, %44 : vector<128x1xf32>
    %c0_14 = arith.constant 0 : index
    %c0_15 = arith.constant 0 : index
    %51 = vector.load %arg2[%c0_14, %c0_15] : memref<128x64xbf16, #tpu.memory_space<vmem>>, vector<128x64xbf16>
    %52 = arith.extf %51 : vector<128x64xbf16> to vector<128x64xf32>
    %53 = vector.broadcast %50 : vector<128x1xf32> to vector<128x64xf32>
    %54 = arith.mulf %53, %52 : vector<128x64xf32>
    %55 = arith.addf %49, %54 : vector<128x64xf32>
    %56 = arith.mulf %41, %44 : vector<128x1xf32>
    %c0_16 = arith.constant 0 : index
    %c0_17 = arith.constant 0 : index
    %57 = vector.load %arg3[%c0_16, %c0_17] : memref<128x64xbf16, #tpu.memory_space<vmem>>, vector<128x64xbf16>
    %58 = arith.extf %57 : vector<128x64xbf16> to vector<128x64xf32>
    %59 = vector.broadcast %56 : vector<128x1xf32> to vector<128x64xf32>
    %60 = arith.mulf %59, %58 : vector<128x64xf32>
    %61 = arith.addf %55, %60 : vector<128x64xf32>
    %62 = arith.truncf %61 : vector<128x64xf32> to vector<128x64xbf16>
    %c0_18 = arith.constant 0 : index
    %c0_19 = arith.constant 0 : index
    %63 = vector.load %arg5[%c0_18, %c0_19] : memref<64x128xbf16, #tpu.memory_space<vmem>>, vector<64x128xbf16>
    %cst_20 = arith.constant dense<0.000000e+00> : vector<128x128xf32>
    %64 = tpu.matmul %62, %63, %cst_20 {dimension_numbers = #tpu.dot_dimension_numbers<[1], [0], [0], [1], [0, 0, 1, 1], [], []>} : vector<128x64xbf16>, vector<64x128xbf16>, vector<128x128xf32> -> vector<128x128xf32>
    %c0_21 = arith.constant 0 : index
    %c0_22 = arith.constant 0 : index
    %65 = vector.load %arg6[%c0_21, %c0_22] : memref<1x128xf32, #tpu.memory_space<vmem>>, vector<1x128xf32>
    %66 = vector.broadcast %65 : vector<1x128xf32> to vector<128x128xf32>
    %67 = arith.addf %64, %66 : vector<128x128xf32>
    %c0_23 = arith.constant 0 : index
    %c0_24 = arith.constant 0 : index
    %68 = memref.load %arg9[%c0_23, %c0_24] : memref<1x1xf32, #tpu.memory_space<smem>>
    %cst_25 = arith.constant 0.000000e+00 : f32
    %69 = vector.broadcast %cst_25 : f32 to vector<128x128xf32>
    %70 = arith.cmpf oge, %67, %69 : vector<128x128xf32>
    %71 = vector.broadcast %68 : f32 to vector<128x128xf32>
    %72 = arith.mulf %71, %67 : vector<128x128xf32>
    %73 = arith.select %70, %67, %72 : vector<128x128xi1>, vector<128x128xf32>
    %74 = arith.truncf %73 : vector<128x128xf32> to vector<128x128xbf16>
    %c0_26 = arith.constant 0 : index
    %c0_27 = arith.constant 0 : index
    %75 = vector.load %arg7[%c0_26, %c0_27] : memref<128x128xbf16, #tpu.memory_space<vmem>>, vector<128x128xbf16>
    %cst_28 = arith.constant dense<0.000000e+00> : vector<128x128xf32>
    %76 = tpu.matmul %74, %75, %cst_28 {dimension_numbers = #tpu.dot_dimension_numbers<[1], [0], [0], [1], [0, 0, 1, 1], [], []>} : vector<128x128xbf16>, vector<128x128xbf16>, vector<128x128xf32> -> vector<128x128xf32>
    %c0_29 = arith.constant 0 : index
    %c0_30 = arith.constant 0 : index
    %77 = vector.load %arg8[%c0_29, %c0_30] : memref<1x128xf32, #tpu.memory_space<vmem>>, vector<1x128xf32>
    %78 = vector.broadcast %77 : vector<1x128xf32> to vector<128x128xf32>
    %79 = arith.addf %76, %78 : vector<128x128xf32>
    %c0_31 = arith.constant 0 : index
    %c0_32 = arith.constant 0 : index
    %80 = vector.load %arg10[%c0_31, %c0_32] : memref<128x128xf32, #tpu.memory_space<vmem>>, vector<128x128xf32>
    tpu.vector_store %arg10[%c0_31, %c0_32], %79 {strides = array<i32>} : memref<128x128xf32, #tpu.memory_space<vmem>>, vector<128x128xf32>,
    return
  }
  func.func @transform_0(%arg0: i32) -> (i32, i32) {
    %c0_i32 = arith.constant 0 : i32
    %c0_i32_0 = arith.constant 0 : i32
    return %arg0, %c0_i32 : i32, i32
  }
  func.func @transform_1(%arg0: i32) -> (i32, i32) {
    %c0_i32 = arith.constant 0 : i32
    %c0_i32_0 = arith.constant 0 : i32
    return %arg0, %c0_i32 : i32, i32
  }
  func.func @transform_2(%arg0: i32) -> (i32, i32) {
    %c0_i32 = arith.constant 0 : i32
    %c0_i32_0 = arith.constant 0 : i32
    return %arg0, %c0_i32 : i32, i32
  }
  func.func @transform_3(%arg0: i32) -> (i32, i32) {
    %c0_i32 = arith.constant 0 : i32
    %c0_i32_0 = arith.constant 0 : i32
    %c0_i32_1 = arith.constant 0 : i32
    return %c0_i32, %c0_i32_0 : i32, i32
  }
  func.func @transform_4(%arg0: i32) -> (i32, i32) {
    %c0_i32 = arith.constant 0 : i32
    %c0_i32_0 = arith.constant 0 : i32
    %c0_i32_1 = arith.constant 0 : i32
    return %c0_i32, %c0_i32_0 : i32, i32
  }
  func.func @transform_5(%arg0: i32) -> (i32, i32) {
    %c0_i32 = arith.constant 0 : i32
    %c0_i32_0 = arith.constant 0 : i32
    %c0_i32_1 = arith.constant 0 : i32
    return %c0_i32, %c0_i32_0 : i32, i32
  }
  func.func @transform_6(%arg0: i32) -> (i32, i32) {
    %c0_i32 = arith.constant 0 : i32
    %c0_i32_0 = arith.constant 0 : i32
    %c0_i32_1 = arith.constant 0 : i32
    return %c0_i32, %c0_i32_0 : i32, i32
  }
  func.func @transform_7(%arg0: i32) -> (i32, i32) {
    %c0_i32 = arith.constant 0 : i32
    %c0_i32_0 = arith.constant 0 : i32
    %c0_i32_1 = arith.constant 0 : i32
    return %c0_i32, %c0_i32_0 : i32, i32
  }
  func.func @transform_8(%arg0: i32) -> (i32, i32) {
    %c0_i32 = arith.constant 0 : i32
    %c0_i32_0 = arith.constant 0 : i32
    %c0_i32_1 = arith.constant 0 : i32
    return %c0_i32, %c0_i32_0 : i32, i32
  }
  func.func @transform_9(%arg0: i32) -> (i32, i32) {
    %c0_i32 = arith.constant 0 : i32
    %c0_i32_0 = arith.constant 0 : i32
    return %arg0, %c0_i32 : i32, i32
  }
}

module attributes {stable_mosaic.version = 11 : i64} {
  func.func @kernel(%arg0: i32, %arg1: memref<128x64xbf16, #tpu.memory_space<vmem>>, %arg2: memref<128x64xbf16, #tpu.memory_space<vmem>>, %arg3: memref<128x64xbf16, #tpu.memory_space<vmem>>, %arg4: memref<1x64xf32, #tpu.memory_space<vmem>>, %arg5: memref<64x128xbf16, #tpu.memory_space<vmem>>, %arg6: memref<1x128xf32, #tpu.memory_space<vmem>>, %arg7: memref<128x128xbf16, #tpu.memory_space<vmem>>, %arg8: memref<1x128xf32, #tpu.memory_space<vmem>>, %arg9: memref<1x1xf32, #tpu.memory_space<smem>>, %arg10: memref<128x128xf32, #tpu.memory_space<vmem>>) attributes {dimension_semantics = [#tpu.dimension_semantics<parallel>], iteration_bounds = array<i64: 2>, scalar_prefetch = 0 : i64, scratch_operands = 0 : i64, tpu.core_type = #tpu.core_type<tc>, window_params = [{transform_indices = @transform_0, window_bounds = array<i64: 128, 64>}, {transform_indices = @transform_1, window_bounds = array<i64: 128, 64>}, {transform_indices = @transform_2, window_bounds = array<i64: 128, 64>}, {pipeline_mode = #tpu.pipeline_mode<synchronous>, transform_indices = @transform_3, window_bounds = array<i64: 1, 64>}, {pipeline_mode = #tpu.pipeline_mode<synchronous>, transform_indices = @transform_4, window_bounds = array<i64: 64, 128>}, {pipeline_mode = #tpu.pipeline_mode<synchronous>, transform_indices = @transform_5, window_bounds = array<i64: 1, 128>}, {pipeline_mode = #tpu.pipeline_mode<synchronous>, transform_indices = @transform_6, window_bounds = array<i64: 128, 128>}, {pipeline_mode = #tpu.pipeline_mode<synchronous>, transform_indices = @transform_7, window_bounds = array<i64: 1, 128>}, {transform_indices = @transform_8, window_bounds = array<i64: 1, 1>}, {transform_indices = @transform_9, window_bounds = array<i64: 128, 128>}]} {
    %c0 = arith.constant 0 : index
    %c0_0 = arith.constant 0 : index
    %0 = vector.load %arg4[%c0, %c0_0] : memref<1x64xf32, #tpu.memory_space<vmem>>, vector<1x64xf32>
    %c0_1 = arith.constant 0 : index
    %c0_2 = arith.constant 0 : index
    %1 = vector.load %arg1[%c0_1, %c0_2] : memref<128x64xbf16, #tpu.memory_space<vmem>>, vector<128x64xbf16>
    %2 = arith.extf %1 : vector<128x64xbf16> to vector<128x64xf32>
    %3 = vector.broadcast %0 : vector<1x64xf32> to vector<128x64xf32>
    %4 = arith.mulf %2, %3 : vector<128x64xf32>
    %cst = arith.constant dense<0.000000e+00> : vector<128xf32>
    %5 = vector.multi_reduction <add>, %4, %cst [1] : vector<128x64xf32> to vector<128xf32>
    %6 = vector.shape_cast %5 : vector<128xf32> to vector<128x1xf32>
    %7 = arith.negf %6 : vector<128x1xf32>
    %8 = math.exp %7 : vector<128x1xf32>
    %cst_3 = arith.constant 1.000000e+00 : f32
    %9 = vector.broadcast %cst_3 : f32 to vector<128x1xf32>
    %10 = arith.addf %9, %8 : vector<128x1xf32>
    %11 = arith.divf %9, %10 : vector<128x1xf32>
    %c0_4 = arith.constant 0 : index
    %c0_5 = arith.constant 0 : index
    %12 = vector.load %arg2[%c0_4, %c0_5] : memref<128x64xbf16, #tpu.memory_space<vmem>>, vector<128x64xbf16>
    %13 = arith.extf %12 : vector<128x64xbf16> to vector<128x64xf32>
    %14 = vector.broadcast %0 : vector<1x64xf32> to vector<128x64xf32>
    %15 = arith.mulf %13, %14 : vector<128x64xf32>
    %cst_6 = arith.constant dense<0.000000e+00> : vector<128xf32>
    %16 = vector.multi_reduction <add>, %15, %cst_6 [1] : vector<128x64xf32> to vector<128xf32>
    %17 = vector.shape_cast %16 : vector<128xf32> to vector<128x1xf32>
    %18 = arith.negf %17 : vector<128x1xf32>
    %19 = math.exp %18 : vector<128x1xf32>
    %cst_7 = arith.constant 1.000000e+00 : f32
    %20 = vector.broadcast %cst_7 : f32 to vector<128x1xf32>
    %21 = arith.addf %20, %19 : vector<128x1xf32>
    %22 = arith.divf %20, %21 : vector<128x1xf32>
    %c0_8 = arith.constant 0 : index
    %c0_9 = arith.constant 0 : index
    %23 = vector.load %arg3[%c0_8, %c0_9] : memref<128x64xbf16, #tpu.memory_space<vmem>>, vector<128x64xbf16>
    %24 = arith.extf %23 : vector<128x64xbf16> to vector<128x64xf32>
    %25 = vector.broadcast %0 : vector<1x64xf32> to vector<128x64xf32>
    %26 = arith.mulf %24, %25 : vector<128x64xf32>
    %cst_10 = arith.constant dense<0.000000e+00> : vector<128xf32>
    %27 = vector.multi_reduction <add>, %26, %cst_10 [1] : vector<128x64xf32> to vector<128xf32>
    %28 = vector.shape_cast %27 : vector<128xf32> to vector<128x1xf32>
    %29 = arith.negf %28 : vector<128x1xf32>
    %30 = math.exp %29 : vector<128x1xf32>
    %cst_11 = arith.constant 1.000000e+00 : f32
    %31 = vector.broadcast %cst_11 : f32 to vector<128x1xf32>
    %32 = arith.addf %31, %30 : vector<128x1xf32>
    %33 = arith.divf %31, %32 : vector<128x1xf32>
    %34 = arith.maximumf %11, %22 : vector<128x1xf32>
    %35 = arith.maximumf %34, %33 : vector<128x1xf32>
    %36 = arith.subf %11, %35 : vector<128x1xf32>
    %37 = math.exp %36 : vector<128x1xf32>
    %38 = arith.subf %22, %35 : vector<128x1xf32>
    %39 = math.exp %38 : vector<128x1xf32>
    %40 = arith.subf %33, %35 : vector<128x1xf32>
    %41 = math.exp %40 : vector<128x1xf32>
    %42 = arith.addf %37, %39 : vector<128x1xf32>
    %43 = arith.addf %42, %41 : vector<128x1xf32>
    %44 = tpu.reciprocal %43 {approx = true} : vector<128x1xf32> -> vector<128x1xf32>
    %45 = arith.mulf %37, %44 : vector<128x1xf32>
    %c0_12 = arith.constant 0 : index
    %c0_13 = arith.constant 0 : index
    %46 = vector.load %arg1[%c0_12, %c0_13] : memref<128x64xbf16, #tpu.memory_space<vmem>>, vector<128x64xbf16>
    %47 = arith.extf %46 : vector<128x64xbf16> to vector<128x64xf32>
    %48 = vector.broadcast %45 : vector<128x1xf32> to vector<128x64xf32>
    %49 = arith.mulf %48, %47 : vector<128x64xf32>
    %50 = arith.mulf %39, %44 : vector<128x1xf32>
    %c0_14 = arith.constant 0 : index
    %c0_15 = arith.constant 0 : index
    %51 = vector.load %arg2[%c0_14, %c0_15] : memref<128x64xbf16, #tpu.memory_space<vmem>>, vector<128x64xbf16>
    %52 = arith.extf %51 : vector<128x64xbf16> to vector<128x64xf32>
    %53 = vector.broadcast %50 : vector<128x1xf32> to vector<128x64xf32>
    %54 = arith.mulf %53, %52 : vector<128x64xf32>
    %55 = arith.addf %49, %54 : vector<128x64xf32>
    %56 = arith.mulf %41, %44 : vector<128x1xf32>
    %c0_16 = arith.constant 0 : index
    %c0_17 = arith.constant 0 : index
    %57 = vector.load %arg3[%c0_16, %c0_17] : memref<128x64xbf16, #tpu.memory_space<vmem>>, vector<128x64xbf16>
    %58 = arith.extf %57 : vector<128x64xbf16> to vector<128x64xf32>
    %59 = vector.broadcast %56 : vector<128x1xf32> to vector<128x64xf32>
    %60 = arith.mulf %59, %58 : vector<128x64xf32>
    %61 = arith.addf %55, %60 : vector<128x64xf32>
    %62 = arith.truncf %61 : vector<128x64xf32> to vector<128x64xbf16>
    %c0_18 = arith.constant 0 : index
    %c0_19 = arith.constant 0 : index
    %63 = vector.load %arg5[%c0_18, %c0_19] : memref<64x128xbf16, #tpu.memory_space<vmem>>, vector<64x128xbf16>
    %cst_20 = arith.constant dense<0.000000e+00> : vector<128x128xf32>
    %64 = tpu.matmul %62, %63, %cst_20 {dimension_numbers = #tpu.dot_dimension_numbers<[1], [0], [0], [1], [0, 0, 1, 1], [], []>} : vector<128x64xbf16>, vector<64x128xbf16>, vector<128x128xf32> -> vector<128x128xf32>
    %c0_21 = arith.constant 0 : index
    %c0_22 = arith.constant 0 : index
    %65 = vector.load %arg6[%c0_21, %c0_22] : memref<1x128xf32, #tpu.memory_space<vmem>>, vector<1x128xf32>
    %66 = vector.broadcast %65 : vector<1x128xf32> to vector<128x128xf32>
    %67 = arith.addf %64, %66 : vector<128x128xf32>
    %c0_23 = arith.constant 0 : index
    %c0_24 = arith.constant 0 : index
    %68 = memref.load %arg9[%c0_23, %c0_24] : memref<1x1xf32, #tpu.memory_space<smem>>
    %cst_25 = arith.constant 0.000000e+00 : f32
    %69 = vector.broadcast %cst_25 : f32 to vector<128x128xf32>
    %70 = arith.cmpf oge, %67, %69 : vector<128x128xf32>
    %71 = vector.broadcast %68 : f32 to vector<128x128xf32>
    %72 = arith.mulf %71, %67 : vector<128x128xf32>
    %73 = arith.select %70, %67, %72 : vector<128x128xi1>, vector<128x128xf32>
    %74 = arith.truncf %73 : vector<128x128xf32> to vector<128x128xbf16>
    %c0_26 = arith.constant 0 : index
    %c0_27 = arith.constant 0 : index
    %75 = vector.load %arg7[%c0_26, %c0_27] : memref<128x128xbf16, #tpu.memory_space<vmem>>, vector<128x128xbf16>
    %cst_28 = arith.constant dense<0.000000e+00> : vector<128x128xf32>
    %76 = tpu.matmul %74, %75, %cst_28 {dimension_numbers = #tpu.dot_dimension_numbers<[1], [0], [0], [1], [0, 0, 1, 1], [], []>} : vector<128x128xbf16>, vector<128x128xbf16>, vector<128x128xf32> -> vector<128x128xf32>
    %c0_29 = arith.constant 0 : index
    %c0_30 = arith.constant 0 : index
    %77 = vector.load %arg8[%c0_29, %c0_30] : memref<1x128xf32, #tpu.memory_space<vmem>>, vector<1x128xf32>
    %78 = vector.broadcast %77 : vector<1x128xf32> to vector<128x128xf32>
    %79 = arith.addf %76, %78 : vector<128x128xf32>
    %c0_31 = arith.constant 0 : index
    %c0_32 = arith.constant 0 : index
    %80 = vector.load %arg10[%c0_31, %c0_32] : memref<128x128xf32, #tpu.memory_space<vmem>>, vector<128x128xf32>
    tpu.vector_store %arg10[%c0_31, %c0_32], %79 {strides = array<i32>} : memref<128x128xf32, #tpu.memory_space<vmem>>, vector<128x128xf32>,
    return
  }
  func.func @transform_0(%arg0: i32) -> (i32, i32) {
    %c0_i32 = arith.constant 0 : i32
    %c0_i32_0 = arith.constant 0 : i32
    return %arg0, %c0_i32 : i32, i32
  }
  func.func @transform_1(%arg0: i32) -> (i32, i32) {
    %c0_i32 = arith.constant 0 : i32
    %c0_i32_0 = arith.constant 0 : i32
    return %arg0, %c0_i32 : i32, i32
  }
  func.func @transform_2(%arg0: i32) -> (i32, i32) {
    %c0_i32 = arith.constant 0 : i32
    %c0_i32_0 = arith.constant 0 : i32
    return %arg0, %c0_i32 : i32, i32
  }
  func.func @transform_3(%arg0: i32) -> (i32, i32) {
    %c0_i32 = arith.constant 0 : i32
    %c0_i32_0 = arith.constant 0 : i32
    %c0_i32_1 = arith.constant 0 : i32
    return %c0_i32, %c0_i32_0 : i32, i32
  }
  func.func @transform_4(%arg0: i32) -> (i32, i32) {
    %c0_i32 = arith.constant 0 : i32
    %c0_i32_0 = arith.constant 0 : i32
    %c0_i32_1 = arith.constant 0 : i32
    return %c0_i32, %c0_i32_0 : i32, i32
  }
  func.func @transform_5(%arg0: i32) -> (i32, i32) {
    %c0_i32 = arith.constant 0 : i32
    %c0_i32_0 = arith.constant 0 : i32
    %c0_i32_1 = arith.constant 0 : i32
    return %c0_i32, %c0_i32_0 : i32, i32
  }
  func.func @transform_6(%arg0: i32) -> (i32, i32) {
    %c0_i32 = arith.constant 0 : i32
    %c0_i32_0 = arith.constant 0 : i32
    %c0_i32_1 = arith.constant 0 : i32
    return %c0_i32, %c0_i32_0 : i32, i32
  }
  func.func @transform_7(%arg0: i32) -> (i32, i32) {
    %c0_i32 = arith.constant 0 : i32
    %c0_i32_0 = arith.constant 0 : i32
    %c0_i32_1 = arith.constant 0 : i32
    return %c0_i32, %c0_i32_0 : i32, i32
  }
  func.func @transform_8(%arg0: i32) -> (i32, i32) {
    %c0_i32 = arith.constant 0 : i32
    %c0_i32_0 = arith.constant 0 : i32
    %c0_i32_1 = arith.constant 0 : i32
    return %c0_i32, %c0_i32_0 : i32, i32
  }
  func.func @transform_9(%arg0: i32) -> (i32, i32) {
    %c0_i32 = arith.constant 0 : i32
    %c0_i32_0 = arith.constant 0 : i32
    return %arg0, %c0_i32 : i32, i32
  }
}

</mosaic_0001>

<llo_original>
// kernel: tpu_custom_call.1
$region0: #{tpu_custom_call.1}
  #allocation0 [shape = 'u32[]', space=smem, size = 0x4, offset = 0x4, fixed_abs, tag = 'smem constant byte address 0x4 - core index']
  #allocation1 [shape = 'u32[144,128]{1,0:T(1,128)}', space=vmem, size = 0x12000, scoped, tag = 'internal scratch']
  #allocation2 [shape = 'f32[1,1]{1,0:T(1,128)S(6)}', space=smem, size = 0x200, scoped, tag = 'scoped memory for tpu_custom_call.1']
  %s0 = inlined_call_operand.vmem [shape: bf16[200,64], index: 0, kind: input, shape index: {}]
  %s1 = inlined_call_operand.vmem [shape: bf16[200,64], index: 1, kind: input, shape index: {}]
  %s2 = inlined_call_operand.vmem [shape: bf16[200,64], index: 2, kind: input, shape index: {}]
  %s3 = inlined_call_operand.vmem [shape: f32[1,64], index: 3, kind: input, shape index: {}]
  %s4 = inlined_call_operand.vmem [shape: bf16[64,128], index: 4, kind: input, shape index: {}]
  %s5 = inlined_call_operand.vmem [shape: f32[1,128], index: 5, kind: input, shape index: {}]
  %s6 = inlined_call_operand.vmem [shape: bf16[128,128], index: 6, kind: input, shape index: {}]
  %s7 = inlined_call_operand.vmem [shape: f32[1,128], index: 7, kind: input, shape index: {}]
  %s8 = inlined_call_operand.<no memory space> [shape: f32[1,1], index: 8, kind: input, shape index: {}]
  %s9 = inlined_call_operand.hbm [shape: f32[200,128], index: 9, kind: output, shape index: {}]
  %s10 = sld [smem:[#allocation0]]
  $region69: #{tpu_custom_call.1} parent=0
    _
  %s12 = ssub.s32 1, %s10
  %s13 = scalar_select 0, %s12, %s10
  %14 = sst [smem:[#allocation2]] %s8
  $region1: #{tpu_custom_call.1} parent=0
    #allocation3 [shape = 'u8[131072]{0}', space=vmem, size = 0x20000, scoped, tag = 'output window, operand 0']
    #allocation4 [shape = 's32[2]{0}', space=sflag, size = 0x8, scoped, tag = 'scoped memory for tpu_custom_call.1']
    %15 = vsyncpa [#allocation4], 0
    %s16 = scalar_lea.sflag [#allocation4], 1
    %17 = vsyncpa %s16, 0
    loop: start=0, step=1, limit=4
    $region2: #{tpu_custom_call.1} parent=1 // loop_pre_header
      _
    $region3: #{tpu_custom_call.1} parent=1 // loop_header
      %s19 = sphi 0, %s23
      %p20 = scmp.ge.s32.totalorder %s19, 4
      %s29 = sphi 0, %s31
      %s32 = sphi 0, %s29
      %s33 = sphi 0, %s32
      %s49 = sphi 0, %s33
      %s55 = sphi 0, %s57
      %s58 = sphi 0, %s55
      %s59 = sphi 0, %s58
      %s75 = sphi 0, %s59
      %s81 = sphi 0, %s83
      %s84 = sphi 0, %s81
      %s85 = sphi 0, %s84
      %s101 = sphi 0, %s85
      %s105 = sphi 0, %s105
      %s107 = sphi 0, %s105
      %s108 = sphi 0, %s107
      %s122 = sphi 0, %s108
      %s126 = sphi 0, %s126
      %s128 = sphi 0, %s126
      %s129 = sphi 0, %s128
      %s143 = sphi 0, %s129
      %s147 = sphi 0, %s147
      %s149 = sphi 0, %s147
      %s150 = sphi 0, %s149
      %s164 = sphi 0, %s150
      %s168 = sphi 0, %s168
      %s170 = sphi 0, %s168
      %s171 = sphi 0, %s170
      %s185 = sphi 0, %s171
      %s189 = sphi 0, %s189
      %s191 = sphi 0, %s189
      %s192 = sphi 0, %s191
      %s206 = sphi 0, %s192
      %s210 = sphi 0, %s210
      %s212 = sphi 0, %s210
      %s213 = sphi 0, %s212
      %s227 = sphi 0, %s213
      %s233 = sphi 0, %s235
      %s236 = sphi 0, %s233
      %s237 = sphi 0, %s236
      %s253 = sphi 0, %s237
    $region4: #{tpu_custom_call.1} parent=1 // loop_header_branch
      %22 = sbr.rel (%p20) target = $region8
    $region5: #{tpu_custom_call.1} parent=1 // loop_body
      %s24 = ssub.s32 %s19, 1
      %s25 = ssub.s32 %s19, 2
      %s26 = sadd.s32 %s19, 1
      %s27 = ssub.s32 %s19, %s26
      %p28 = scmp.eq.s32.totalorder %s27, 0
      %s30 = sadd.s32 %s29, 1
      %s31 = scalar_select %p28, %s29, %s30
      %p34 = pneg %p28
      %p35 = scmp.eq.s32.totalorder %s19, 1
      %p36 = por %p34, %p35
      %p37 = scmp.ne.s32.totalorder %s29, %s32
      %p38 = scmp.eq.s32.totalorder %s19, 0
      %p39 = por %p37, %p38
      %p40 = scmp.ne.s32.totalorder %s29, %s32
      %p41 = scmp.eq.s32.totalorder %s24, 1
      %p42 = por %p40, %p41
      %p43 = scmp.ne.s32.totalorder %s32, %s33
      %p44 = scmp.eq.s32.totalorder %s24, 0
      %p45 = por %p43, %p44
      %p46 = scmp.ne.s32.totalorder %s32, %s33
      %p47 = scmp.eq.s32.totalorder %s25, 1
      %p48 = por %p46, %p47
      %p50 = scmp.ne.s32.totalorder %s33, %s49
      %p51 = scmp.eq.s32.totalorder %s25, 0
      %p52 = por %p50, %p51
      %s53 = ssub.s32 %s19, %s26
      %p54 = scmp.eq.s32.totalorder %s53, 0
      %s56 = sadd.s32 %s55, 1
      %s57 = scalar_select %p54, %s55, %s56
      %p60 = pneg %p54
      %p61 = scmp.eq.s32.totalorder %s19, 1
      %p62 = por %p60, %p61
      %p63 = scmp.ne.s32.totalorder %s55, %s58
      %p64 = scmp.eq.s32.totalorder %s19, 0
      %p65 = por %p63, %p64
      %p66 = scmp.ne.s32.totalorder %s55, %s58
      %p67 = scmp.eq.s32.totalorder %s24, 1
      %p68 = por %p66, %p67
      %p69 = scmp.ne.s32.totalorder %s58, %s59
      %p70 = scmp.eq.s32.totalorder %s24, 0
      %p71 = por %p69, %p70
      %p72 = scmp.ne.s32.totalorder %s58, %s59
      %p73 = scmp.eq.s32.totalorder %s25, 1
      %p74 = por %p72, %p73
      %p76 = scmp.ne.s32.totalorder %s59, %s75
      %p77 = scmp.eq.s32.totalorder %s25, 0
      %p78 = por %p76, %p77
      %s79 = ssub.s32 %s19, %s26
      %p80 = scmp.eq.s32.totalorder %s79, 0
      %s82 = sadd.s32 %s81, 1
      %s83 = scalar_select %p80, %s81, %s82
      %p86 = pneg %p80
      %p87 = scmp.eq.s32.totalorder %s19, 1
      %p88 = por %p86, %p87
      %p89 = scmp.ne.s32.totalorder %s81, %s84
      %p90 = scmp.eq.s32.totalorder %s19, 0
      %p91 = por %p89, %p90
      %p92 = scmp.ne.s32.totalorder %s81, %s84
      %p93 = scmp.eq.s32.totalorder %s24, 1
      %p94 = por %p92, %p93
      %p95 = scmp.ne.s32.totalorder %s84, %s85
      %p96 = scmp.eq.s32.totalorder %s24, 0
      %p97 = por %p95, %p96
      %p98 = scmp.ne.s32.totalorder %s84, %s85
      %p99 = scmp.eq.s32.totalorder %s25, 1
      %p100 = por %p98, %p99
      %p102 = scmp.ne.s32.totalorder %s85, %s101
      %p103 = scmp.eq.s32.totalorder %s25, 0
      %p104 = por %p102, %p103
      %s106 = sadd.s32 %s105, 1
      %p109 = scmp.eq.s32.totalorder %s19, 1
      %p110 = scmp.ne.s32.totalorder %s105, %s107
      %p111 = scmp.eq.s32.totalorder %s19, 0
      %p112 = por %p110, %p111
      %p113 = scmp.ne.s32.totalorder %s105, %s107
      %p114 = scmp.eq.s32.totalorder %s24, 1
      %p115 = por %p113, %p114
      %p116 = scmp.ne.s32.totalorder %s107, %s108
      %p117 = scmp.eq.s32.totalorder %s24, 0
      %p118 = por %p116, %p117
      %p119 = scmp.ne.s32.totalorder %s107, %s108
      %p120 = scmp.eq.s32.totalorder %s25, 1
      %p121 = por %p119, %p120
      %p123 = scmp.ne.s32.totalorder %s108, %s122
      %p124 = scmp.eq.s32.totalorder %s25, 0
      %p125 = por %p123, %p124
      %s127 = sadd.s32 %s126, 1
      %p130 = scmp.eq.s32.totalorder %s19, 1
      %p131 = scmp.ne.s32.totalorder %s126, %s128
      %p132 = scmp.eq.s32.totalorder %s19, 0
      %p133 = por %p131, %p132
      %p134 = scmp.ne.s32.totalorder %s126, %s128
      %p135 = scmp.eq.s32.totalorder %s24, 1
      %p136 = por %p134, %p135
      %p137 = scmp.ne.s32.totalorder %s128, %s129
      %p138 = scmp.eq.s32.totalorder %s24, 0
      %p139 = por %p137, %p138
      %p140 = scmp.ne.s32.totalorder %s128, %s129
      %p141 = scmp.eq.s32.totalorder %s25, 1
      %p142 = por %p140, %p141
      %p144 = scmp.ne.s32.totalorder %s129, %s143
      %p145 = scmp.eq.s32.totalorder %s25, 0
      %p146 = por %p144, %p145
      %s148 = sadd.s32 %s147, 1
      %p151 = scmp.eq.s32.totalorder %s19, 1
      %p152 = scmp.ne.s32.totalorder %s147, %s149
      %p153 = scmp.eq.s32.totalorder %s19, 0
      %p154 = por %p152, %p153
      %p155 = scmp.ne.s32.totalorder %s147, %s149
      %p156 = scmp.eq.s32.totalorder %s24, 1
      %p157 = por %p155, %p156
      %p158 = scmp.ne.s32.totalorder %s149, %s150
      %p159 = scmp.eq.s32.totalorder %s24, 0
      %p160 = por %p158, %p159
      %p161 = scmp.ne.s32.totalorder %s149, %s150
      %p162 = scmp.eq.s32.totalorder %s25, 1
      %p163 = por %p161, %p162
      %p165 = scmp.ne.s32.totalorder %s150, %s164
      %p166 = scmp.eq.s32.totalorder %s25, 0
      %p167 = por %p165, %p166
      %s169 = sadd.s32 %s168, 1
      %p172 = scmp.eq.s32.totalorder %s19, 1
      %p173 = scmp.ne.s32.totalorder %s168, %s170
      %p174 = scmp.eq.s32.totalorder %s19, 0
      %p175 = por %p173, %p174
      %p176 = scmp.ne.s32.totalorder %s168, %s170
      %p177 = scmp.eq.s32.totalorder %s24, 1
      %p178 = por %p176, %p177
      %p179 = scmp.ne.s32.totalorder %s170, %s171
      %p180 = scmp.eq.s32.totalorder %s24, 0
      %p181 = por %p179, %p180
      %p182 = scmp.ne.s32.totalorder %s170, %s171
      %p183 = scmp.eq.s32.totalorder %s25, 1
      %p184 = por %p182, %p183
      %p186 = scmp.ne.s32.totalorder %s171, %s185
      %p187 = scmp.eq.s32.totalorder %s25, 0
      %p188 = por %p186, %p187
      %s190 = sadd.s32 %s189, 1
      %p193 = scmp.eq.s32.totalorder %s19, 1
      %p194 = scmp.ne.s32.totalorder %s189, %s191
      %p195 = scmp.eq.s32.totalorder %s19, 0
      %p196 = por %p194, %p195
      %p197 = scmp.ne.s32.totalorder %s189, %s191
      %p198 = scmp.eq.s32.totalorder %s24, 1
      %p199 = por %p197, %p198
      %p200 = scmp.ne.s32.totalorder %s191, %s192
      %p201 = scmp.eq.s32.totalorder %s24, 0
      %p202 = por %p200, %p201
      %p203 = scmp.ne.s32.totalorder %s191, %s192
      %p204 = scmp.eq.s32.totalorder %s25, 1
      %p205 = por %p203, %p204
      %p207 = scmp.ne.s32.totalorder %s192, %s206
      %p208 = scmp.eq.s32.totalorder %s25, 0
      %p209 = por %p207, %p208
      %s211 = sadd.s32 %s210, 1
      %p214 = scmp.eq.s32.totalorder %s19, 1
      %p215 = scmp.ne.s32.totalorder %s210, %s212
      %p216 = scmp.eq.s32.totalorder %s19, 0
      %p217 = por %p215, %p216
      %p218 = scmp.ne.s32.totalorder %s210, %s212
      %p219 = scmp.eq.s32.totalorder %s24, 1
      %p220 = por %p218, %p219
      %p221 = scmp.ne.s32.totalorder %s212, %s213
      %p222 = scmp.eq.s32.totalorder %s24, 0
      %p223 = por %p221, %p222
      %p224 = scmp.ne.s32.totalorder %s212, %s213
      %p225 = scmp.eq.s32.totalorder %s25, 1
      %p226 = por %p224, %p225
      %p228 = scmp.ne.s32.totalorder %s213, %s227
      %p229 = scmp.eq.s32.totalorder %s25, 0
      %p230 = por %p228, %p229
      %s231 = ssub.s32 %s19, %s26
      %p232 = scmp.eq.s32.totalorder %s231, 0
      %s234 = sadd.s32 %s233, 1
      %s235 = scalar_select %p232, %s233, %s234
      %p238 = pneg %p232
      %p239 = scmp.eq.s32.totalorder %s19, 1
      %p240 = por %p238, %p239
      %p241 = scmp.ne.s32.totalorder %s233, %s236
      %p242 = scmp.eq.s32.totalorder %s19, 0
      %p243 = por %p241, %p242
      %p244 = scmp.ne.s32.totalorder %s233, %s236
      %p245 = scmp.eq.s32.totalorder %s24, 1
      %p246 = por %p244, %p245
      %p247 = scmp.ne.s32.totalorder %s236, %s237
      %p248 = scmp.eq.s32.totalorder %s24, 0
      %p249 = por %p247, %p248
      %p250 = scmp.ne.s32.totalorder %s236, %s237
      %p251 = scmp.eq.s32.totalorder %s25, 1
      %p252 = por %p250, %p251
      %p254 = scmp.ne.s32.totalorder %s237, %s253
      %p255 = scmp.eq.s32.totalorder %s25, 0
      %p256 = por %p254, %p255
      %p257 = scmp.le.s32.totalorder 1, %s19
      %p258 = scmp.lt.s32.totalorder %s19, 3
      %p259 = pnand %p257, %p258
      %p260 = pneg %p259
      // Predicated region
      $region9: #{tpu_custom_call.1} parent=5 // pred_check
        _
      $region10: #{tpu_custom_call.1} parent=5 // pred_check_branch
        %262 = sbr.rel (%p259) target = $region12
      $region11: #{tpu_custom_call.1} parent=5 // pred_region
        %s263 = ssub.s32 %s19, 1
        // Predicated region
        $region13: #{tpu_custom_call.1} parent=11 // pred_check
          %p264 = pneg %p118
        $region14: #{tpu_custom_call.1} parent=11 // pred_check_branch
          %266 = sbr.rel (%p264) target = $region16
        $region15: #{tpu_custom_call.1} parent=11 // pred_region
          _
        $region16: #{tpu_custom_call.1} parent=11 // pred_fallthru
          _
        // Predicated region
        $region17: #{tpu_custom_call.1} parent=11 // pred_check
          %p267 = pneg %p139
        $region18: #{tpu_custom_call.1} parent=11 // pred_check_branch
          %269 = sbr.rel (%p267) target = $region20
        $region19: #{tpu_custom_call.1} parent=11 // pred_region
          _
        $region20: #{tpu_custom_call.1} parent=11 // pred_fallthru
          _
        // Predicated region
        $region21: #{tpu_custom_call.1} parent=11 // pred_check
          %p270 = pneg %p160
        $region22: #{tpu_custom_call.1} parent=11 // pred_check_branch
          %272 = sbr.rel (%p270) target = $region24
        $region23: #{tpu_custom_call.1} parent=11 // pred_region
          _
        $region24: #{tpu_custom_call.1} parent=11 // pred_fallthru
          _
        // Predicated region
        $region25: #{tpu_custom_call.1} parent=11 // pred_check
          %p273 = pneg %p181
        $region26: #{tpu_custom_call.1} parent=11 // pred_check_branch
          %275 = sbr.rel (%p273) target = $region28
        $region27: #{tpu_custom_call.1} parent=11 // pred_region
          _
        $region28: #{tpu_custom_call.1} parent=11 // pred_fallthru
          _
        // Predicated region
        $region29: #{tpu_custom_call.1} parent=11 // pred_check
          %p276 = pneg %p202
        $region30: #{tpu_custom_call.1} parent=11 // pred_check_branch
          %278 = sbr.rel (%p276) target = $region32
        $region31: #{tpu_custom_call.1} parent=11 // pred_region
          _
        $region32: #{tpu_custom_call.1} parent=11 // pred_fallthru
          _
        // Predicated region
        $region33: #{tpu_custom_call.1} parent=11 // pred_check
          %p279 = pneg %p223
        $region34: #{tpu_custom_call.1} parent=11 // pred_check_branch
          %281 = sbr.rel (%p279) target = $region36
        $region35: #{tpu_custom_call.1} parent=11 // pred_region
          _
        $region36: #{tpu_custom_call.1} parent=11 // pred_fallthru
          _
      $region12: #{tpu_custom_call.1} parent=5 // pred_fallthru
        _
      %p282 = scmp.lt.s32.totalorder %s19, 2
      // Predicated region
      $region37: #{tpu_custom_call.1} parent=5 // pred_check
        %p283 = pneg %p282
      $region38: #{tpu_custom_call.1} parent=5 // pred_check_branch
        %285 = sbr.rel (%p283) target = $region40
      $region39: #{tpu_custom_call.1} parent=5 // pred_region
        // Predicated region
        $region41: #{tpu_custom_call.1} parent=39 // pred_check
          %p286 = pneg %p39
        $region42: #{tpu_custom_call.1} parent=39 // pred_check_branch
          %288 = sbr.rel (%p286) target = $region44
        $region43: #{tpu_custom_call.1} parent=39 // pred_region
          %s289 = smul.u32 16, %s19
          %s290 = ssub.s32 25, %s289
          %p291 = scmp.lt.s32.totalorder %s290, 16
          %s292 = scalar_select %p291, %s290, 16
          %s293 = smul.u32 64, %s292
          %p294 = scmp.lt.s32.totalorder %s289, 24
          %s295 = scalar_select %p294, %s289, 24
          %s296 = smul.addr %s295, 4
          %s297 = scalar_lea.vmem %s0, %s296
          %s298 = smul.u32 16, %s19
          %s299 = ssub.s32 25, %s298
          %p300 = scmp.lt.s32.totalorder %s299, 16
          %s301 = scalar_select %p300, %s299, 16
          %s302 = smul.u32 64, %s301
        $region44: #{tpu_custom_call.1} parent=39 // pred_fallthru
          _
        // Predicated region
        $region45: #{tpu_custom_call.1} parent=39 // pred_check
          %p303 = pneg %p65
        $region46: #{tpu_custom_call.1} parent=39 // pred_check_branch
          %305 = sbr.rel (%p303) target = $region48
        $region47: #{tpu_custom_call.1} parent=39 // pred_region
          %s306 = smul.u32 16, %s19
          %s307 = ssub.s32 25, %s306
          %p308 = scmp.lt.s32.totalorder %s307, 16
          %s309 = scalar_select %p308, %s307, 16
          %s310 = smul.u32 64, %s309
          %p311 = scmp.lt.s32.totalorder %s306, 24
          %s312 = scalar_select %p311, %s306, 24
          %s313 = smul.addr %s312, 4
          %s314 = scalar_lea.vmem %s1, %s313
          %s315 = smul.u32 16, %s19
          %s316 = ssub.s32 25, %s315
          %p317 = scmp.lt.s32.totalorder %s316, 16
          %s318 = scalar_select %p317, %s316, 16
          %s319 = smul.u32 64, %s318
        $region48: #{tpu_custom_call.1} parent=39 // pred_fallthru
          _
        // Predicated region
        $region49: #{tpu_custom_call.1} parent=39 // pred_check
          %p320 = pneg %p91
        $region50: #{tpu_custom_call.1} parent=39 // pred_check_branch
          %322 = sbr.rel (%p320) target = $region52
        $region51: #{tpu_custom_call.1} parent=39 // pred_region
          %s323 = smul.u32 16, %s19
          %s324 = ssub.s32 25, %s323
          %p325 = scmp.lt.s32.totalorder %s324, 16
          %s326 = scalar_select %p325, %s324, 16
          %s327 = smul.u32 64, %s326
          %p328 = scmp.lt.s32.totalorder %s323, 24
          %s329 = scalar_select %p328, %s323, 24
          %s330 = smul.addr %s329, 4
          %s331 = scalar_lea.vmem %s2, %s330
          %s332 = smul.u32 16, %s19
          %s333 = ssub.s32 25, %s332
          %p334 = scmp.lt.s32.totalorder %s333, 16
          %s335 = scalar_select %p334, %s333, 16
          %s336 = smul.u32 64, %s335
        $region52: #{tpu_custom_call.1} parent=39 // pred_fallthru
          _
      $region40: #{tpu_custom_call.1} parent=5 // pred_fallthru
        _
      %p337 = scmp.le.s32.totalorder 1, %s19
      %p338 = scmp.lt.s32.totalorder %s19, 3
      %p339 = pnand %p337, %p338
      %p340 = pneg %p339
      // Predicated region
      $region53: #{tpu_custom_call.1} parent=5 // pred_check
        _
      $region54: #{tpu_custom_call.1} parent=5 // pred_check_branch
        %342 = sbr.rel (%p339) target = $region56
      $region55: #{tpu_custom_call.1} parent=5 // pred_region
        %s343 = ssub.s32 %s19, 1
        %s344 = smul.u32 16, %s24
        %s345 = ssub.s32 25, %s344
        %p346 = scmp.lt.s32.totalorder %s345, 16
        %s347 = scalar_select %p346, %s345, 16
        %s348 = smul.u32 64, %s347
        %p349 = scmp.lt.s32.totalorder %s344, 24
        %s350 = scalar_select %p349, %s344, 24
        %s351 = smul.addr %s350, 4
        %s352 = scalar_lea.vmem %s0, %s351
        %p353 = pneg %p45
        %p354 = pneg %p42
        %s355 = smul.u32 16, %s24
        %s356 = ssub.s32 25, %s355
        %p357 = scmp.lt.s32.totalorder %s356, 16
        %s358 = scalar_select %p357, %s356, 16
        %s359 = smul.u32 64, %s358
        %p360 = scmp.lt.s32.totalorder %s355, 24
        %s361 = scalar_select %p360, %s355, 24
        %s362 = smul.addr %s361, 4
        %s363 = scalar_lea.vmem %s1, %s362
        %p364 = pneg %p71
        %p365 = pneg %p68
        %s366 = smul.u32 16, %s24
        %s367 = ssub.s32 25, %s366
        %p368 = scmp.lt.s32.totalorder %s367, 16
        %s369 = scalar_select %p368, %s367, 16
        %s370 = smul.u32 64, %s369
        %p371 = scmp.lt.s32.totalorder %s366, 24
        %s372 = scalar_select %p371, %s366, 24
        %s373 = smul.addr %s372, 4
        %s374 = scalar_lea.vmem %s2, %s373
        %p375 = pneg %p97
        %p376 = pneg %p94
        %p377 = pneg %p118
        %p378 = pneg %p115
        %p379 = pneg %p139
        %p380 = pneg %p136
        %p381 = pneg %p160
        %p382 = pneg %p157
        %p383 = pneg %p181
        %p384 = pneg %p178
        %p385 = pneg %p202
        %p386 = pneg %p199
        %p387 = pneg %p223
        %p388 = pneg %p220
        %p389 = pneg %p249
        %p390 = pneg %p246
        %s391 = sand.u32 %s236, 1
        %s392 = scalar_lea.sflag [#allocation4], %s391
        %s393 = sand.u32 %s236, 1
        %s394 = smul.addr %s393, 128
        %s395 = scalar_lea.vmem [#allocation3], %s394
        %s396 = smul.u32 16, %s24
        %s397 = ssub.s32 25, %s396
        %p398 = scmp.lt.s32.totalorder %s397, 16
        %s399 = scalar_select %p398, %s397, 16
        %s400 = smul.u32 64, %s399
        %p401 = scmp.lt.s32.totalorder %s396, 24
        %s402 = scalar_select %p401, %s396, 24
        %s403 = smul.addr %s402, 4
        %s404 = scalar_lea.vmem %s0, %s403
        %s405 = smul.u32 16, %s24
        %s406 = ssub.s32 25, %s405
        %p407 = scmp.lt.s32.totalorder %s406, 16
        %s408 = scalar_select %p407, %s406, 16
        %s409 = smul.u32 64, %s408
        %s410 = smul.u32 16, %s24
        %s411 = ssub.s32 25, %s410
        %p412 = scmp.lt.s32.totalorder %s411, 16
        %s413 = scalar_select %p412, %s411, 16
        %s414 = smul.u32 64, %s413
        %p415 = scmp.lt.s32.totalorder %s410, 24
        %s416 = scalar_select %p415, %s410, 24
        %s417 = smul.addr %s416, 4
        %s418 = scalar_lea.vmem %s1, %s417
        %s419 = smul.u32 16, %s24
        %s420 = ssub.s32 25, %s419
        %p421 = scmp.lt.s32.totalorder %s420, 16
        %s422 = scalar_select %p421, %s420, 16
        %s423 = smul.u32 64, %s422
        %s424 = smul.u32 16, %s24
        %s425 = ssub.s32 25, %s424
        %p426 = scmp.lt.s32.totalorder %s425, 16
        %s427 = scalar_select %p426, %s425, 16
        %s428 = smul.u32 64, %s427
        %p429 = scmp.lt.s32.totalorder %s424, 24
        %s430 = scalar_select %p429, %s424, 24
        %s431 = smul.addr %s430, 4
        %s432 = scalar_lea.vmem %s2, %s431
        %s433 = smul.u32 16, %s24
        %s434 = ssub.s32 25, %s433
        %p435 = scmp.lt.s32.totalorder %s434, 16
        %s436 = scalar_select %p435, %s434, 16
        %s437 = smul.u32 64, %s436
        %s438 = smul.u32 16, %s24
        %s439 = ssub.s32 25, %s438
        %p440 = scmp.lt.s32.totalorder %s439, 16
        %s441 = scalar_select %p440, %s439, 16
        %s442 = smul.u32 128, %s441
        %v444 = vld [vmem:[%s3] sm:$0x1]
        %v445 = vld [vmem:[%s404] sm:$0xf]
        %v446 = vld [vmem:[%s404 + $0x4] sm:$0xf]
        %v447 = vld [vmem:[%s404 + $0x8] sm:$0xf]
        %v448 = vld [vmem:[%s404 + $0xc] sm:$0xf]
        %v449 = vld [vmem:[%s404 + $0x10] sm:$0xf]
        %v450 = vld [vmem:[%s404 + $0x14] sm:$0xf]
        %v451 = vld [vmem:[%s404 + $0x18] sm:$0xf]
        %v452 = vld [vmem:[%s404 + $0x1c] sm:$0xf]
        %v453 = vld [vmem:[%s404 + $0x20] sm:$0xf]
        %v454 = vld [vmem:[%s404 + $0x24] sm:$0xf]
        %v455 = vld [vmem:[%s404 + $0x28] sm:$0xf]
        %v456 = vld [vmem:[%s404 + $0x2c] sm:$0xf]
        %v457 = vld [vmem:[%s404 + $0x30] sm:$0xf]
        %v458 = vld [vmem:[%s404 + $0x34] sm:$0xf]
        %v459 = vld [vmem:[%s404 + $0x38] sm:$0xf]
        %v460 = vld [vmem:[%s404 + $0x3c] sm:$0xf]
        %v461 = vunpack.c.l.bf16 %v445
        %v462 = vunpack.c.l.bf16 %v446
        %v463 = vunpack.c.l.bf16 %v447
        %v464 = vunpack.c.l.bf16 %v448
        %v465 = vunpack.c.l.bf16 %v449
        %v466 = vunpack.c.l.bf16 %v450
        %v467 = vunpack.c.l.bf16 %v451
        %v468 = vunpack.c.l.bf16 %v452
        %v469 = vunpack.c.l.bf16 %v453
        %v470 = vunpack.c.l.bf16 %v454
        %v471 = vunpack.c.l.bf16 %v455
        %v472 = vunpack.c.l.bf16 %v456
        %v473 = vunpack.c.l.bf16 %v457
        %v474 = vunpack.c.l.bf16 %v458
        %v475 = vunpack.c.l.bf16 %v459
        %v476 = vunpack.c.l.bf16 %v460
        %v478 = vlaneseq
        %v479 = vshrl.u32 %v478, 7
        %v480 = vsub.s32 0, %v479
        %v481 = vrot.slane %v444, %v480
        %v483 = vmul.f32 %v461, %v481
        %v484 = vmul.f32 %v462, %v481
        %v485 = vmul.f32 %v463, %v481
        %v486 = vmul.f32 %v464, %v481
        %v487 = vmul.f32 %v465, %v481
        %v488 = vmul.f32 %v466, %v481
        %v489 = vmul.f32 %v467, %v481
        %v490 = vmul.f32 %v468, %v481
        %v491 = vmul.f32 %v469, %v481
        %v492 = vmul.f32 %v470, %v481
        %v493 = vmul.f32 %v471, %v481
        %v494 = vmul.f32 %v472, %v481
        %v495 = vmul.f32 %v473, %v481
        %v496 = vmul.f32 %v474, %v481
        %v497 = vmul.f32 %v475, %v481
        %v498 = vmul.f32 %v476, %v481
        %vm499 = vcmask 523264
        %v500 = vsel %vm499, %v483, 0.0
        %501 = vadd.xlane.f32.xlu0 %v500
        %v502 = vpop.xlane.xlu0 %501
        %v503 = vsel %vm499, %v484, 0.0
        %504 = vadd.xlane.f32.xlu0 %v503
        %v505 = vpop.xlane.xlu0 %504
        %v506 = vsel %vm499, %v485, 0.0
        %507 = vadd.xlane.f32.xlu0 %v506
        %v508 = vpop.xlane.xlu0 %507
        %v509 = vsel %vm499, %v486, 0.0
        %510 = vadd.xlane.f32.xlu0 %v509
        %v511 = vpop.xlane.xlu0 %510
        %v512 = vsel %vm499, %v487, 0.0
        %513 = vadd.xlane.f32.xlu0 %v512
        %v514 = vpop.xlane.xlu0 %513
        %v515 = vsel %vm499, %v488, 0.0
        %516 = vadd.xlane.f32.xlu0 %v515
        %v517 = vpop.xlane.xlu0 %516
        %v518 = vsel %vm499, %v489, 0.0
        %519 = vadd.xlane.f32.xlu0 %v518
        %v520 = vpop.xlane.xlu0 %519
        %v521 = vsel %vm499, %v490, 0.0
        %522 = vadd.xlane.f32.xlu0 %v521
        %v523 = vpop.xlane.xlu0 %522
        %v524 = vsel %vm499, %v491, 0.0
        %525 = vadd.xlane.f32.xlu0 %v524
        %v526 = vpop.xlane.xlu0 %525
        %v527 = vsel %vm499, %v492, 0.0
        %528 = vadd.xlane.f32.xlu0 %v527
        %v529 = vpop.xlane.xlu0 %528
        %v530 = vsel %vm499, %v493, 0.0
        %531 = vadd.xlane.f32.xlu0 %v530
        %v532 = vpop.xlane.xlu0 %531
        %v533 = vsel %vm499, %v494, 0.0
        %534 = vadd.xlane.f32.xlu0 %v533
        %v535 = vpop.xlane.xlu0 %534
        %v536 = vsel %vm499, %v495, 0.0
        %537 = vadd.xlane.f32.xlu0 %v536
        %v538 = vpop.xlane.xlu0 %537
        %v539 = vsel %vm499, %v496, 0.0
        %540 = vadd.xlane.f32.xlu0 %v539
        %v541 = vpop.xlane.xlu0 %540
        %v542 = vsel %vm499, %v497, 0.0
        %543 = vadd.xlane.f32.xlu0 %v542
        %v544 = vpop.xlane.xlu0 %543
        %v545 = vsel %vm499, %v498, 0.0
        %546 = vadd.xlane.f32.xlu0 %v545
        %v547 = vpop.xlane.xlu0 %546
        %v548 = vxor.u32 %v502, 2147483648
        %v549 = vxor.u32 %v505, 2147483648
        %v550 = vxor.u32 %v508, 2147483648
        %v551 = vxor.u32 %v511, 2147483648
        %v552 = vxor.u32 %v514, 2147483648
        %v553 = vxor.u32 %v517, 2147483648
        %v554 = vxor.u32 %v520, 2147483648
        %v555 = vxor.u32 %v523, 2147483648
        %v556 = vxor.u32 %v526, 2147483648
        %v557 = vxor.u32 %v529, 2147483648
        %v558 = vxor.u32 %v532, 2147483648
        %v559 = vxor.u32 %v535, 2147483648
        %v560 = vxor.u32 %v538, 2147483648
        %v561 = vxor.u32 %v541, 2147483648
        %v562 = vxor.u32 %v544, 2147483648
        %v563 = vxor.u32 %v547, 2147483648
        %v564 = vmul.f32 %v548, 1.442695
        %v565 = vpow.pop %v564
        %v566 = vmul.f32 %v549, 1.442695
        %v567 = vpow.pop %v566
        %v568 = vmul.f32 %v550, 1.442695
        %v569 = vpow.pop %v568
        %v570 = vmul.f32 %v551, 1.442695
        %v571 = vpow.pop %v570
        %v572 = vmul.f32 %v552, 1.442695
        %v573 = vpow.pop %v572
        %v574 = vmul.f32 %v553, 1.442695
        %v575 = vpow.pop %v574
        %v576 = vmul.f32 %v554, 1.442695
        %v577 = vpow.pop %v576
        %v578 = vmul.f32 %v555, 1.442695
        %v579 = vpow.pop %v578
        %v580 = vmul.f32 %v556, 1.442695
        %v581 = vpow.pop %v580
        %v582 = vmul.f32 %v557, 1.442695
        %v583 = vpow.pop %v582
        %v584 = vmul.f32 %v558, 1.442695
        %v585 = vpow.pop %v584
        %v586 = vmul.f32 %v559, 1.442695
        %v587 = vpow.pop %v586
        %v588 = vmul.f32 %v560, 1.442695
        %v589 = vpow.pop %v588
        %v590 = vmul.f32 %v561, 1.442695
        %v591 = vpow.pop %v590
        %v592 = vmul.f32 %v562, 1.442695
        %v593 = vpow.pop %v592
        %v594 = vmul.f32 %v563, 1.442695
        %v595 = vpow.pop %v594
        %v596 = vadd.f32 %v565, 1.0
        %v597 = vadd.f32 %v567, 1.0
        %v598 = vadd.f32 %v569, 1.0
        %v599 = vadd.f32 %v571, 1.0
        %v600 = vadd.f32 %v573, 1.0
        %v601 = vadd.f32 %v575, 1.0
        %v602 = vadd.f32 %v577, 1.0
        %v603 = vadd.f32 %v579, 1.0
        %v604 = vadd.f32 %v581, 1.0
        %v605 = vadd.f32 %v583, 1.0
        %v606 = vadd.f32 %v585, 1.0
        %v607 = vadd.f32 %v587, 1.0
        %v608 = vadd.f32 %v589, 1.0
        %v609 = vadd.f32 %v591, 1.0
        %v610 = vadd.f32 %v593, 1.0
        %v611 = vadd.f32 %v595, 1.0
        %v612 = vrcp.pop %v596
        %v613 = vmul.f32 1.0, %v612
        %v614 = vrcp.pop %v597
        %v615 = vmul.f32 1.0, %v614
        %v616 = vrcp.pop %v598
        %v617 = vmul.f32 1.0, %v616
        %v618 = vrcp.pop %v599
        %v619 = vmul.f32 1.0, %v618
        %v620 = vrcp.pop %v600
        %v621 = vmul.f32 1.0, %v620
        %v622 = vrcp.pop %v601
        %v623 = vmul.f32 1.0, %v622
        %v624 = vrcp.pop %v602
        %v625 = vmul.f32 1.0, %v624
        %v626 = vrcp.pop %v603
        %v627 = vmul.f32 1.0, %v626
        %v628 = vrcp.pop %v604
        %v629 = vmul.f32 1.0, %v628
        %v630 = vrcp.pop %v605
        %v631 = vmul.f32 1.0, %v630
        %v632 = vrcp.pop %v606
        %v633 = vmul.f32 1.0, %v632
        %v634 = vrcp.pop %v607
        %v635 = vmul.f32 1.0, %v634
        %v636 = vrcp.pop %v608
        %v637 = vmul.f32 1.0, %v636
        %v638 = vrcp.pop %v609
        %v639 = vmul.f32 1.0, %v638
        %v640 = vrcp.pop %v610
        %v641 = vmul.f32 1.0, %v640
        %v642 = vrcp.pop %v611
        %v643 = vmul.f32 1.0, %v642
        %v644 = vld [vmem:[%s418] sm:$0xf]
        %v645 = vld [vmem:[%s418 + $0x4] sm:$0xf]
        %v646 = vld [vmem:[%s418 + $0x8] sm:$0xf]
        %v647 = vld [vmem:[%s418 + $0xc] sm:$0xf]
        %v648 = vld [vmem:[%s418 + $0x10] sm:$0xf]
        %v649 = vld [vmem:[%s418 + $0x14] sm:$0xf]
        %v650 = vld [vmem:[%s418 + $0x18] sm:$0xf]
        %v651 = vld [vmem:[%s418 + $0x1c] sm:$0xf]
        %v652 = vld [vmem:[%s418 + $0x20] sm:$0xf]
        %v653 = vld [vmem:[%s418 + $0x24] sm:$0xf]
        %v654 = vld [vmem:[%s418 + $0x28] sm:$0xf]
        %v655 = vld [vmem:[%s418 + $0x2c] sm:$0xf]
        %v656 = vld [vmem:[%s418 + $0x30] sm:$0xf]
        %v657 = vld [vmem:[%s418 + $0x34] sm:$0xf]
        %v658 = vld [vmem:[%s418 + $0x38] sm:$0xf]
        %v659 = vld [vmem:[%s418 + $0x3c] sm:$0xf]
        %v660 = vunpack.c.l.bf16 %v644
        %v661 = vunpack.c.l.bf16 %v645
        %v662 = vunpack.c.l.bf16 %v646
        %v663 = vunpack.c.l.bf16 %v647
        %v664 = vunpack.c.l.bf16 %v648
        %v665 = vunpack.c.l.bf16 %v649
        %v666 = vunpack.c.l.bf16 %v650
        %v667 = vunpack.c.l.bf16 %v651
        %v668 = vunpack.c.l.bf16 %v652
        %v669 = vunpack.c.l.bf16 %v653
        %v670 = vunpack.c.l.bf16 %v654
        %v671 = vunpack.c.l.bf16 %v655
        %v672 = vunpack.c.l.bf16 %v656
        %v673 = vunpack.c.l.bf16 %v657
        %v674 = vunpack.c.l.bf16 %v658
        %v675 = vunpack.c.l.bf16 %v659
        %v676 = vmul.f32 %v660, %v481
        %v677 = vmul.f32 %v661, %v481
        %v678 = vmul.f32 %v662, %v481
        %v679 = vmul.f32 %v663, %v481
        %v680 = vmul.f32 %v664, %v481
        %v681 = vmul.f32 %v665, %v481
        %v682 = vmul.f32 %v666, %v481
        %v683 = vmul.f32 %v667, %v481
        %v684 = vmul.f32 %v668, %v481
        %v685 = vmul.f32 %v669, %v481
        %v686 = vmul.f32 %v670, %v481
        %v687 = vmul.f32 %v671, %v481
        %v688 = vmul.f32 %v672, %v481
        %v689 = vmul.f32 %v673, %v481
        %v690 = vmul.f32 %v674, %v481
        %v691 = vmul.f32 %v675, %v481
        %v692 = vsel %vm499, %v676, 0.0
        %693 = vadd.xlane.f32.xlu0 %v692
        %v694 = vpop.xlane.xlu0 %693
        %v695 = vsel %vm499, %v677, 0.0
        %696 = vadd.xlane.f32.xlu0 %v695
        %v697 = vpop.xlane.xlu0 %696
        %v698 = vsel %vm499, %v678, 0.0
        %699 = vadd.xlane.f32.xlu0 %v698
        %v700 = vpop.xlane.xlu0 %699
        %v701 = vsel %vm499, %v679, 0.0
        %702 = vadd.xlane.f32.xlu0 %v701
        %v703 = vpop.xlane.xlu0 %702
        %v704 = vsel %vm499, %v680, 0.0
        %705 = vadd.xlane.f32.xlu0 %v704
        %v706 = vpop.xlane.xlu0 %705
        %v707 = vsel %vm499, %v681, 0.0
        %708 = vadd.xlane.f32.xlu0 %v707
        %v709 = vpop.xlane.xlu0 %708
        %v710 = vsel %vm499, %v682, 0.0
        %711 = vadd.xlane.f32.xlu0 %v710
        %v712 = vpop.xlane.xlu0 %711
        %v713 = vsel %vm499, %v683, 0.0
        %714 = vadd.xlane.f32.xlu0 %v713
        %v715 = vpop.xlane.xlu0 %714
        %v716 = vsel %vm499, %v684, 0.0
        %717 = vadd.xlane.f32.xlu0 %v716
        %v718 = vpop.xlane.xlu0 %717
        %v719 = vsel %vm499, %v685, 0.0
        %720 = vadd.xlane.f32.xlu0 %v719
        %v721 = vpop.xlane.xlu0 %720
        %v722 = vsel %vm499, %v686, 0.0
        %723 = vadd.xlane.f32.xlu0 %v722
        %v724 = vpop.xlane.xlu0 %723
        %v725 = vsel %vm499, %v687, 0.0
        %726 = vadd.xlane.f32.xlu0 %v725
        %v727 = vpop.xlane.xlu0 %726
        %v728 = vsel %vm499, %v688, 0.0
        %729 = vadd.xlane.f32.xlu0 %v728
        %v730 = vpop.xlane.xlu0 %729
        %v731 = vsel %vm499, %v689, 0.0
        %732 = vadd.xlane.f32.xlu0 %v731
        %v733 = vpop.xlane.xlu0 %732
        %v734 = vsel %vm499, %v690, 0.0
        %735 = vadd.xlane.f32.xlu0 %v734
        %v736 = vpop.xlane.xlu0 %735
        %v737 = vsel %vm499, %v691, 0.0
        %738 = vadd.xlane.f32.xlu0 %v737
        %v739 = vpop.xlane.xlu0 %738
        %v740 = vxor.u32 %v694, 2147483648
        %v741 = vxor.u32 %v697, 2147483648
        %v742 = vxor.u32 %v700, 2147483648
        %v743 = vxor.u32 %v703, 2147483648
        %v744 = vxor.u32 %v706, 2147483648
        %v745 = vxor.u32 %v709, 2147483648
        %v746 = vxor.u32 %v712, 2147483648
        %v747 = vxor.u32 %v715, 2147483648
        %v748 = vxor.u32 %v718, 2147483648
        %v749 = vxor.u32 %v721, 2147483648
        %v750 = vxor.u32 %v724, 2147483648
        %v751 = vxor.u32 %v727, 2147483648
        %v752 = vxor.u32 %v730, 2147483648
        %v753 = vxor.u32 %v733, 2147483648
        %v754 = vxor.u32 %v736, 2147483648
        %v755 = vxor.u32 %v739, 2147483648
        %v756 = vmul.f32 %v740, 1.442695
        %v757 = vpow.pop %v756
        %v758 = vmul.f32 %v741, 1.442695
        %v759 = vpow.pop %v758
        %v760 = vmul.f32 %v742, 1.442695
        %v761 = vpow.pop %v760
        %v762 = vmul.f32 %v743, 1.442695
        %v763 = vpow.pop %v762
        %v764 = vmul.f32 %v744, 1.442695
        %v765 = vpow.pop %v764
        %v766 = vmul.f32 %v745, 1.442695
        %v767 = vpow.pop %v766
        %v768 = vmul.f32 %v746, 1.442695
        %v769 = vpow.pop %v768
        %v770 = vmul.f32 %v747, 1.442695
        %v771 = vpow.pop %v770
        %v772 = vmul.f32 %v748, 1.442695
        %v773 = vpow.pop %v772
        %v774 = vmul.f32 %v749, 1.442695
        %v775 = vpow.pop %v774
        %v776 = vmul.f32 %v750, 1.442695
        %v777 = vpow.pop %v776
        %v778 = vmul.f32 %v751, 1.442695
        %v779 = vpow.pop %v778
        %v780 = vmul.f32 %v752, 1.442695
        %v781 = vpow.pop %v780
        %v782 = vmul.f32 %v753, 1.442695
        %v783 = vpow.pop %v782
        %v784 = vmul.f32 %v754, 1.442695
        %v785 = vpow.pop %v784
        %v786 = vmul.f32 %v755, 1.442695
        %v787 = vpow.pop %v786
        %v788 = vadd.f32 %v757, 1.0
        %v789 = vadd.f32 %v759, 1.0
        %v790 = vadd.f32 %v761, 1.0
        %v791 = vadd.f32 %v763, 1.0
        %v792 = vadd.f32 %v765, 1.0
        %v793 = vadd.f32 %v767, 1.0
        %v794 = vadd.f32 %v769, 1.0
        %v795 = vadd.f32 %v771, 1.0
        %v796 = vadd.f32 %v773, 1.0
        %v797 = vadd.f32 %v775, 1.0
        %v798 = vadd.f32 %v777, 1.0
        %v799 = vadd.f32 %v779, 1.0
        %v800 = vadd.f32 %v781, 1.0
        %v801 = vadd.f32 %v783, 1.0
        %v802 = vadd.f32 %v785, 1.0
        %v803 = vadd.f32 %v787, 1.0
        %v804 = vrcp.pop %v788
        %v805 = vmul.f32 1.0, %v804
        %v806 = vrcp.pop %v789
        %v807 = vmul.f32 1.0, %v806
        %v808 = vrcp.pop %v790
        %v809 = vmul.f32 1.0, %v808
        %v810 = vrcp.pop %v791
        %v811 = vmul.f32 1.0, %v810
        %v812 = vrcp.pop %v792
        %v813 = vmul.f32 1.0, %v812
        %v814 = vrcp.pop %v793
        %v815 = vmul.f32 1.0, %v814
        %v816 = vrcp.pop %v794
        %v817 = vmul.f32 1.0, %v816
        %v818 = vrcp.pop %v795
        %v819 = vmul.f32 1.0, %v818
        %v820 = vrcp.pop %v796
        %v821 = vmul.f32 1.0, %v820
        %v822 = vrcp.pop %v797
        %v823 = vmul.f32 1.0, %v822
        %v824 = vrcp.pop %v798
        %v825 = vmul.f32 1.0, %v824
        %v826 = vrcp.pop %v799
        %v827 = vmul.f32 1.0, %v826
        %v828 = vrcp.pop %v800
        %v829 = vmul.f32 1.0, %v828
        %v830 = vrcp.pop %v801
        %v831 = vmul.f32 1.0, %v830
        %v832 = vrcp.pop %v802
        %v833 = vmul.f32 1.0, %v832
        %v834 = vrcp.pop %v803
        %v835 = vmul.f32 1.0, %v834
        %v836 = vld [vmem:[%s432] sm:$0xf]
        %v837 = vld [vmem:[%s432 + $0x4] sm:$0xf]
        %v838 = vld [vmem:[%s432 + $0x8] sm:$0xf]
        %v839 = vld [vmem:[%s432 + $0xc] sm:$0xf]
        %v840 = vld [vmem:[%s432 + $0x10] sm:$0xf]
        %v841 = vld [vmem:[%s432 + $0x14] sm:$0xf]
        %v842 = vld [vmem:[%s432 + $0x18] sm:$0xf]
        %v843 = vld [vmem:[%s432 + $0x1c] sm:$0xf]
        %v844 = vld [vmem:[%s432 + $0x20] sm:$0xf]
        %v845 = vld [vmem:[%s432 + $0x24] sm:$0xf]
        %v846 = vld [vmem:[%s432 + $0x28] sm:$0xf]
        %v847 = vld [vmem:[%s432 + $0x2c] sm:$0xf]
        %v848 = vld [vmem:[%s432 + $0x30] sm:$0xf]
        %v849 = vld [vmem:[%s432 + $0x34] sm:$0xf]
        %v850 = vld [vmem:[%s432 + $0x38] sm:$0xf]
        %v851 = vld [vmem:[%s432 + $0x3c] sm:$0xf]
        %v852 = vunpack.c.l.bf16 %v836
        %v853 = vunpack.c.l.bf16 %v837
        %v854 = vunpack.c.l.bf16 %v838
        %v855 = vunpack.c.l.bf16 %v839
        %v856 = vunpack.c.l.bf16 %v840
        %v857 = vunpack.c.l.bf16 %v841
        %v858 = vunpack.c.l.bf16 %v842
        %v859 = vunpack.c.l.bf16 %v843
        %v860 = vunpack.c.l.bf16 %v844
        %v861 = vunpack.c.l.bf16 %v845
        %v862 = vunpack.c.l.bf16 %v846
        %v863 = vunpack.c.l.bf16 %v847
        %v864 = vunpack.c.l.bf16 %v848
        %v865 = vunpack.c.l.bf16 %v849
        %v866 = vunpack.c.l.bf16 %v850
        %v867 = vunpack.c.l.bf16 %v851
        %v868 = vmul.f32 %v852, %v481
        %v869 = vmul.f32 %v853, %v481
        %v870 = vmul.f32 %v854, %v481
        %v871 = vmul.f32 %v855, %v481
        %v872 = vmul.f32 %v856, %v481
        %v873 = vmul.f32 %v857, %v481
        %v874 = vmul.f32 %v858, %v481
        %v875 = vmul.f32 %v859, %v481
        %v876 = vmul.f32 %v860, %v481
        %v877 = vmul.f32 %v861, %v481
        %v878 = vmul.f32 %v862, %v481
        %v879 = vmul.f32 %v863, %v481
        %v880 = vmul.f32 %v864, %v481
        %v881 = vmul.f32 %v865, %v481
        %v882 = vmul.f32 %v866, %v481
        %v883 = vmul.f32 %v867, %v481
        %v884 = vsel %vm499, %v868, 0.0
        %885 = vadd.xlane.f32.xlu0 %v884
        %v886 = vpop.xlane.xlu0 %885
        %v887 = vsel %vm499, %v869, 0.0
        %888 = vadd.xlane.f32.xlu0 %v887
        %v889 = vpop.xlane.xlu0 %888
        %v890 = vsel %vm499, %v870, 0.0
        %891 = vadd.xlane.f32.xlu0 %v890
        %v892 = vpop.xlane.xlu0 %891
        %v893 = vsel %vm499, %v871, 0.0
        %894 = vadd.xlane.f32.xlu0 %v893
        %v895 = vpop.xlane.xlu0 %894
        %v896 = vsel %vm499, %v872, 0.0
        %897 = vadd.xlane.f32.xlu0 %v896
        %v898 = vpop.xlane.xlu0 %897
        %v899 = vsel %vm499, %v873, 0.0
        %900 = vadd.xlane.f32.xlu0 %v899
        %v901 = vpop.xlane.xlu0 %900
        %v902 = vsel %vm499, %v874, 0.0
        %903 = vadd.xlane.f32.xlu0 %v902
        %v904 = vpop.xlane.xlu0 %903
        %v905 = vsel %vm499, %v875, 0.0
        %906 = vadd.xlane.f32.xlu0 %v905
        %v907 = vpop.xlane.xlu0 %906
        %v908 = vsel %vm499, %v876, 0.0
        %909 = vadd.xlane.f32.xlu0 %v908
        %v910 = vpop.xlane.xlu0 %909
        %v911 = vsel %vm499, %v877, 0.0
        %912 = vadd.xlane.f32.xlu0 %v911
        %v913 = vpop.xlane.xlu0 %912
        %v914 = vsel %vm499, %v878, 0.0
        %915 = vadd.xlane.f32.xlu0 %v914
        %v916 = vpop.xlane.xlu0 %915
        %v917 = vsel %vm499, %v879, 0.0
        %918 = vadd.xlane.f32.xlu0 %v917
        %v919 = vpop.xlane.xlu0 %918
        %v920 = vsel %vm499, %v880, 0.0
        %921 = vadd.xlane.f32.xlu0 %v920
        %v922 = vpop.xlane.xlu0 %921
        %v923 = vsel %vm499, %v881, 0.0
        %924 = vadd.xlane.f32.xlu0 %v923
        %v925 = vpop.xlane.xlu0 %924
        %v926 = vsel %vm499, %v882, 0.0
        %927 = vadd.xlane.f32.xlu0 %v926
        %v928 = vpop.xlane.xlu0 %927
        %v929 = vsel %vm499, %v883, 0.0
        %930 = vadd.xlane.f32.xlu0 %v929
        %v931 = vpop.xlane.xlu0 %930
        %v932 = vxor.u32 %v886, 2147483648
        %v933 = vxor.u32 %v889, 2147483648
        %v934 = vxor.u32 %v892, 2147483648
        %v935 = vxor.u32 %v895, 2147483648
        %v936 = vxor.u32 %v898, 2147483648
        %v937 = vxor.u32 %v901, 2147483648
        %v938 = vxor.u32 %v904, 2147483648
        %v939 = vxor.u32 %v907, 2147483648
        %v940 = vxor.u32 %v910, 2147483648
        %v941 = vxor.u32 %v913, 2147483648
        %v942 = vxor.u32 %v916, 2147483648
        %v943 = vxor.u32 %v919, 2147483648
        %v944 = vxor.u32 %v922, 2147483648
        %v945 = vxor.u32 %v925, 2147483648
        %v946 = vxor.u32 %v928, 2147483648
        %v947 = vxor.u32 %v931, 2147483648
        %v948 = vmul.f32 %v932, 1.442695
        %v949 = vpow.pop %v948
        %v950 = vmul.f32 %v933, 1.442695
        %v951 = vpow.pop %v950
        %v952 = vmul.f32 %v934, 1.442695
        %v953 = vpow.pop %v952
        %v954 = vmul.f32 %v935, 1.442695
        %v955 = vpow.pop %v954
        %v956 = vmul.f32 %v936, 1.442695
        %v957 = vpow.pop %v956
        %v958 = vmul.f32 %v937, 1.442695
        %v959 = vpow.pop %v958
        %v960 = vmul.f32 %v938, 1.442695
        %v961 = vpow.pop %v960
        %v962 = vmul.f32 %v939, 1.442695
        %v963 = vpow.pop %v962
        %v964 = vmul.f32 %v940, 1.442695
        %v965 = vpow.pop %v964
        %v966 = vmul.f32 %v941, 1.442695
        %v967 = vpow.pop %v966
        %v968 = vmul.f32 %v942, 1.442695
        %v969 = vpow.pop %v968
        %v970 = vmul.f32 %v943, 1.442695
        %v971 = vpow.pop %v970
        %v972 = vmul.f32 %v944, 1.442695
        %v973 = vpow.pop %v972
        %v974 = vmul.f32 %v945, 1.442695
        %v975 = vpow.pop %v974
        %v976 = vmul.f32 %v946, 1.442695
        %v977 = vpow.pop %v976
        %v978 = vmul.f32 %v947, 1.442695
        %v979 = vpow.pop %v978
        %v980 = vadd.f32 %v949, 1.0
        %v981 = vadd.f32 %v951, 1.0
        %v982 = vadd.f32 %v953, 1.0
        %v983 = vadd.f32 %v955, 1.0
        %v984 = vadd.f32 %v957, 1.0
        %v985 = vadd.f32 %v959, 1.0
        %v986 = vadd.f32 %v961, 1.0
        %v987 = vadd.f32 %v963, 1.0
        %v988 = vadd.f32 %v965, 1.0
        %v989 = vadd.f32 %v967, 1.0
        %v990 = vadd.f32 %v969, 1.0
        %v991 = vadd.f32 %v971, 1.0
        %v992 = vadd.f32 %v973, 1.0
        %v993 = vadd.f32 %v975, 1.0
        %v994 = vadd.f32 %v977, 1.0
        %v995 = vadd.f32 %v979, 1.0
        %v996 = vrcp.pop %v980
        %v997 = vmul.f32 1.0, %v996
        %v998 = vrcp.pop %v981
        %v999 = vmul.f32 1.0, %v998
        %v1000 = vrcp.pop %v982
        %v1001 = vmul.f32 1.0, %v1000
        %v1002 = vrcp.pop %v983
        %v1003 = vmul.f32 1.0, %v1002
        %v1004 = vrcp.pop %v984
        %v1005 = vmul.f32 1.0, %v1004
        %v1006 = vrcp.pop %v985
        %v1007 = vmul.f32 1.0, %v1006
        %v1008 = vrcp.pop %v986
        %v1009 = vmul.f32 1.0, %v1008
        %v1010 = vrcp.pop %v987
        %v1011 = vmul.f32 1.0, %v1010
        %v1012 = vrcp.pop %v988
        %v1013 = vmul.f32 1.0, %v1012
        %v1014 = vrcp.pop %v989
        %v1015 = vmul.f32 1.0, %v1014
        %v1016 = vrcp.pop %v990
        %v1017 = vmul.f32 1.0, %v1016
        %v1018 = vrcp.pop %v991
        %v1019 = vmul.f32 1.0, %v1018
        %v1020 = vrcp.pop %v992
        %v1021 = vmul.f32 1.0, %v1020
        %v1022 = vrcp.pop %v993
        %v1023 = vmul.f32 1.0, %v1022
        %v1024 = vrcp.pop %v994
        %v1025 = vmul.f32 1.0, %v1024
        %v1026 = vrcp.pop %v995
        %v1027 = vmul.f32 1.0, %v1026
        %v1028 = vmax.f32 %v613, %v805
        %v1029 = vmax.f32 %v615, %v807
        %v1030 = vmax.f32 %v617, %v809
        %v1031 = vmax.f32 %v619, %v811
        %v1032 = vmax.f32 %v621, %v813
        %v1033 = vmax.f32 %v623, %v815
        %v1034 = vmax.f32 %v625, %v817
        %v1035 = vmax.f32 %v627, %v819
        %v1036 = vmax.f32 %v629, %v821
        %v1037 = vmax.f32 %v631, %v823
        %v1038 = vmax.f32 %v633, %v825
        %v1039 = vmax.f32 %v635, %v827
        %v1040 = vmax.f32 %v637, %v829
        %v1041 = vmax.f32 %v639, %v831
        %v1042 = vmax.f32 %v641, %v833
        %v1043 = vmax.f32 %v643, %v835
        %v1044 = vmax.f32 %v1028, %v997
        %v1045 = vmax.f32 %v1029, %v999
        %v1046 = vmax.f32 %v1030, %v1001
        %v1047 = vmax.f32 %v1031, %v1003
        %v1048 = vmax.f32 %v1032, %v1005
        %v1049 = vmax.f32 %v1033, %v1007
        %v1050 = vmax.f32 %v1034, %v1009
        %v1051 = vmax.f32 %v1035, %v1011
        %v1052 = vmax.f32 %v1036, %v1013
        %v1053 = vmax.f32 %v1037, %v1015
        %v1054 = vmax.f32 %v1038, %v1017
        %v1055 = vmax.f32 %v1039, %v1019
        %v1056 = vmax.f32 %v1040, %v1021
        %v1057 = vmax.f32 %v1041, %v1023
        %v1058 = vmax.f32 %v1042, %v1025
        %v1059 = vmax.f32 %v1043, %v1027
        %v1060 = vsub.f32 %v613, %v1044
        %v1061 = vsub.f32 %v615, %v1045
        %v1062 = vsub.f32 %v617, %v1046
        %v1063 = vsub.f32 %v619, %v1047
        %v1064 = vsub.f32 %v621, %v1048
        %v1065 = vsub.f32 %v623, %v1049
        %v1066 = vsub.f32 %v625, %v1050
        %v1067 = vsub.f32 %v627, %v1051
        %v1068 = vsub.f32 %v629, %v1052
        %v1069 = vsub.f32 %v631, %v1053
        %v1070 = vsub.f32 %v633, %v1054
        %v1071 = vsub.f32 %v635, %v1055
        %v1072 = vsub.f32 %v637, %v1056
        %v1073 = vsub.f32 %v639, %v1057
        %v1074 = vsub.f32 %v641, %v1058
        %v1075 = vsub.f32 %v643, %v1059
        %v1076 = vmul.f32 %v1060, 1.442695
        %v1077 = vpow.pop %v1076
        %v1078 = vmul.f32 %v1061, 1.442695
        %v1079 = vpow.pop %v1078
        %v1080 = vmul.f32 %v1062, 1.442695
        %v1081 = vpow.pop %v1080
        %v1082 = vmul.f32 %v1063, 1.442695
        %v1083 = vpow.pop %v1082
        %v1084 = vmul.f32 %v1064, 1.442695
        %v1085 = vpow.pop %v1084
        %v1086 = vmul.f32 %v1065, 1.442695
        %v1087 = vpow.pop %v1086
        %v1088 = vmul.f32 %v1066, 1.442695
        %v1089 = vpow.pop %v1088
        %v1090 = vmul.f32 %v1067, 1.442695
        %v1091 = vpow.pop %v1090
        %v1092 = vmul.f32 %v1068, 1.442695
        %v1093 = vpow.pop %v1092
        %v1094 = vmul.f32 %v1069, 1.442695
        %v1095 = vpow.pop %v1094
        %v1096 = vmul.f32 %v1070, 1.442695
        %v1097 = vpow.pop %v1096
        %v1098 = vmul.f32 %v1071, 1.442695
        %v1099 = vpow.pop %v1098
        %v1100 = vmul.f32 %v1072, 1.442695
        %v1101 = vpow.pop %v1100
        %v1102 = vmul.f32 %v1073, 1.442695
        %v1103 = vpow.pop %v1102
        %v1104 = vmul.f32 %v1074, 1.442695
        %v1105 = vpow.pop %v1104
        %v1106 = vmul.f32 %v1075, 1.442695
        %v1107 = vpow.pop %v1106
        %v1108 = vsub.f32 %v805, %v1044
        %v1109 = vsub.f32 %v807, %v1045
        %v1110 = vsub.f32 %v809, %v1046
        %v1111 = vsub.f32 %v811, %v1047
        %v1112 = vsub.f32 %v813, %v1048
        %v1113 = vsub.f32 %v815, %v1049
        %v1114 = vsub.f32 %v817, %v1050
        %v1115 = vsub.f32 %v819, %v1051
        %v1116 = vsub.f32 %v821, %v1052
        %v1117 = vsub.f32 %v823, %v1053
        %v1118 = vsub.f32 %v825, %v1054
        %v1119 = vsub.f32 %v827, %v1055
        %v1120 = vsub.f32 %v829, %v1056
        %v1121 = vsub.f32 %v831, %v1057
        %v1122 = vsub.f32 %v833, %v1058
        %v1123 = vsub.f32 %v835, %v1059
        %v1124 = vmul.f32 %v1108, 1.442695
        %v1125 = vpow.pop %v1124
        %v1126 = vmul.f32 %v1109, 1.442695
        %v1127 = vpow.pop %v1126
        %v1128 = vmul.f32 %v1110, 1.442695
        %v1129 = vpow.pop %v1128
        %v1130 = vmul.f32 %v1111, 1.442695
        %v1131 = vpow.pop %v1130
        %v1132 = vmul.f32 %v1112, 1.442695
        %v1133 = vpow.pop %v1132
        %v1134 = vmul.f32 %v1113, 1.442695
        %v1135 = vpow.pop %v1134
        %v1136 = vmul.f32 %v1114, 1.442695
        %v1137 = vpow.pop %v1136
        %v1138 = vmul.f32 %v1115, 1.442695
        %v1139 = vpow.pop %v1138
        %v1140 = vmul.f32 %v1116, 1.442695
        %v1141 = vpow.pop %v1140
        %v1142 = vmul.f32 %v1117, 1.442695
        %v1143 = vpow.pop %v1142
        %v1144 = vmul.f32 %v1118, 1.442695
        %v1145 = vpow.pop %v1144
        %v1146 = vmul.f32 %v1119, 1.442695
        %v1147 = vpow.pop %v1146
        %v1148 = vmul.f32 %v1120, 1.442695
        %v1149 = vpow.pop %v1148
        %v1150 = vmul.f32 %v1121, 1.442695
        %v1151 = vpow.pop %v1150
        %v1152 = vmul.f32 %v1122, 1.442695
        %v1153 = vpow.pop %v1152
        %v1154 = vmul.f32 %v1123, 1.442695
        %v1155 = vpow.pop %v1154
        %v1156 = vsub.f32 %v997, %v1044
        %v1157 = vsub.f32 %v999, %v1045
        %v1158 = vsub.f32 %v1001, %v1046
        %v1159 = vsub.f32 %v1003, %v1047
        %v1160 = vsub.f32 %v1005, %v1048
        %v1161 = vsub.f32 %v1007, %v1049
        %v1162 = vsub.f32 %v1009, %v1050
        %v1163 = vsub.f32 %v1011, %v1051
        %v1164 = vsub.f32 %v1013, %v1052
        %v1165 = vsub.f32 %v1015, %v1053
        %v1166 = vsub.f32 %v1017, %v1054
        %v1167 = vsub.f32 %v1019, %v1055
        %v1168 = vsub.f32 %v1021, %v1056
        %v1169 = vsub.f32 %v1023, %v1057
        %v1170 = vsub.f32 %v1025, %v1058
        %v1171 = vsub.f32 %v1027, %v1059
        %v1172 = vmul.f32 %v1156, 1.442695
        %v1173 = vpow.pop %v1172
        %v1174 = vmul.f32 %v1157, 1.442695
        %v1175 = vpow.pop %v1174
        %v1176 = vmul.f32 %v1158, 1.442695
        %v1177 = vpow.pop %v1176
        %v1178 = vmul.f32 %v1159, 1.442695
        %v1179 = vpow.pop %v1178
        %v1180 = vmul.f32 %v1160, 1.442695
        %v1181 = vpow.pop %v1180
        %v1182 = vmul.f32 %v1161, 1.442695
        %v1183 = vpow.pop %v1182
        %v1184 = vmul.f32 %v1162, 1.442695
        %v1185 = vpow.pop %v1184
        %v1186 = vmul.f32 %v1163, 1.442695
        %v1187 = vpow.pop %v1186
        %v1188 = vmul.f32 %v1164, 1.442695
        %v1189 = vpow.pop %v1188
        %v1190 = vmul.f32 %v1165, 1.442695
        %v1191 = vpow.pop %v1190
        %v1192 = vmul.f32 %v1166, 1.442695
        %v1193 = vpow.pop %v1192
        %v1194 = vmul.f32 %v1167, 1.442695
        %v1195 = vpow.pop %v1194
        %v1196 = vmul.f32 %v1168, 1.442695
        %v1197 = vpow.pop %v1196
        %v1198 = vmul.f32 %v1169, 1.442695
        %v1199 = vpow.pop %v1198
        %v1200 = vmul.f32 %v1170, 1.442695
        %v1201 = vpow.pop %v1200
        %v1202 = vmul.f32 %v1171, 1.442695
        %v1203 = vpow.pop %v1202
        %v1204 = vadd.f32 %v1077, %v1125
        %v1205 = vadd.f32 %v1079, %v1127
        %v1206 = vadd.f32 %v1081, %v1129
        %v1207 = vadd.f32 %v1083, %v1131
        %v1208 = vadd.f32 %v1085, %v1133
        %v1209 = vadd.f32 %v1087, %v1135
        %v1210 = vadd.f32 %v1089, %v1137
        %v1211 = vadd.f32 %v1091, %v1139
        %v1212 = vadd.f32 %v1093, %v1141
        %v1213 = vadd.f32 %v1095, %v1143
        %v1214 = vadd.f32 %v1097, %v1145
        %v1215 = vadd.f32 %v1099, %v1147
        %v1216 = vadd.f32 %v1101, %v1149
        %v1217 = vadd.f32 %v1103, %v1151
        %v1218 = vadd.f32 %v1105, %v1153
        %v1219 = vadd.f32 %v1107, %v1155
        %v1220 = vadd.f32 %v1204, %v1173
        %v1221 = vadd.f32 %v1205, %v1175
        %v1222 = vadd.f32 %v1206, %v1177
        %v1223 = vadd.f32 %v1207, %v1179
        %v1224 = vadd.f32 %v1208, %v1181
        %v1225 = vadd.f32 %v1209, %v1183
        %v1226 = vadd.f32 %v1210, %v1185
        %v1227 = vadd.f32 %v1211, %v1187
        %v1228 = vadd.f32 %v1212, %v1189
        %v1229 = vadd.f32 %v1213, %v1191
        %v1230 = vadd.f32 %v1214, %v1193
        %v1231 = vadd.f32 %v1215, %v1195
        %v1232 = vadd.f32 %v1216, %v1197
        %v1233 = vadd.f32 %v1217, %v1199
        %v1234 = vadd.f32 %v1218, %v1201
        %v1235 = vadd.f32 %v1219, %v1203
        %v1236 = vrcp.pop %v1220
        %v1237 = vrcp.pop %v1221
        %v1238 = vrcp.pop %v1222
        %v1239 = vrcp.pop %v1223
        %v1240 = vrcp.pop %v1224
        %v1241 = vrcp.pop %v1225
        %v1242 = vrcp.pop %v1226
        %v1243 = vrcp.pop %v1227
        %v1244 = vrcp.pop %v1228
        %v1245 = vrcp.pop %v1229
        %v1246 = vrcp.pop %v1230
        %v1247 = vrcp.pop %v1231
        %v1248 = vrcp.pop %v1232
        %v1249 = vrcp.pop %v1233
        %v1250 = vrcp.pop %v1234
        %v1251 = vrcp.pop %v1235
        %v1252 = vmul.f32 %v1077, %v1236
        %v1253 = vmul.f32 %v1079, %v1237
        %v1254 = vmul.f32 %v1081, %v1238
        %v1255 = vmul.f32 %v1083, %v1239
        %v1256 = vmul.f32 %v1085, %v1240
        %v1257 = vmul.f32 %v1087, %v1241
        %v1258 = vmul.f32 %v1089, %v1242
        %v1259 = vmul.f32 %v1091, %v1243
        %v1260 = vmul.f32 %v1093, %v1244
        %v1261 = vmul.f32 %v1095, %v1245
        %v1262 = vmul.f32 %v1097, %v1246
        %v1263 = vmul.f32 %v1099, %v1247
        %v1264 = vmul.f32 %v1101, %v1248
        %v1265 = vmul.f32 %v1103, %v1249
        %v1266 = vmul.f32 %v1105, %v1250
        %v1267 = vmul.f32 %v1107, %v1251
        %v1268 = vmul.f32 %v1252, %v461
        %v1269 = vmul.f32 %v1253, %v462
        %v1270 = vmul.f32 %v1254, %v463
        %v1271 = vmul.f32 %v1255, %v464
        %v1272 = vmul.f32 %v1256, %v465
        %v1273 = vmul.f32 %v1257, %v466
        %v1274 = vmul.f32 %v1258, %v467
        %v1275 = vmul.f32 %v1259, %v468
        %v1276 = vmul.f32 %v1260, %v469
        %v1277 = vmul.f32 %v1261, %v470
        %v1278 = vmul.f32 %v1262, %v471
        %v1279 = vmul.f32 %v1263, %v472
        %v1280 = vmul.f32 %v1264, %v473
        %v1281 = vmul.f32 %v1265, %v474
        %v1282 = vmul.f32 %v1266, %v475
        %v1283 = vmul.f32 %v1267, %v476
        %v1284 = vmul.f32 %v1125, %v1236
        %v1285 = vmul.f32 %v1127, %v1237
        %v1286 = vmul.f32 %v1129, %v1238
        %v1287 = vmul.f32 %v1131, %v1239
        %v1288 = vmul.f32 %v1133, %v1240
        %v1289 = vmul.f32 %v1135, %v1241
        %v1290 = vmul.f32 %v1137, %v1242
        %v1291 = vmul.f32 %v1139, %v1243
        %v1292 = vmul.f32 %v1141, %v1244
        %v1293 = vmul.f32 %v1143, %v1245
        %v1294 = vmul.f32 %v1145, %v1246
        %v1295 = vmul.f32 %v1147, %v1247
        %v1296 = vmul.f32 %v1149, %v1248
        %v1297 = vmul.f32 %v1151, %v1249
        %v1298 = vmul.f32 %v1153, %v1250
        %v1299 = vmul.f32 %v1155, %v1251
        %v1300 = vmul.f32 %v1284, %v660
        %v1301 = vmul.f32 %v1285, %v661
        %v1302 = vmul.f32 %v1286, %v662
        %v1303 = vmul.f32 %v1287, %v663
        %v1304 = vmul.f32 %v1288, %v664
        %v1305 = vmul.f32 %v1289, %v665
        %v1306 = vmul.f32 %v1290, %v666
        %v1307 = vmul.f32 %v1291, %v667
        %v1308 = vmul.f32 %v1292, %v668
        %v1309 = vmul.f32 %v1293, %v669
        %v1310 = vmul.f32 %v1294, %v670
        %v1311 = vmul.f32 %v1295, %v671
        %v1312 = vmul.f32 %v1296, %v672
        %v1313 = vmul.f32 %v1297, %v673
        %v1314 = vmul.f32 %v1298, %v674
        %v1315 = vmul.f32 %v1299, %v675
        %v1316 = vadd.f32 %v1268, %v1300
        %v1317 = vadd.f32 %v1269, %v1301
        %v1318 = vadd.f32 %v1270, %v1302
        %v1319 = vadd.f32 %v1271, %v1303
        %v1320 = vadd.f32 %v1272, %v1304
        %v1321 = vadd.f32 %v1273, %v1305
        %v1322 = vadd.f32 %v1274, %v1306
        %v1323 = vadd.f32 %v1275, %v1307
        %v1324 = vadd.f32 %v1276, %v1308
        %v1325 = vadd.f32 %v1277, %v1309
        %v1326 = vadd.f32 %v1278, %v1310
        %v1327 = vadd.f32 %v1279, %v1311
        %v1328 = vadd.f32 %v1280, %v1312
        %v1329 = vadd.f32 %v1281, %v1313
        %v1330 = vadd.f32 %v1282, %v1314
        %v1331 = vadd.f32 %v1283, %v1315
        %v1332 = vmul.f32 %v1173, %v1236
        %v1333 = vmul.f32 %v1175, %v1237
        %v1334 = vmul.f32 %v1177, %v1238
        %v1335 = vmul.f32 %v1179, %v1239
        %v1336 = vmul.f32 %v1181, %v1240
        %v1337 = vmul.f32 %v1183, %v1241
        %v1338 = vmul.f32 %v1185, %v1242
        %v1339 = vmul.f32 %v1187, %v1243
        %v1340 = vmul.f32 %v1189, %v1244
        %v1341 = vmul.f32 %v1191, %v1245
        %v1342 = vmul.f32 %v1193, %v1246
        %v1343 = vmul.f32 %v1195, %v1247
        %v1344 = vmul.f32 %v1197, %v1248
        %v1345 = vmul.f32 %v1199, %v1249
        %v1346 = vmul.f32 %v1201, %v1250
        %v1347 = vmul.f32 %v1203, %v1251
        %v1348 = vmul.f32 %v1332, %v852
        %v1349 = vmul.f32 %v1333, %v853
        %v1350 = vmul.f32 %v1334, %v854
        %v1351 = vmul.f32 %v1335, %v855
        %v1352 = vmul.f32 %v1336, %v856
        %v1353 = vmul.f32 %v1337, %v857
        %v1354 = vmul.f32 %v1338, %v858
        %v1355 = vmul.f32 %v1339, %v859
        %v1356 = vmul.f32 %v1340, %v860
        %v1357 = vmul.f32 %v1341, %v861
        %v1358 = vmul.f32 %v1342, %v862
        %v1359 = vmul.f32 %v1343, %v863
        %v1360 = vmul.f32 %v1344, %v864
        %v1361 = vmul.f32 %v1345, %v865
        %v1362 = vmul.f32 %v1346, %v866
        %v1363 = vmul.f32 %v1347, %v867
        %v1364 = vadd.f32 %v1316, %v1348
        %v1365 = vadd.f32 %v1317, %v1349
        %v1366 = vadd.f32 %v1318, %v1350
        %v1367 = vadd.f32 %v1319, %v1351
        %v1368 = vadd.f32 %v1320, %v1352
        %v1369 = vadd.f32 %v1321, %v1353
        %v1370 = vadd.f32 %v1322, %v1354
        %v1371 = vadd.f32 %v1323, %v1355
        %v1372 = vadd.f32 %v1324, %v1356
        %v1373 = vadd.f32 %v1325, %v1357
        %v1374 = vadd.f32 %v1326, %v1358
        %v1375 = vadd.f32 %v1327, %v1359
        %v1376 = vadd.f32 %v1328, %v1360
        %v1377 = vadd.f32 %v1329, %v1361
        %v1378 = vadd.f32 %v1330, %v1362
        %v1379 = vadd.f32 %v1331, %v1363
        %v1380 = vpack.c.bf16 %v1365, %v1364
        %v1381 = vpack.c.bf16 %v1367, %v1366
        %v1382 = vpack.c.bf16 %v1369, %v1368
        %v1383 = vpack.c.bf16 %v1371, %v1370
        %v1384 = vpack.c.bf16 %v1373, %v1372
        %v1385 = vpack.c.bf16 %v1375, %v1374
        %v1386 = vpack.c.bf16 %v1377, %v1376
        %v1387 = vpack.c.bf16 %v1379, %v1378
        %v1388 = vld [vmem:[%s4] sm:$0xf]
        %v1389 = vld [vmem:[%s4 + $0x4] sm:$0xf]
        %v1390 = vld [vmem:[%s4 + $0x8] sm:$0xf]
        %v1391 = vld [vmem:[%s4 + $0xc] sm:$0xf]
        %v1392 = vld [vmem:[%s4 + $0x10] sm:$0xf]
        %v1393 = vld [vmem:[%s4 + $0x14] sm:$0xf]
        %v1394 = vld [vmem:[%s4 + $0x18] sm:$0xf]
        %v1395 = vld [vmem:[%s4 + $0x1c] sm:$0xf]
        %v1396 = vld [vmem:[%s5] sm:$0x1]
        %v1398 = vlaneseq
        %v1399 = vshrl.u32 %v1398, 7
        %v1400 = vsub.s32 0, %v1399
        %v1401 = vrot.slane %v1396, %v1400
        %v1411 = vunpack.c.l.b16 %v1388
        %v1412 = vunpack.c.l.b16 %v1389
        %v1413 = vunpack.c.l.b16 %v1390
        %v1414 = vunpack.c.l.b16 %v1391
        %v1415 = vunpack.c.l.b16 %v1392
        %v1416 = vunpack.c.l.b16 %v1393
        %v1417 = vunpack.c.l.b16 %v1394
        %v1418 = vunpack.c.l.b16 %v1395
        %v1419 = vpack.c.b16 %v1412, %v1411
        %v1420 = vpack.c.b16 %v1414, %v1413
        %v1421 = vpack.c.b16 %v1416, %v1415
        %v1422 = vpack.c.b16 %v1418, %v1417
        %v1428 = vsel %vm499, %v1380, 0
        %v1431 = vsel %vm499, %v1381, 0
        %v1434 = vsel %vm499, %v1382, 0
        %v1437 = vsel %vm499, %v1383, 0
        %v1440 = vsel %vm499, %v1384, 0
        %v1443 = vsel %vm499, %v1385, 0
        %v1446 = vsel %vm499, %v1386, 0
        %v1449 = vsel %vm499, %v1387, 0
        %1451 = vmatprep.subr.bf16.mxu0 0
        %1452 = vmatpush1.bf16.msra.mxu0 %v1419
        %1453 = vmatprep.subr.bf16.mxu0 0
        %1454 = vmatpush1.bf16.msra.mxu0 %v1420
        %1455 = vmatprep.subr.bf16.mxu0 0
        %1456 = vmatpush1.bf16.msra.mxu0 %v1421
        %1457 = vmatprep.subr.bf16.mxu0 0
        %1458 = vmatpush1.bf16.msra.mxu0 %v1422
        %1459 = vmatprep.subr.bf16.mxu0 0
        %1460 = vmatpush1.bf16.msra.mxu0 0
        %1461 = vmatprep.subr.bf16.mxu0 0
        %1462 = vmatpush1.bf16.msra.mxu0 0
        %1463 = vmatprep.subr.bf16.mxu0 0
        %1464 = vmatpush1.bf16.msra.mxu0 0
        %1465 = vmatprep.subr.bf16.mxu0 0
        %1466 = vmatpush1.bf16.msra.mxu0 0
        %1467 = vmatprep.subr.bf16.mxu0 0
        %1468 = vmatpush1.bf16.msra.mxu0 0
        %1469 = vmatprep.subr.bf16.mxu0 0
        %1470 = vmatpush1.bf16.msra.mxu0 0
        %1471 = vmatprep.subr.bf16.mxu0 0
        %1472 = vmatpush1.bf16.msra.mxu0 0
        %1473 = vmatprep.subr.bf16.mxu0 0
        %1474 = vmatpush1.bf16.msra.mxu0 0
        %1475 = vmatprep.subr.bf16.mxu0 0
        %1476 = vmatpush1.bf16.msra.mxu0 0
        %1477 = vmatprep.subr.bf16.mxu0 0
        %1478 = vmatpush1.bf16.msra.mxu0 0
        %1479 = vmatprep.subr.bf16.mxu0 0
        %1480 = vmatpush1.bf16.msra.mxu0 0
        %1481 = vmatprep.subr.bf16.mxu0 0
        %1482 = vmatpush1.bf16.msra.mxu0 0
        %1483 = vmatprep.mubr.bf16.mxu0 0
        %1484 = vmatmul.mubr.bf16.gmra.mrb[0].mxu0 %v1428
        %v1485 = vpop.f32.mrb[0].mxu0
        %v1486 = vadd.f32 %v1401, %v1485
        %v1487 = vpop.f32.mrb[0].mxu0
        %v1488 = vpop.f32.mrb[0].mxu0
        %v1489 = vadd.f32 %v1401, %v1488
        %v1490 = vpop.f32.mrb[0].mxu0
        %1491 = vmatprep.mubr.bf16.mxu0 0
        %1492 = vmatmul.mubr.bf16.gmra.mrb[0].mxu0 %v1431
        %v1493 = vpop.f32.mrb[0].mxu0
        %v1494 = vadd.f32 %v1401, %v1493
        %v1495 = vpop.f32.mrb[0].mxu0
        %v1496 = vpop.f32.mrb[0].mxu0
        %v1497 = vadd.f32 %v1401, %v1496
        %v1498 = vpop.f32.mrb[0].mxu0
        %1499 = vmatprep.mubr.bf16.mxu0 0
        %1500 = vmatmul.mubr.bf16.gmra.mrb[0].mxu0 %v1434
        %v1501 = vpop.f32.mrb[0].mxu0
        %v1502 = vadd.f32 %v1401, %v1501
        %v1503 = vpop.f32.mrb[0].mxu0
        %v1504 = vpop.f32.mrb[0].mxu0
        %v1505 = vadd.f32 %v1401, %v1504
        %v1506 = vpop.f32.mrb[0].mxu0
        %1507 = vmatprep.mubr.bf16.mxu0 0
        %1508 = vmatmul.mubr.bf16.gmra.mrb[0].mxu0 %v1437
        %v1509 = vpop.f32.mrb[0].mxu0
        %v1510 = vadd.f32 %v1401, %v1509
        %v1511 = vpop.f32.mrb[0].mxu0
        %v1512 = vpop.f32.mrb[0].mxu0
        %v1513 = vadd.f32 %v1401, %v1512
        %v1514 = vpop.f32.mrb[0].mxu0
        %1515 = vmatprep.mubr.bf16.mxu0 0
        %1516 = vmatmul.mubr.bf16.gmra.mrb[0].mxu0 %v1440
        %v1517 = vpop.f32.mrb[0].mxu0
        %v1518 = vadd.f32 %v1401, %v1517
        %v1519 = vpop.f32.mrb[0].mxu0
        %v1520 = vpop.f32.mrb[0].mxu0
        %v1521 = vadd.f32 %v1401, %v1520
        %v1522 = vpop.f32.mrb[0].mxu0
        %1523 = vmatprep.mubr.bf16.mxu0 0
        %1524 = vmatmul.mubr.bf16.gmra.mrb[0].mxu0 %v1443
        %v1525 = vpop.f32.mrb[0].mxu0
        %v1526 = vadd.f32 %v1401, %v1525
        %v1527 = vpop.f32.mrb[0].mxu0
        %v1528 = vpop.f32.mrb[0].mxu0
        %v1529 = vadd.f32 %v1401, %v1528
        %v1530 = vpop.f32.mrb[0].mxu0
        %1531 = vmatprep.mubr.bf16.mxu0 0
        %1532 = vmatmul.mubr.bf16.gmra.mrb[0].mxu0 %v1446
        %v1533 = vpop.f32.mrb[0].mxu0
        %v1534 = vadd.f32 %v1401, %v1533
        %v1535 = vpop.f32.mrb[0].mxu0
        %v1536 = vpop.f32.mrb[0].mxu0
        %v1537 = vadd.f32 %v1401, %v1536
        %v1538 = vpop.f32.mrb[0].mxu0
        %1539 = vmatprep.mubr.bf16.mxu0 0
        %1540 = vmatmul.mubr.bf16.gmra.mrb[0].mxu0 %v1449
        %v1541 = vpop.f32.mrb[0].mxu0
        %v1542 = vadd.f32 %v1401, %v1541
        %v1543 = vpop.f32.mrb[0].mxu0
        %v1544 = vpop.f32.mrb[0].mxu0
        %v1545 = vadd.f32 %v1401, %v1544
        %v1546 = vpop.f32.mrb[0].mxu0
        %1547 = vdwg.mxu0
        %s1548 = sld [smem:[#allocation2]]
        %vm1549 = vcmp.ge.f32.partialorder %v1486, 0.0
        %vm1550 = vcmp.ge.f32.partialorder %v1489, 0.0
        %vm1551 = vcmp.ge.f32.partialorder %v1494, 0.0
        %vm1552 = vcmp.ge.f32.partialorder %v1497, 0.0
        %vm1553 = vcmp.ge.f32.partialorder %v1502, 0.0
        %vm1554 = vcmp.ge.f32.partialorder %v1505, 0.0
        %vm1555 = vcmp.ge.f32.partialorder %v1510, 0.0
        %vm1556 = vcmp.ge.f32.partialorder %v1513, 0.0
        %vm1557 = vcmp.ge.f32.partialorder %v1518, 0.0
        %vm1558 = vcmp.ge.f32.partialorder %v1521, 0.0
        %vm1559 = vcmp.ge.f32.partialorder %v1526, 0.0
        %vm1560 = vcmp.ge.f32.partialorder %v1529, 0.0
        %vm1561 = vcmp.ge.f32.partialorder %v1534, 0.0
        %vm1562 = vcmp.ge.f32.partialorder %v1537, 0.0
        %vm1563 = vcmp.ge.f32.partialorder %v1542, 0.0
        %vm1564 = vcmp.ge.f32.partialorder %v1545, 0.0
        %v1565 = vstv %s1548
        %v1566 = vmul.f32 %v1565, %v1486
        %v1567 = vmul.f32 %v1565, %v1489
        %v1568 = vmul.f32 %v1565, %v1494
        %v1569 = vmul.f32 %v1565, %v1497
        %v1570 = vmul.f32 %v1565, %v1502
        %v1571 = vmul.f32 %v1565, %v1505
        %v1572 = vmul.f32 %v1565, %v1510
        %v1573 = vmul.f32 %v1565, %v1513
        %v1574 = vmul.f32 %v1565, %v1518
        %v1575 = vmul.f32 %v1565, %v1521
        %v1576 = vmul.f32 %v1565, %v1526
        %v1577 = vmul.f32 %v1565, %v1529
        %v1578 = vmul.f32 %v1565, %v1534
        %v1579 = vmul.f32 %v1565, %v1537
        %v1580 = vmul.f32 %v1565, %v1542
        %v1581 = vmul.f32 %v1565, %v1545
        %v1582 = vsel %vm1549, %v1486, %v1566
        %v1583 = vsel %vm1550, %v1489, %v1567
        %v1584 = vsel %vm1551, %v1494, %v1568
        %v1585 = vsel %vm1552, %v1497, %v1569
        %v1586 = vsel %vm1553, %v1502, %v1570
        %v1587 = vsel %vm1554, %v1505, %v1571
        %v1588 = vsel %vm1555, %v1510, %v1572
        %v1589 = vsel %vm1556, %v1513, %v1573
        %v1590 = vsel %vm1557, %v1518, %v1574
        %v1591 = vsel %vm1558, %v1521, %v1575
        %v1592 = vsel %vm1559, %v1526, %v1576
        %v1593 = vsel %vm1560, %v1529, %v1577
        %v1594 = vsel %vm1561, %v1534, %v1578
        %v1595 = vsel %vm1562, %v1537, %v1579
        %v1596 = vsel %vm1563, %v1542, %v1580
        %v1597 = vsel %vm1564, %v1545, %v1581
        %v1598 = vpack.c.bf16 %v1583, %v1582
        %v1599 = vpack.c.bf16 %v1585, %v1584
        %v1600 = vpack.c.bf16 %v1587, %v1586
        %v1601 = vpack.c.bf16 %v1589, %v1588
        %v1602 = vpack.c.bf16 %v1591, %v1590
        %v1603 = vpack.c.bf16 %v1593, %v1592
        %v1604 = vpack.c.bf16 %v1595, %v1594
        %v1605 = vpack.c.bf16 %v1597, %v1596
        %v1606 = vld [vmem:[%s6] sm:$0xf]
        %v1607 = vld [vmem:[%s6 + $0x4] sm:$0xf]
        %v1608 = vld [vmem:[%s6 + $0x8] sm:$0xf]
        %v1609 = vld [vmem:[%s6 + $0xc] sm:$0xf]
        %v1610 = vld [vmem:[%s6 + $0x10] sm:$0xf]
        %v1611 = vld [vmem:[%s6 + $0x14] sm:$0xf]
        %v1612 = vld [vmem:[%s6 + $0x18] sm:$0xf]
        %v1613 = vld [vmem:[%s6 + $0x1c] sm:$0xf]
        %v1614 = vld [vmem:[%s6 + $0x20] sm:$0xf]
        %v1615 = vld [vmem:[%s6 + $0x24] sm:$0xf]
        %v1616 = vld [vmem:[%s6 + $0x28] sm:$0xf]
        %v1617 = vld [vmem:[%s6 + $0x2c] sm:$0xf]
        %v1618 = vld [vmem:[%s6 + $0x30] sm:$0xf]
        %v1619 = vld [vmem:[%s6 + $0x34] sm:$0xf]
        %v1620 = vld [vmem:[%s6 + $0x38] sm:$0xf]
        %v1621 = vld [vmem:[%s6 + $0x3c] sm:$0xf]
        %v1622 = vld [vmem:[%s7] sm:$0x1]
        %v1624 = vlaneseq
        %v1625 = vshrl.u32 %v1624, 7
        %v1626 = vsub.s32 0, %v1625
        %v1627 = vrot.slane %v1622, %v1626
        %v1645 = vunpack.c.l.b16 %v1606
        %v1646 = vunpack.c.l.b16 %v1607
        %v1647 = vunpack.c.l.b16 %v1608
        %v1648 = vunpack.c.l.b16 %v1609
        %v1649 = vunpack.c.l.b16 %v1610
        %v1650 = vunpack.c.l.b16 %v1611
        %v1651 = vunpack.c.l.b16 %v1612
        %v1652 = vunpack.c.l.b16 %v1613
        %v1653 = vunpack.c.l.b16 %v1614
        %v1654 = vunpack.c.l.b16 %v1615
        %v1655 = vunpack.c.l.b16 %v1616
        %v1656 = vunpack.c.l.b16 %v1617
        %v1657 = vunpack.c.l.b16 %v1618
        %v1658 = vunpack.c.l.b16 %v1619
        %v1659 = vunpack.c.l.b16 %v1620
        %v1660 = vunpack.c.l.b16 %v1621
        %v1661 = vpack.c.b16 %v1646, %v1645
        %v1662 = vpack.c.b16 %v1648, %v1647
        %v1663 = vpack.c.b16 %v1650, %v1649
        %v1664 = vpack.c.b16 %v1652, %v1651
        %v1665 = vpack.c.b16 %v1654, %v1653
        %v1666 = vpack.c.b16 %v1656, %v1655
        %v1667 = vpack.c.b16 %v1658, %v1657
        %v1668 = vpack.c.b16 %v1660, %v1659
        %1677 = vmatprep.subr.bf16.mxu0 0
        %1678 = vmatpush1.bf16.msra.mxu0 %v1661
        %1679 = vmatprep.subr.bf16.mxu0 0
        %1680 = vmatpush1.bf16.msra.mxu0 %v1662
        %1681 = vmatprep.subr.bf16.mxu0 0
        %1682 = vmatpush1.bf16.msra.mxu0 %v1663
        %1683 = vmatprep.subr.bf16.mxu0 0
        %1684 = vmatpush1.bf16.msra.mxu0 %v1664
        %1685 = vmatprep.subr.bf16.mxu0 0
        %1686 = vmatpush1.bf16.msra.mxu0 %v1665
        %1687 = vmatprep.subr.bf16.mxu0 0
        %1688 = vmatpush1.bf16.msra.mxu0 %v1666
        %1689 = vmatprep.subr.bf16.mxu0 0
        %1690 = vmatpush1.bf16.msra.mxu0 %v1667
        %1691 = vmatprep.subr.bf16.mxu0 0
        %1692 = vmatpush1.bf16.msra.mxu0 %v1668
        %1693 = vmatprep.subr.bf16.mxu0 0
        %1694 = vmatpush1.bf16.msra.mxu0 0
        %1695 = vmatprep.subr.bf16.mxu0 0
        %1696 = vmatpush1.bf16.msra.mxu0 0
        %1697 = vmatprep.subr.bf16.mxu0 0
        %1698 = vmatpush1.bf16.msra.mxu0 0
        %1699 = vmatprep.subr.bf16.mxu0 0
        %1700 = vmatpush1.bf16.msra.mxu0 0
        %1701 = vmatprep.subr.bf16.mxu0 0
        %1702 = vmatpush1.bf16.msra.mxu0 0
        %1703 = vmatprep.subr.bf16.mxu0 0
        %1704 = vmatpush1.bf16.msra.mxu0 0
        %1705 = vmatprep.subr.bf16.mxu0 0
        %1706 = vmatpush1.bf16.msra.mxu0 0
        %1707 = vmatprep.subr.bf16.mxu0 0
        %1708 = vmatpush1.bf16.msra.mxu0 0
        %1709 = vmatprep.mubr.bf16.mxu0 0
        %1710 = vmatmul.mubr.bf16.gmra.mrb[0].mxu0 %v1598
        %v1711 = vpop.f32.mrb[0].mxu0
        %v1712 = vadd.f32 %v1627, %v1711
        %v1713 = vpop.f32.mrb[0].mxu0
        %v1714 = vpop.f32.mrb[0].mxu0
        %v1715 = vadd.f32 %v1627, %v1714
        %v1716 = vpop.f32.mrb[0].mxu0
        %1717 = vmatprep.mubr.bf16.mxu0 0
        %1718 = vmatmul.mubr.bf16.gmra.mrb[0].mxu0 %v1599
        %v1719 = vpop.f32.mrb[0].mxu0
        %v1720 = vadd.f32 %v1627, %v1719
        %v1721 = vpop.f32.mrb[0].mxu0
        %v1722 = vpop.f32.mrb[0].mxu0
        %v1723 = vadd.f32 %v1627, %v1722
        %v1724 = vpop.f32.mrb[0].mxu0
        %1725 = vmatprep.mubr.bf16.mxu0 0
        %1726 = vmatmul.mubr.bf16.gmra.mrb[0].mxu0 %v1600
        %v1727 = vpop.f32.mrb[0].mxu0
        %v1728 = vadd.f32 %v1627, %v1727
        %v1729 = vpop.f32.mrb[0].mxu0
        %v1730 = vpop.f32.mrb[0].mxu0
        %v1731 = vadd.f32 %v1627, %v1730
        %v1732 = vpop.f32.mrb[0].mxu0
        %1733 = vmatprep.mubr.bf16.mxu0 0
        %1734 = vmatmul.mubr.bf16.gmra.mrb[0].mxu0 %v1601
        %v1735 = vpop.f32.mrb[0].mxu0
        %v1736 = vadd.f32 %v1627, %v1735
        %v1737 = vpop.f32.mrb[0].mxu0
        %v1738 = vpop.f32.mrb[0].mxu0
        %v1739 = vadd.f32 %v1627, %v1738
        %v1740 = vpop.f32.mrb[0].mxu0
        %1741 = vmatprep.mubr.bf16.mxu0 0
        %1742 = vmatmul.mubr.bf16.gmra.mrb[0].mxu0 %v1602
        %v1743 = vpop.f32.mrb[0].mxu0
        %v1744 = vadd.f32 %v1627, %v1743
        %v1745 = vpop.f32.mrb[0].mxu0
        %v1746 = vpop.f32.mrb[0].mxu0
        %v1747 = vadd.f32 %v1627, %v1746
        %v1748 = vpop.f32.mrb[0].mxu0
        %1749 = vmatprep.mubr.bf16.mxu0 0
        %1750 = vmatmul.mubr.bf16.gmra.mrb[0].mxu0 %v1603
        %v1751 = vpop.f32.mrb[0].mxu0
        %v1752 = vadd.f32 %v1627, %v1751
        %v1753 = vpop.f32.mrb[0].mxu0
        %v1754 = vpop.f32.mrb[0].mxu0
        %v1755 = vadd.f32 %v1627, %v1754
        %v1756 = vpop.f32.mrb[0].mxu0
        %1757 = vmatprep.mubr.bf16.mxu0 0
        %1758 = vmatmul.mubr.bf16.gmra.mrb[0].mxu0 %v1604
        %v1759 = vpop.f32.mrb[0].mxu0
        %v1760 = vadd.f32 %v1627, %v1759
        %v1761 = vpop.f32.mrb[0].mxu0
        %v1762 = vpop.f32.mrb[0].mxu0
        %v1763 = vadd.f32 %v1627, %v1762
        %v1764 = vpop.f32.mrb[0].mxu0
        %1765 = vmatprep.mubr.bf16.mxu0 0
        %1766 = vmatmul.mubr.bf16.gmra.mrb[0].mxu0 %v1605
        %v1767 = vpop.f32.mrb[0].mxu0
        %v1768 = vadd.f32 %v1627, %v1767
        %v1769 = vpop.f32.mrb[0].mxu0
        %v1770 = vpop.f32.mrb[0].mxu0
        %v1771 = vadd.f32 %v1627, %v1770
        %v1772 = vpop.f32.mrb[0].mxu0
        %1773 = vdwg.mxu0
        %1774 = vst [vmem:[%s395] sm:$0xff] %v1712
        %1775 = vst [vmem:[%s395 + $0x8] sm:$0xff] %v1715
        %1776 = vst [vmem:[%s395 + $0x10] sm:$0xff] %v1720
        %1777 = vst [vmem:[%s395 + $0x18] sm:$0xff] %v1723
        %1778 = vst [vmem:[%s395 + $0x20] sm:$0xff] %v1728
        %1779 = vst [vmem:[%s395 + $0x28] sm:$0xff] %v1731
        %1780 = vst [vmem:[%s395 + $0x30] sm:$0xff] %v1736
        %1781 = vst [vmem:[%s395 + $0x38] sm:$0xff] %v1739
        %1782 = vst [vmem:[%s395 + $0x40] sm:$0xff] %v1744
        %1783 = vst [vmem:[%s395 + $0x48] sm:$0xff] %v1747
        %1784 = vst [vmem:[%s395 + $0x50] sm:$0xff] %v1752
        %1785 = vst [vmem:[%s395 + $0x58] sm:$0xff] %v1755
        %1786 = vst [vmem:[%s395 + $0x60] sm:$0xff] %v1760
        %1787 = vst [vmem:[%s395 + $0x68] sm:$0xff] %v1763
        %1788 = vst [vmem:[%s395 + $0x70] sm:$0xff] %v1768
        %1789 = vst [vmem:[%s395 + $0x78] sm:$0xff] %v1771
        %s1790 = sand.u32 %s236, 1
        %s1791 = scalar_lea.sflag [#allocation4], %s1790
        %s1792 = sand.u32 %s236, 1
        %s1793 = smul.addr %s1792, 128
        %s1794 = scalar_lea.vmem [#allocation3], %s1793
        // Predicated region
        $region57: #{tpu_custom_call.1} parent=55 // pred_check
          %p1795 = pneg %p246
        $region58: #{tpu_custom_call.1} parent=55 // pred_check_branch
          %1797 = sbr.rel (%p1795) target = $region60
        $region59: #{tpu_custom_call.1} parent=55 // pred_region
          %s1798 = smul.u32 16, %s24
          %s1799 = ssub.s32 25, %s1798
          %p1800 = scmp.lt.s32.totalorder %s1799, 16
          %s1801 = scalar_select %p1800, %s1799, 16
          %s1802 = smul.u32 128, %s1801
          %s1804 = ssub.s32 2048, %s1802
          %1805 = vsyncadd %s1791, %s1804
          %p1806 = scmp.ne.s32.totalorder 0, %s1802
          %s1807 = smul.addr %s1798, 128
          %s1808 = scalar_lea.hbm %s9, %s1807
          %s1809 = smul.u32 8, %s1801
          %s1810 = sshll.u32 %s1794, 4
          %s1811 = int_to_ptr.vmem [resolvable:$true] %s1810
          %s1812 = sshll.u32 %s1809, 4
          %1816 = dma.vmem_to_hbm [thread:$0]  (%p1806), %s1811, %s1812, %s1808, %s1791, 128, 128, 8
        $region60: #{tpu_custom_call.1} parent=55 // pred_fallthru
          _
      $region56: #{tpu_custom_call.1} parent=5 // pred_fallthru
        _
      %p1817 = scmp.le.s32.totalorder 2, %s19
      // Predicated region
      $region61: #{tpu_custom_call.1} parent=5 // pred_check
        %p1818 = pneg %p1817
      $region62: #{tpu_custom_call.1} parent=5 // pred_check_branch
        %1820 = sbr.rel (%p1818) target = $region64
      $region63: #{tpu_custom_call.1} parent=5 // pred_region
        %s1821 = ssub.s32 %s19, 2
        // Predicated region
        $region65: #{tpu_custom_call.1} parent=63 // pred_check
          %p1822 = pneg %p252
        $region66: #{tpu_custom_call.1} parent=63 // pred_check_branch
          %1824 = sbr.rel (%p1822) target = $region68
        $region67: #{tpu_custom_call.1} parent=63 // pred_region
          %s1825 = sand.u32 %s237, 1
          %s1826 = scalar_lea.sflag [#allocation4], %s1825
          %s1827 = sand.u32 %s237, 1
          %s1828 = smul.addr %s1827, 128
          %s1829 = scalar_lea.vmem [#allocation3], %s1828
          %1830 = dma.done %s1826, 2048
        $region68: #{tpu_custom_call.1} parent=63 // pred_fallthru
          _
      $region64: #{tpu_custom_call.1} parent=5 // pred_fallthru
        _
    $region6: #{tpu_custom_call.1} parent=1 // loop_footer
      %s23 = sadd.s32 1, %s19
    $region7: #{tpu_custom_call.1} parent=1 // loop_footer_branch
      %18 = sbr.rel target = $region3
    $region8: #{tpu_custom_call.1} parent=1 // loop_exit
      _
    %1831 = vsyncpa [#allocation4], 1
    %s1832 = scalar_lea.sflag [#allocation4], 1
    %1833 = vsyncpa %s1832, 1

// kernel: tpu_custom_call.1
$region0: #{tpu_custom_call.1}
  #allocation0 [shape = 'u32[]', space=smem, size = 0x4, offset = 0x4, fixed_abs, tag = 'smem constant byte address 0x4 - core index']
  #allocation1 [shape = 'u32[144,128]{1,0:T(1,128)}', space=vmem, size = 0x12000, scoped, tag = 'internal scratch']
  #allocation2 [shape = 'f32[1,1]{1,0:T(1,128)S(6)}', space=smem, size = 0x200, scoped, tag = 'scoped memory for tpu_custom_call.1']
  %s0 = inlined_call_operand.vmem [shape: bf16[200,64], index: 0, kind: input, shape index: {}]
  %s1 = inlined_call_operand.vmem [shape: bf16[200,64], index: 1, kind: input, shape index: {}]
  %s2 = inlined_call_operand.vmem [shape: bf16[200,64], index: 2, kind: input, shape index: {}]
  %s3 = inlined_call_operand.vmem [shape: f32[1,64], index: 3, kind: input, shape index: {}]
  %s4 = inlined_call_operand.vmem [shape: bf16[64,128], index: 4, kind: input, shape index: {}]
  %s5 = inlined_call_operand.vmem [shape: f32[1,128], index: 5, kind: input, shape index: {}]
  %s6 = inlined_call_operand.vmem [shape: bf16[128,128], index: 6, kind: input, shape index: {}]
  %s7 = inlined_call_operand.vmem [shape: f32[1,128], index: 7, kind: input, shape index: {}]
  %s8 = inlined_call_operand.<no memory space> [shape: f32[1,1], index: 8, kind: input, shape index: {}]
  %s9 = inlined_call_operand.hbm [shape: f32[200,128], index: 9, kind: output, shape index: {}]
  %s10 = sld [smem:[#allocation0]]
  $region69: #{tpu_custom_call.1} parent=0
    _
  %s12 = ssub.s32 1, %s10
  %s13 = scalar_select 0, %s12, %s10
  %14 = sst [smem:[#allocation2]] %s8
  $region1: #{tpu_custom_call.1} parent=0
    #allocation3 [shape = 'u8[131072]{0}', space=vmem, size = 0x20000, scoped, tag = 'output window, operand 0']
    #allocation4 [shape = 's32[2]{0}', space=sflag, size = 0x8, scoped, tag = 'scoped memory for tpu_custom_call.1']
    %15 = vsyncpa [#allocation4], 0
    %s16 = scalar_lea.sflag [#allocation4], 1
    %17 = vsyncpa %s16, 0
    loop: start=0, step=1, limit=4
    $region2: #{tpu_custom_call.1} parent=1 // loop_pre_header
      _
    $region3: #{tpu_custom_call.1} parent=1 // loop_header
      %s19 = sphi 0, %s23
      %p20 = scmp.ge.s32.totalorder %s19, 4
      %s29 = sphi 0, %s31
      %s32 = sphi 0, %s29
      %s33 = sphi 0, %s32
      %s49 = sphi 0, %s33
      %s55 = sphi 0, %s57
      %s58 = sphi 0, %s55
      %s59 = sphi 0, %s58
      %s75 = sphi 0, %s59
      %s81 = sphi 0, %s83
      %s84 = sphi 0, %s81
      %s85 = sphi 0, %s84
      %s101 = sphi 0, %s85
      %s105 = sphi 0, %s105
      %s107 = sphi 0, %s105
      %s108 = sphi 0, %s107
      %s122 = sphi 0, %s108
      %s126 = sphi 0, %s126
      %s128 = sphi 0, %s126
      %s129 = sphi 0, %s128
      %s143 = sphi 0, %s129
      %s147 = sphi 0, %s147
      %s149 = sphi 0, %s147
      %s150 = sphi 0, %s149
      %s164 = sphi 0, %s150
      %s168 = sphi 0, %s168
      %s170 = sphi 0, %s168
      %s171 = sphi 0, %s170
      %s185 = sphi 0, %s171
      %s189 = sphi 0, %s189
      %s191 = sphi 0, %s189
      %s192 = sphi 0, %s191
      %s206 = sphi 0, %s192
      %s210 = sphi 0, %s210
      %s212 = sphi 0, %s210
      %s213 = sphi 0, %s212
      %s227 = sphi 0, %s213
      %s233 = sphi 0, %s235
      %s236 = sphi 0, %s233
      %s237 = sphi 0, %s236
      %s253 = sphi 0, %s237
    $region4: #{tpu_custom_call.1} parent=1 // loop_header_branch
      %22 = sbr.rel (%p20) target = $region8
    $region5: #{tpu_custom_call.1} parent=1 // loop_body
      %s24 = ssub.s32 %s19, 1
      %s25 = ssub.s32 %s19, 2
      %s26 = sadd.s32 %s19, 1
      %s27 = ssub.s32 %s19, %s26
      %p28 = scmp.eq.s32.totalorder %s27, 0
      %s30 = sadd.s32 %s29, 1
      %s31 = scalar_select %p28, %s29, %s30
      %p34 = pneg %p28
      %p35 = scmp.eq.s32.totalorder %s19, 1
      %p36 = por %p34, %p35
      %p37 = scmp.ne.s32.totalorder %s29, %s32
      %p38 = scmp.eq.s32.totalorder %s19, 0
      %p39 = por %p37, %p38
      %p40 = scmp.ne.s32.totalorder %s29, %s32
      %p41 = scmp.eq.s32.totalorder %s24, 1
      %p42 = por %p40, %p41
      %p43 = scmp.ne.s32.totalorder %s32, %s33
      %p44 = scmp.eq.s32.totalorder %s24, 0
      %p45 = por %p43, %p44
      %p46 = scmp.ne.s32.totalorder %s32, %s33
      %p47 = scmp.eq.s32.totalorder %s25, 1
      %p48 = por %p46, %p47
      %p50 = scmp.ne.s32.totalorder %s33, %s49
      %p51 = scmp.eq.s32.totalorder %s25, 0
      %p52 = por %p50, %p51
      %s53 = ssub.s32 %s19, %s26
      %p54 = scmp.eq.s32.totalorder %s53, 0
      %s56 = sadd.s32 %s55, 1
      %s57 = scalar_select %p54, %s55, %s56
      %p60 = pneg %p54
      %p61 = scmp.eq.s32.totalorder %s19, 1
      %p62 = por %p60, %p61
      %p63 = scmp.ne.s32.totalorder %s55, %s58
      %p64 = scmp.eq.s32.totalorder %s19, 0
      %p65 = por %p63, %p64
      %p66 = scmp.ne.s32.totalorder %s55, %s58
      %p67 = scmp.eq.s32.totalorder %s24, 1
      %p68 = por %p66, %p67
      %p69 = scmp.ne.s32.totalorder %s58, %s59
      %p70 = scmp.eq.s32.totalorder %s24, 0
      %p71 = por %p69, %p70
      %p72 = scmp.ne.s32.totalorder %s58, %s59
      %p73 = scmp.eq.s32.totalorder %s25, 1
      %p74 = por %p72, %p73
      %p76 = scmp.ne.s32.totalorder %s59, %s75
      %p77 = scmp.eq.s32.totalorder %s25, 0
      %p78 = por %p76, %p77
      %s79 = ssub.s32 %s19, %s26
      %p80 = scmp.eq.s32.totalorder %s79, 0
      %s82 = sadd.s32 %s81, 1
      %s83 = scalar_select %p80, %s81, %s82
      %p86 = pneg %p80
      %p87 = scmp.eq.s32.totalorder %s19, 1
      %p88 = por %p86, %p87
      %p89 = scmp.ne.s32.totalorder %s81, %s84
      %p90 = scmp.eq.s32.totalorder %s19, 0
      %p91 = por %p89, %p90
      %p92 = scmp.ne.s32.totalorder %s81, %s84
      %p93 = scmp.eq.s32.totalorder %s24, 1
      %p94 = por %p92, %p93
      %p95 = scmp.ne.s32.totalorder %s84, %s85
      %p96 = scmp.eq.s32.totalorder %s24, 0
      %p97 = por %p95, %p96
      %p98 = scmp.ne.s32.totalorder %s84, %s85
      %p99 = scmp.eq.s32.totalorder %s25, 1
      %p100 = por %p98, %p99
      %p102 = scmp.ne.s32.totalorder %s85, %s101
      %p103 = scmp.eq.s32.totalorder %s25, 0
      %p104 = por %p102, %p103
      %s106 = sadd.s32 %s105, 1
      %p109 = scmp.eq.s32.totalorder %s19, 1
      %p110 = scmp.ne.s32.totalorder %s105, %s107
      %p111 = scmp.eq.s32.totalorder %s19, 0
      %p112 = por %p110, %p111
      %p113 = scmp.ne.s32.totalorder %s105, %s107
      %p114 = scmp.eq.s32.totalorder %s24, 1
      %p115 = por %p113, %p114
      %p116 = scmp.ne.s32.totalorder %s107, %s108
      %p117 = scmp.eq.s32.totalorder %s24, 0
      %p118 = por %p116, %p117
      %p119 = scmp.ne.s32.totalorder %s107, %s108
      %p120 = scmp.eq.s32.totalorder %s25, 1
      %p121 = por %p119, %p120
      %p123 = scmp.ne.s32.totalorder %s108, %s122
      %p124 = scmp.eq.s32.totalorder %s25, 0
      %p125 = por %p123, %p124
      %s127 = sadd.s32 %s126, 1
      %p130 = scmp.eq.s32.totalorder %s19, 1
      %p131 = scmp.ne.s32.totalorder %s126, %s128
      %p132 = scmp.eq.s32.totalorder %s19, 0
      %p133 = por %p131, %p132
      %p134 = scmp.ne.s32.totalorder %s126, %s128
      %p135 = scmp.eq.s32.totalorder %s24, 1
      %p136 = por %p134, %p135
      %p137 = scmp.ne.s32.totalorder %s128, %s129
      %p138 = scmp.eq.s32.totalorder %s24, 0
      %p139 = por %p137, %p138
      %p140 = scmp.ne.s32.totalorder %s128, %s129
      %p141 = scmp.eq.s32.totalorder %s25, 1
      %p142 = por %p140, %p141
      %p144 = scmp.ne.s32.totalorder %s129, %s143
      %p145 = scmp.eq.s32.totalorder %s25, 0
      %p146 = por %p144, %p145
      %s148 = sadd.s32 %s147, 1
      %p151 = scmp.eq.s32.totalorder %s19, 1
      %p152 = scmp.ne.s32.totalorder %s147, %s149
      %p153 = scmp.eq.s32.totalorder %s19, 0
      %p154 = por %p152, %p153
      %p155 = scmp.ne.s32.totalorder %s147, %s149
      %p156 = scmp.eq.s32.totalorder %s24, 1
      %p157 = por %p155, %p156
      %p158 = scmp.ne.s32.totalorder %s149, %s150
      %p159 = scmp.eq.s32.totalorder %s24, 0
      %p160 = por %p158, %p159
      %p161 = scmp.ne.s32.totalorder %s149, %s150
      %p162 = scmp.eq.s32.totalorder %s25, 1
      %p163 = por %p161, %p162
      %p165 = scmp.ne.s32.totalorder %s150, %s164
      %p166 = scmp.eq.s32.totalorder %s25, 0
      %p167 = por %p165, %p166
      %s169 = sadd.s32 %s168, 1
      %p172 = scmp.eq.s32.totalorder %s19, 1
      %p173 = scmp.ne.s32.totalorder %s168, %s170
      %p174 = scmp.eq.s32.totalorder %s19, 0
      %p175 = por %p173, %p174
      %p176 = scmp.ne.s32.totalorder %s168, %s170
      %p177 = scmp.eq.s32.totalorder %s24, 1
      %p178 = por %p176, %p177
      %p179 = scmp.ne.s32.totalorder %s170, %s171
      %p180 = scmp.eq.s32.totalorder %s24, 0
      %p181 = por %p179, %p180
      %p182 = scmp.ne.s32.totalorder %s170, %s171
      %p183 = scmp.eq.s32.totalorder %s25, 1
      %p184 = por %p182, %p183
      %p186 = scmp.ne.s32.totalorder %s171, %s185
      %p187 = scmp.eq.s32.totalorder %s25, 0
      %p188 = por %p186, %p187
      %s190 = sadd.s32 %s189, 1
      %p193 = scmp.eq.s32.totalorder %s19, 1
      %p194 = scmp.ne.s32.totalorder %s189, %s191
      %p195 = scmp.eq.s32.totalorder %s19, 0
      %p196 = por %p194, %p195
      %p197 = scmp.ne.s32.totalorder %s189, %s191
      %p198 = scmp.eq.s32.totalorder %s24, 1
      %p199 = por %p197, %p198
      %p200 = scmp.ne.s32.totalorder %s191, %s192
      %p201 = scmp.eq.s32.totalorder %s24, 0
      %p202 = por %p200, %p201
      %p203 = scmp.ne.s32.totalorder %s191, %s192
      %p204 = scmp.eq.s32.totalorder %s25, 1
      %p205 = por %p203, %p204
      %p207 = scmp.ne.s32.totalorder %s192, %s206
      %p208 = scmp.eq.s32.totalorder %s25, 0
      %p209 = por %p207, %p208
      %s211 = sadd.s32 %s210, 1
      %p214 = scmp.eq.s32.totalorder %s19, 1
      %p215 = scmp.ne.s32.totalorder %s210, %s212
      %p216 = scmp.eq.s32.totalorder %s19, 0
      %p217 = por %p215, %p216
      %p218 = scmp.ne.s32.totalorder %s210, %s212
      %p219 = scmp.eq.s32.totalorder %s24, 1
      %p220 = por %p218, %p219
      %p221 = scmp.ne.s32.totalorder %s212, %s213
      %p222 = scmp.eq.s32.totalorder %s24, 0
      %p223 = por %p221, %p222
      %p224 = scmp.ne.s32.totalorder %s212, %s213
      %p225 = scmp.eq.s32.totalorder %s25, 1
      %p226 = por %p224, %p225
      %p228 = scmp.ne.s32.totalorder %s213, %s227
      %p229 = scmp.eq.s32.totalorder %s25, 0
      %p230 = por %p228, %p229
      %s231 = ssub.s32 %s19, %s26
      %p232 = scmp.eq.s32.totalorder %s231, 0
      %s234 = sadd.s32 %s233, 1
      %s235 = scalar_select %p232, %s233, %s234
      %p238 = pneg %p232
      %p239 = scmp.eq.s32.totalorder %s19, 1
      %p240 = por %p238, %p239
      %p241 = scmp.ne.s32.totalorder %s233, %s236
      %p242 = scmp.eq.s32.totalorder %s19, 0
      %p243 = por %p241, %p242
      %p244 = scmp.ne.s32.totalorder %s233, %s236
      %p245 = scmp.eq.s32.totalorder %s24, 1
      %p246 = por %p244, %p245
      %p247 = scmp.ne.s32.totalorder %s236, %s237
      %p248 = scmp.eq.s32.totalorder %s24, 0
      %p249 = por %p247, %p248
      %p250 = scmp.ne.s32.totalorder %s236, %s237
      %p251 = scmp.eq.s32.totalorder %s25, 1
      %p252 = por %p250, %p251
      %p254 = scmp.ne.s32.totalorder %s237, %s253
      %p255 = scmp.eq.s32.totalorder %s25, 0
      %p256 = por %p254, %p255
      %p257 = scmp.le.s32.totalorder 1, %s19
      %p258 = scmp.lt.s32.totalorder %s19, 3
      %p259 = pnand %p257, %p258
      %p260 = pneg %p259
      // Predicated region
      $region9: #{tpu_custom_call.1} parent=5 // pred_check
        _
      $region10: #{tpu_custom_call.1} parent=5 // pred_check_branch
        %262 = sbr.rel (%p259) target = $region12
      $region11: #{tpu_custom_call.1} parent=5 // pred_region
        %s263 = ssub.s32 %s19, 1
        // Predicated region
        $region13: #{tpu_custom_call.1} parent=11 // pred_check
          %p264 = pneg %p118
        $region14: #{tpu_custom_call.1} parent=11 // pred_check_branch
          %266 = sbr.rel (%p264) target = $region16
        $region15: #{tpu_custom_call.1} parent=11 // pred_region
          _
        $region16: #{tpu_custom_call.1} parent=11 // pred_fallthru
          _
        // Predicated region
        $region17: #{tpu_custom_call.1} parent=11 // pred_check
          %p267 = pneg %p139
        $region18: #{tpu_custom_call.1} parent=11 // pred_check_branch
          %269 = sbr.rel (%p267) target = $region20
        $region19: #{tpu_custom_call.1} parent=11 // pred_region
          _
        $region20: #{tpu_custom_call.1} parent=11 // pred_fallthru
          _
        // Predicated region
        $region21: #{tpu_custom_call.1} parent=11 // pred_check
          %p270 = pneg %p160
        $region22: #{tpu_custom_call.1} parent=11 // pred_check_branch
          %272 = sbr.rel (%p270) target = $region24
        $region23: #{tpu_custom_call.1} parent=11 // pred_region
          _
        $region24: #{tpu_custom_call.1} parent=11 // pred_fallthru
          _
        // Predicated region
        $region25: #{tpu_custom_call.1} parent=11 // pred_check
          %p273 = pneg %p181
        $region26: #{tpu_custom_call.1} parent=11 // pred_check_branch
          %275 = sbr.rel (%p273) target = $region28
        $region27: #{tpu_custom_call.1} parent=11 // pred_region
          _
        $region28: #{tpu_custom_call.1} parent=11 // pred_fallthru
          _
        // Predicated region
        $region29: #{tpu_custom_call.1} parent=11 // pred_check
          %p276 = pneg %p202
        $region30: #{tpu_custom_call.1} parent=11 // pred_check_branch
          %278 = sbr.rel (%p276) target = $region32
        $region31: #{tpu_custom_call.1} parent=11 // pred_region
          _
        $region32: #{tpu_custom_call.1} parent=11 // pred_fallthru
          _
        // Predicated region
        $region33: #{tpu_custom_call.1} parent=11 // pred_check
          %p279 = pneg %p223
        $region34: #{tpu_custom_call.1} parent=11 // pred_check_branch
          %281 = sbr.rel (%p279) target = $region36
        $region35: #{tpu_custom_call.1} parent=11 // pred_region
          _
        $region36: #{tpu_custom_call.1} parent=11 // pred_fallthru
          _
      $region12: #{tpu_custom_call.1} parent=5 // pred_fallthru
        _
      %p282 = scmp.lt.s32.totalorder %s19, 2
      // Predicated region
      $region37: #{tpu_custom_call.1} parent=5 // pred_check
        %p283 = pneg %p282
      $region38: #{tpu_custom_call.1} parent=5 // pred_check_branch
        %285 = sbr.rel (%p283) target = $region40
      $region39: #{tpu_custom_call.1} parent=5 // pred_region
        // Predicated region
        $region41: #{tpu_custom_call.1} parent=39 // pred_check
          %p286 = pneg %p39
        $region42: #{tpu_custom_call.1} parent=39 // pred_check_branch
          %288 = sbr.rel (%p286) target = $region44
        $region43: #{tpu_custom_call.1} parent=39 // pred_region
          %s289 = smul.u32 16, %s19
          %s290 = ssub.s32 25, %s289
          %p291 = scmp.lt.s32.totalorder %s290, 16
          %s292 = scalar_select %p291, %s290, 16
          %s293 = smul.u32 64, %s292
          %p294 = scmp.lt.s32.totalorder %s289, 24
          %s295 = scalar_select %p294, %s289, 24
          %s296 = smul.addr %s295, 4
          %s297 = scalar_lea.vmem %s0, %s296
          %s298 = smul.u32 16, %s19
          %s299 = ssub.s32 25, %s298
          %p300 = scmp.lt.s32.totalorder %s299, 16
          %s301 = scalar_select %p300, %s299, 16
          %s302 = smul.u32 64, %s301
        $region44: #{tpu_custom_call.1} parent=39 // pred_fallthru
          _
        // Predicated region
        $region45: #{tpu_custom_call.1} parent=39 // pred_check
          %p303 = pneg %p65
        $region46: #{tpu_custom_call.1} parent=39 // pred_check_branch
          %305 = sbr.rel (%p303) target = $region48
        $region47: #{tpu_custom_call.1} parent=39 // pred_region
          %s306 = smul.u32 16, %s19
          %s307 = ssub.s32 25, %s306
          %p308 = scmp.lt.s32.totalorder %s307, 16
          %s309 = scalar_select %p308, %s307, 16
          %s310 = smul.u32 64, %s309
          %p311 = scmp.lt.s32.totalorder %s306, 24
          %s312 = scalar_select %p311, %s306, 24
          %s313 = smul.addr %s312, 4
          %s314 = scalar_lea.vmem %s1, %s313
          %s315 = smul.u32 16, %s19
          %s316 = ssub.s32 25, %s315
          %p317 = scmp.lt.s32.totalorder %s316, 16
          %s318 = scalar_select %p317, %s316, 16
          %s319 = smul.u32 64, %s318
        $region48: #{tpu_custom_call.1} parent=39 // pred_fallthru
          _
        // Predicated region
        $region49: #{tpu_custom_call.1} parent=39 // pred_check
          %p320 = pneg %p91
        $region50: #{tpu_custom_call.1} parent=39 // pred_check_branch
          %322 = sbr.rel (%p320) target = $region52
        $region51: #{tpu_custom_call.1} parent=39 // pred_region
          %s323 = smul.u32 16, %s19
          %s324 = ssub.s32 25, %s323
          %p325 = scmp.lt.s32.totalorder %s324, 16
          %s326 = scalar_select %p325, %s324, 16
          %s327 = smul.u32 64, %s326
          %p328 = scmp.lt.s32.totalorder %s323, 24
          %s329 = scalar_select %p328, %s323, 24
          %s330 = smul.addr %s329, 4
          %s331 = scalar_lea.vmem %s2, %s330
          %s332 = smul.u32 16, %s19
          %s333 = ssub.s32 25, %s332
          %p334 = scmp.lt.s32.totalorder %s333, 16
          %s335 = scalar_select %p334, %s333, 16
          %s336 = smul.u32 64, %s335
        $region52: #{tpu_custom_call.1} parent=39 // pred_fallthru
          _
      $region40: #{tpu_custom_call.1} parent=5 // pred_fallthru
        _
      %p337 = scmp.le.s32.totalorder 1, %s19
      %p338 = scmp.lt.s32.totalorder %s19, 3
      %p339 = pnand %p337, %p338
      %p340 = pneg %p339
      // Predicated region
      $region53: #{tpu_custom_call.1} parent=5 // pred_check
        _
      $region54: #{tpu_custom_call.1} parent=5 // pred_check_branch
        %342 = sbr.rel (%p339) target = $region56
      $region55: #{tpu_custom_call.1} parent=5 // pred_region
        %s343 = ssub.s32 %s19, 1
        %s344 = smul.u32 16, %s24
        %s345 = ssub.s32 25, %s344
        %p346 = scmp.lt.s32.totalorder %s345, 16
        %s347 = scalar_select %p346, %s345, 16
        %s348 = smul.u32 64, %s347
        %p349 = scmp.lt.s32.totalorder %s344, 24
        %s350 = scalar_select %p349, %s344, 24
        %s351 = smul.addr %s350, 4
        %s352 = scalar_lea.vmem %s0, %s351
        %p353 = pneg %p45
        %p354 = pneg %p42
        %s355 = smul.u32 16, %s24
        %s356 = ssub.s32 25, %s355
        %p357 = scmp.lt.s32.totalorder %s356, 16
        %s358 = scalar_select %p357, %s356, 16
        %s359 = smul.u32 64, %s358
        %p360 = scmp.lt.s32.totalorder %s355, 24
        %s361 = scalar_select %p360, %s355, 24
        %s362 = smul.addr %s361, 4
        %s363 = scalar_lea.vmem %s1, %s362
        %p364 = pneg %p71
        %p365 = pneg %p68
        %s366 = smul.u32 16, %s24
        %s367 = ssub.s32 25, %s366
        %p368 = scmp.lt.s32.totalorder %s367, 16
        %s369 = scalar_select %p368, %s367, 16
        %s370 = smul.u32 64, %s369
        %p371 = scmp.lt.s32.totalorder %s366, 24
        %s372 = scalar_select %p371, %s366, 24
        %s373 = smul.addr %s372, 4
        %s374 = scalar_lea.vmem %s2, %s373
        %p375 = pneg %p97
        %p376 = pneg %p94
        %p377 = pneg %p118
        %p378 = pneg %p115
        %p379 = pneg %p139
        %p380 = pneg %p136
        %p381 = pneg %p160
        %p382 = pneg %p157
        %p383 = pneg %p181
        %p384 = pneg %p178
        %p385 = pneg %p202
        %p386 = pneg %p199
        %p387 = pneg %p223
        %p388 = pneg %p220
        %p389 = pneg %p249
        %p390 = pneg %p246
        %s391 = sand.u32 %s236, 1
        %s392 = scalar_lea.sflag [#allocation4], %s391
        %s393 = sand.u32 %s236, 1
        %s394 = smul.addr %s393, 128
        %s395 = scalar_lea.vmem [#allocation3], %s394
        %s396 = smul.u32 16, %s24
        %s397 = ssub.s32 25, %s396
        %p398 = scmp.lt.s32.totalorder %s397, 16
        %s399 = scalar_select %p398, %s397, 16
        %s400 = smul.u32 64, %s399
        %p401 = scmp.lt.s32.totalorder %s396, 24
        %s402 = scalar_select %p401, %s396, 24
        %s403 = smul.addr %s402, 4
        %s404 = scalar_lea.vmem %s0, %s403
        %s405 = smul.u32 16, %s24
        %s406 = ssub.s32 25, %s405
        %p407 = scmp.lt.s32.totalorder %s406, 16
        %s408 = scalar_select %p407, %s406, 16
        %s409 = smul.u32 64, %s408
        %s410 = smul.u32 16, %s24
        %s411 = ssub.s32 25, %s410
        %p412 = scmp.lt.s32.totalorder %s411, 16
        %s413 = scalar_select %p412, %s411, 16
        %s414 = smul.u32 64, %s413
        %p415 = scmp.lt.s32.totalorder %s410, 24
        %s416 = scalar_select %p415, %s410, 24
        %s417 = smul.addr %s416, 4
        %s418 = scalar_lea.vmem %s1, %s417
        %s419 = smul.u32 16, %s24
        %s420 = ssub.s32 25, %s419
        %p421 = scmp.lt.s32.totalorder %s420, 16
        %s422 = scalar_select %p421, %s420, 16
        %s423 = smul.u32 64, %s422
        %s424 = smul.u32 16, %s24
        %s425 = ssub.s32 25, %s424
        %p426 = scmp.lt.s32.totalorder %s425, 16
        %s427 = scalar_select %p426, %s425, 16
        %s428 = smul.u32 64, %s427
        %p429 = scmp.lt.s32.totalorder %s424, 24
        %s430 = scalar_select %p429, %s424, 24
        %s431 = smul.addr %s430, 4
        %s432 = scalar_lea.vmem %s2, %s431
        %s433 = smul.u32 16, %s24
        %s434 = ssub.s32 25, %s433
        %p435 = scmp.lt.s32.totalorder %s434, 16
        %s436 = scalar_select %p435, %s434, 16
        %s437 = smul.u32 64, %s436
        %s438 = smul.u32 16, %s24
        %s439 = ssub.s32 25, %s438
        %p440 = scmp.lt.s32.totalorder %s439, 16
        %s441 = scalar_select %p440, %s439, 16
        %s442 = smul.u32 128, %s441
        %v444 = vld [vmem:[%s3] sm:$0x1]
        %v445 = vld [vmem:[%s404] sm:$0xf]
        %v446 = vld [vmem:[%s404 + $0x4] sm:$0xf]
        %v447 = vld [vmem:[%s404 + $0x8] sm:$0xf]
        %v448 = vld [vmem:[%s404 + $0xc] sm:$0xf]
        %v449 = vld [vmem:[%s404 + $0x10] sm:$0xf]
        %v450 = vld [vmem:[%s404 + $0x14] sm:$0xf]
        %v451 = vld [vmem:[%s404 + $0x18] sm:$0xf]
        %v452 = vld [vmem:[%s404 + $0x1c] sm:$0xf]
        %v453 = vld [vmem:[%s404 + $0x20] sm:$0xf]
        %v454 = vld [vmem:[%s404 + $0x24] sm:$0xf]
        %v455 = vld [vmem:[%s404 + $0x28] sm:$0xf]
        %v456 = vld [vmem:[%s404 + $0x2c] sm:$0xf]
        %v457 = vld [vmem:[%s404 + $0x30] sm:$0xf]
        %v458 = vld [vmem:[%s404 + $0x34] sm:$0xf]
        %v459 = vld [vmem:[%s404 + $0x38] sm:$0xf]
        %v460 = vld [vmem:[%s404 + $0x3c] sm:$0xf]
        %v461 = vunpack.c.l.bf16 %v445
        %v462 = vunpack.c.l.bf16 %v446
        %v463 = vunpack.c.l.bf16 %v447
        %v464 = vunpack.c.l.bf16 %v448
        %v465 = vunpack.c.l.bf16 %v449
        %v466 = vunpack.c.l.bf16 %v450
        %v467 = vunpack.c.l.bf16 %v451
        %v468 = vunpack.c.l.bf16 %v452
        %v469 = vunpack.c.l.bf16 %v453
        %v470 = vunpack.c.l.bf16 %v454
        %v471 = vunpack.c.l.bf16 %v455
        %v472 = vunpack.c.l.bf16 %v456
        %v473 = vunpack.c.l.bf16 %v457
        %v474 = vunpack.c.l.bf16 %v458
        %v475 = vunpack.c.l.bf16 %v459
        %v476 = vunpack.c.l.bf16 %v460
        %v478 = vlaneseq
        %v479 = vshrl.u32 %v478, 7
        %v480 = vsub.s32 0, %v479
        %v481 = vrot.slane %v444, %v480
        %v483 = vmul.f32 %v461, %v481
        %v484 = vmul.f32 %v462, %v481
        %v485 = vmul.f32 %v463, %v481
        %v486 = vmul.f32 %v464, %v481
        %v487 = vmul.f32 %v465, %v481
        %v488 = vmul.f32 %v466, %v481
        %v489 = vmul.f32 %v467, %v481
        %v490 = vmul.f32 %v468, %v481
        %v491 = vmul.f32 %v469, %v481
        %v492 = vmul.f32 %v470, %v481
        %v493 = vmul.f32 %v471, %v481
        %v494 = vmul.f32 %v472, %v481
        %v495 = vmul.f32 %v473, %v481
        %v496 = vmul.f32 %v474, %v481
        %v497 = vmul.f32 %v475, %v481
        %v498 = vmul.f32 %v476, %v481
        %vm499 = vcmask 523264
        %v500 = vsel %vm499, %v483, 0.0
        %501 = vadd.xlane.f32.xlu0 %v500
        %v502 = vpop.xlane.xlu0 %501
        %v503 = vsel %vm499, %v484, 0.0
        %504 = vadd.xlane.f32.xlu0 %v503
        %v505 = vpop.xlane.xlu0 %504
        %v506 = vsel %vm499, %v485, 0.0
        %507 = vadd.xlane.f32.xlu0 %v506
        %v508 = vpop.xlane.xlu0 %507
        %v509 = vsel %vm499, %v486, 0.0
        %510 = vadd.xlane.f32.xlu0 %v509
        %v511 = vpop.xlane.xlu0 %510
        %v512 = vsel %vm499, %v487, 0.0
        %513 = vadd.xlane.f32.xlu0 %v512
        %v514 = vpop.xlane.xlu0 %513
        %v515 = vsel %vm499, %v488, 0.0
        %516 = vadd.xlane.f32.xlu0 %v515
        %v517 = vpop.xlane.xlu0 %516
        %v518 = vsel %vm499, %v489, 0.0
        %519 = vadd.xlane.f32.xlu0 %v518
        %v520 = vpop.xlane.xlu0 %519
        %v521 = vsel %vm499, %v490, 0.0
        %522 = vadd.xlane.f32.xlu0 %v521
        %v523 = vpop.xlane.xlu0 %522
        %v524 = vsel %vm499, %v491, 0.0
        %525 = vadd.xlane.f32.xlu0 %v524
        %v526 = vpop.xlane.xlu0 %525
        %v527 = vsel %vm499, %v492, 0.0
        %528 = vadd.xlane.f32.xlu0 %v527
        %v529 = vpop.xlane.xlu0 %528
        %v530 = vsel %vm499, %v493, 0.0
        %531 = vadd.xlane.f32.xlu0 %v530
        %v532 = vpop.xlane.xlu0 %531
        %v533 = vsel %vm499, %v494, 0.0
        %534 = vadd.xlane.f32.xlu0 %v533
        %v535 = vpop.xlane.xlu0 %534
        %v536 = vsel %vm499, %v495, 0.0
        %537 = vadd.xlane.f32.xlu0 %v536
        %v538 = vpop.xlane.xlu0 %537
        %v539 = vsel %vm499, %v496, 0.0
        %540 = vadd.xlane.f32.xlu0 %v539
        %v541 = vpop.xlane.xlu0 %540
        %v542 = vsel %vm499, %v497, 0.0
        %543 = vadd.xlane.f32.xlu0 %v542
        %v544 = vpop.xlane.xlu0 %543
        %v545 = vsel %vm499, %v498, 0.0
        %546 = vadd.xlane.f32.xlu0 %v545
        %v547 = vpop.xlane.xlu0 %546
        %v548 = vxor.u32 %v502, 2147483648
        %v549 = vxor.u32 %v505, 2147483648
        %v550 = vxor.u32 %v508, 2147483648
        %v551 = vxor.u32 %v511, 2147483648
        %v552 = vxor.u32 %v514, 2147483648
        %v553 = vxor.u32 %v517, 2147483648
        %v554 = vxor.u32 %v520, 2147483648
        %v555 = vxor.u32 %v523, 2147483648
        %v556 = vxor.u32 %v526, 2147483648
        %v557 = vxor.u32 %v529, 2147483648
        %v558 = vxor.u32 %v532, 2147483648
        %v559 = vxor.u32 %v535, 2147483648
        %v560 = vxor.u32 %v538, 2147483648
        %v561 = vxor.u32 %v541, 2147483648
        %v562 = vxor.u32 %v544, 2147483648
        %v563 = vxor.u32 %v547, 2147483648
        %v564 = vmul.f32 %v548, 1.442695
        %v565 = vpow.pop %v564
        %v566 = vmul.f32 %v549, 1.442695
        %v567 = vpow.pop %v566
        %v568 = vmul.f32 %v550, 1.442695
        %v569 = vpow.pop %v568
        %v570 = vmul.f32 %v551, 1.442695
        %v571 = vpow.pop %v570
        %v572 = vmul.f32 %v552, 1.442695
        %v573 = vpow.pop %v572
        %v574 = vmul.f32 %v553, 1.442695
        %v575 = vpow.pop %v574
        %v576 = vmul.f32 %v554, 1.442695
        %v577 = vpow.pop %v576
        %v578 = vmul.f32 %v555, 1.442695
        %v579 = vpow.pop %v578
        %v580 = vmul.f32 %v556, 1.442695
        %v581 = vpow.pop %v580
        %v582 = vmul.f32 %v557, 1.442695
        %v583 = vpow.pop %v582
        %v584 = vmul.f32 %v558, 1.442695
        %v585 = vpow.pop %v584
        %v586 = vmul.f32 %v559, 1.442695
        %v587 = vpow.pop %v586
        %v588 = vmul.f32 %v560, 1.442695
        %v589 = vpow.pop %v588
        %v590 = vmul.f32 %v561, 1.442695
        %v591 = vpow.pop %v590
        %v592 = vmul.f32 %v562, 1.442695
        %v593 = vpow.pop %v592
        %v594 = vmul.f32 %v563, 1.442695
        %v595 = vpow.pop %v594
        %v596 = vadd.f32 %v565, 1.0
        %v597 = vadd.f32 %v567, 1.0
        %v598 = vadd.f32 %v569, 1.0
        %v599 = vadd.f32 %v571, 1.0
        %v600 = vadd.f32 %v573, 1.0
        %v601 = vadd.f32 %v575, 1.0
        %v602 = vadd.f32 %v577, 1.0
        %v603 = vadd.f32 %v579, 1.0
        %v604 = vadd.f32 %v581, 1.0
        %v605 = vadd.f32 %v583, 1.0
        %v606 = vadd.f32 %v585, 1.0
        %v607 = vadd.f32 %v587, 1.0
        %v608 = vadd.f32 %v589, 1.0
        %v609 = vadd.f32 %v591, 1.0
        %v610 = vadd.f32 %v593, 1.0
        %v611 = vadd.f32 %v595, 1.0
        %v612 = vrcp.pop %v596
        %v613 = vmul.f32 1.0, %v612
        %v614 = vrcp.pop %v597
        %v615 = vmul.f32 1.0, %v614
        %v616 = vrcp.pop %v598
        %v617 = vmul.f32 1.0, %v616
        %v618 = vrcp.pop %v599
        %v619 = vmul.f32 1.0, %v618
        %v620 = vrcp.pop %v600
        %v621 = vmul.f32 1.0, %v620
        %v622 = vrcp.pop %v601
        %v623 = vmul.f32 1.0, %v622
        %v624 = vrcp.pop %v602
        %v625 = vmul.f32 1.0, %v624
        %v626 = vrcp.pop %v603
        %v627 = vmul.f32 1.0, %v626
        %v628 = vrcp.pop %v604
        %v629 = vmul.f32 1.0, %v628
        %v630 = vrcp.pop %v605
        %v631 = vmul.f32 1.0, %v630
        %v632 = vrcp.pop %v606
        %v633 = vmul.f32 1.0, %v632
        %v634 = vrcp.pop %v607
        %v635 = vmul.f32 1.0, %v634
        %v636 = vrcp.pop %v608
        %v637 = vmul.f32 1.0, %v636
        %v638 = vrcp.pop %v609
        %v639 = vmul.f32 1.0, %v638
        %v640 = vrcp.pop %v610
        %v641 = vmul.f32 1.0, %v640
        %v642 = vrcp.pop %v611
        %v643 = vmul.f32 1.0, %v642
        %v644 = vld [vmem:[%s418] sm:$0xf]
        %v645 = vld [vmem:[%s418 + $0x4] sm:$0xf]
        %v646 = vld [vmem:[%s418 + $0x8] sm:$0xf]
        %v647 = vld [vmem:[%s418 + $0xc] sm:$0xf]
        %v648 = vld [vmem:[%s418 + $0x10] sm:$0xf]
        %v649 = vld [vmem:[%s418 + $0x14] sm:$0xf]
        %v650 = vld [vmem:[%s418 + $0x18] sm:$0xf]
        %v651 = vld [vmem:[%s418 + $0x1c] sm:$0xf]
        %v652 = vld [vmem:[%s418 + $0x20] sm:$0xf]
        %v653 = vld [vmem:[%s418 + $0x24] sm:$0xf]
        %v654 = vld [vmem:[%s418 + $0x28] sm:$0xf]
        %v655 = vld [vmem:[%s418 + $0x2c] sm:$0xf]
        %v656 = vld [vmem:[%s418 + $0x30] sm:$0xf]
        %v657 = vld [vmem:[%s418 + $0x34] sm:$0xf]
        %v658 = vld [vmem:[%s418 + $0x38] sm:$0xf]
        %v659 = vld [vmem:[%s418 + $0x3c] sm:$0xf]
        %v660 = vunpack.c.l.bf16 %v644
        %v661 = vunpack.c.l.bf16 %v645
        %v662 = vunpack.c.l.bf16 %v646
        %v663 = vunpack.c.l.bf16 %v647
        %v664 = vunpack.c.l.bf16 %v648
        %v665 = vunpack.c.l.bf16 %v649
        %v666 = vunpack.c.l.bf16 %v650
        %v667 = vunpack.c.l.bf16 %v651
        %v668 = vunpack.c.l.bf16 %v652
        %v669 = vunpack.c.l.bf16 %v653
        %v670 = vunpack.c.l.bf16 %v654
        %v671 = vunpack.c.l.bf16 %v655
        %v672 = vunpack.c.l.bf16 %v656
        %v673 = vunpack.c.l.bf16 %v657
        %v674 = vunpack.c.l.bf16 %v658
        %v675 = vunpack.c.l.bf16 %v659
        %v676 = vmul.f32 %v660, %v481
        %v677 = vmul.f32 %v661, %v481
        %v678 = vmul.f32 %v662, %v481
        %v679 = vmul.f32 %v663, %v481
        %v680 = vmul.f32 %v664, %v481
        %v681 = vmul.f32 %v665, %v481
        %v682 = vmul.f32 %v666, %v481
        %v683 = vmul.f32 %v667, %v481
        %v684 = vmul.f32 %v668, %v481
        %v685 = vmul.f32 %v669, %v481
        %v686 = vmul.f32 %v670, %v481
        %v687 = vmul.f32 %v671, %v481
        %v688 = vmul.f32 %v672, %v481
        %v689 = vmul.f32 %v673, %v481
        %v690 = vmul.f32 %v674, %v481
        %v691 = vmul.f32 %v675, %v481
        %v692 = vsel %vm499, %v676, 0.0
        %693 = vadd.xlane.f32.xlu0 %v692
        %v694 = vpop.xlane.xlu0 %693
        %v695 = vsel %vm499, %v677, 0.0
        %696 = vadd.xlane.f32.xlu0 %v695
        %v697 = vpop.xlane.xlu0 %696
        %v698 = vsel %vm499, %v678, 0.0
        %699 = vadd.xlane.f32.xlu0 %v698
        %v700 = vpop.xlane.xlu0 %699
        %v701 = vsel %vm499, %v679, 0.0
        %702 = vadd.xlane.f32.xlu0 %v701
        %v703 = vpop.xlane.xlu0 %702
        %v704 = vsel %vm499, %v680, 0.0
        %705 = vadd.xlane.f32.xlu0 %v704
        %v706 = vpop.xlane.xlu0 %705
        %v707 = vsel %vm499, %v681, 0.0
        %708 = vadd.xlane.f32.xlu0 %v707
        %v709 = vpop.xlane.xlu0 %708
        %v710 = vsel %vm499, %v682, 0.0
        %711 = vadd.xlane.f32.xlu0 %v710
        %v712 = vpop.xlane.xlu0 %711
        %v713 = vsel %vm499, %v683, 0.0
        %714 = vadd.xlane.f32.xlu0 %v713
        %v715 = vpop.xlane.xlu0 %714
        %v716 = vsel %vm499, %v684, 0.0
        %717 = vadd.xlane.f32.xlu0 %v716
        %v718 = vpop.xlane.xlu0 %717
        %v719 = vsel %vm499, %v685, 0.0
        %720 = vadd.xlane.f32.xlu0 %v719
        %v721 = vpop.xlane.xlu0 %720
        %v722 = vsel %vm499, %v686, 0.0
        %723 = vadd.xlane.f32.xlu0 %v722
        %v724 = vpop.xlane.xlu0 %723
        %v725 = vsel %vm499, %v687, 0.0
        %726 = vadd.xlane.f32.xlu0 %v725
        %v727 = vpop.xlane.xlu0 %726
        %v728 = vsel %vm499, %v688, 0.0
        %729 = vadd.xlane.f32.xlu0 %v728
        %v730 = vpop.xlane.xlu0 %729
        %v731 = vsel %vm499, %v689, 0.0
        %732 = vadd.xlane.f32.xlu0 %v731
        %v733 = vpop.xlane.xlu0 %732
        %v734 = vsel %vm499, %v690, 0.0
        %735 = vadd.xlane.f32.xlu0 %v734
        %v736 = vpop.xlane.xlu0 %735
        %v737 = vsel %vm499, %v691, 0.0
        %738 = vadd.xlane.f32.xlu0 %v737
        %v739 = vpop.xlane.xlu0 %738
        %v740 = vxor.u32 %v694, 2147483648
        %v741 = vxor.u32 %v697, 2147483648
        %v742 = vxor.u32 %v700, 2147483648
        %v743 = vxor.u32 %v703, 2147483648
        %v744 = vxor.u32 %v706, 2147483648
        %v745 = vxor.u32 %v709, 2147483648
        %v746 = vxor.u32 %v712, 2147483648
        %v747 = vxor.u32 %v715, 2147483648
        %v748 = vxor.u32 %v718, 2147483648
        %v749 = vxor.u32 %v721, 2147483648
        %v750 = vxor.u32 %v724, 2147483648
        %v751 = vxor.u32 %v727, 2147483648
        %v752 = vxor.u32 %v730, 2147483648
        %v753 = vxor.u32 %v733, 2147483648
        %v754 = vxor.u32 %v736, 2147483648
        %v755 = vxor.u32 %v739, 2147483648
        %v756 = vmul.f32 %v740, 1.442695
        %v757 = vpow.pop %v756
        %v758 = vmul.f32 %v741, 1.442695
        %v759 = vpow.pop %v758
        %v760 = vmul.f32 %v742, 1.442695
        %v761 = vpow.pop %v760
        %v762 = vmul.f32 %v743, 1.442695
        %v763 = vpow.pop %v762
        %v764 = vmul.f32 %v744, 1.442695
        %v765 = vpow.pop %v764
        %v766 = vmul.f32 %v745, 1.442695
        %v767 = vpow.pop %v766
        %v768 = vmul.f32 %v746, 1.442695
        %v769 = vpow.pop %v768
        %v770 = vmul.f32 %v747, 1.442695
        %v771 = vpow.pop %v770
        %v772 = vmul.f32 %v748, 1.442695
        %v773 = vpow.pop %v772
        %v774 = vmul.f32 %v749, 1.442695
        %v775 = vpow.pop %v774
        %v776 = vmul.f32 %v750, 1.442695
        %v777 = vpow.pop %v776
        %v778 = vmul.f32 %v751, 1.442695
        %v779 = vpow.pop %v778
        %v780 = vmul.f32 %v752, 1.442695
        %v781 = vpow.pop %v780
        %v782 = vmul.f32 %v753, 1.442695
        %v783 = vpow.pop %v782
        %v784 = vmul.f32 %v754, 1.442695
        %v785 = vpow.pop %v784
        %v786 = vmul.f32 %v755, 1.442695
        %v787 = vpow.pop %v786
        %v788 = vadd.f32 %v757, 1.0
        %v789 = vadd.f32 %v759, 1.0
        %v790 = vadd.f32 %v761, 1.0
        %v791 = vadd.f32 %v763, 1.0
        %v792 = vadd.f32 %v765, 1.0
        %v793 = vadd.f32 %v767, 1.0
        %v794 = vadd.f32 %v769, 1.0
        %v795 = vadd.f32 %v771, 1.0
        %v796 = vadd.f32 %v773, 1.0
        %v797 = vadd.f32 %v775, 1.0
        %v798 = vadd.f32 %v777, 1.0
        %v799 = vadd.f32 %v779, 1.0
        %v800 = vadd.f32 %v781, 1.0
        %v801 = vadd.f32 %v783, 1.0
        %v802 = vadd.f32 %v785, 1.0
        %v803 = vadd.f32 %v787, 1.0
        %v804 = vrcp.pop %v788
        %v805 = vmul.f32 1.0, %v804
        %v806 = vrcp.pop %v789
        %v807 = vmul.f32 1.0, %v806
        %v808 = vrcp.pop %v790
        %v809 = vmul.f32 1.0, %v808
        %v810 = vrcp.pop %v791
        %v811 = vmul.f32 1.0, %v810
        %v812 = vrcp.pop %v792
        %v813 = vmul.f32 1.0, %v812
        %v814 = vrcp.pop %v793
        %v815 = vmul.f32 1.0, %v814
        %v816 = vrcp.pop %v794
        %v817 = vmul.f32 1.0, %v816
        %v818 = vrcp.pop %v795
        %v819 = vmul.f32 1.0, %v818
        %v820 = vrcp.pop %v796
        %v821 = vmul.f32 1.0, %v820
        %v822 = vrcp.pop %v797
        %v823 = vmul.f32 1.0, %v822
        %v824 = vrcp.pop %v798
        %v825 = vmul.f32 1.0, %v824
        %v826 = vrcp.pop %v799
        %v827 = vmul.f32 1.0, %v826
        %v828 = vrcp.pop %v800
        %v829 = vmul.f32 1.0, %v828
        %v830 = vrcp.pop %v801
        %v831 = vmul.f32 1.0, %v830
        %v832 = vrcp.pop %v802
        %v833 = vmul.f32 1.0, %v832
        %v834 = vrcp.pop %v803
        %v835 = vmul.f32 1.0, %v834
        %v836 = vld [vmem:[%s432] sm:$0xf]
        %v837 = vld [vmem:[%s432 + $0x4] sm:$0xf]
        %v838 = vld [vmem:[%s432 + $0x8] sm:$0xf]
        %v839 = vld [vmem:[%s432 + $0xc] sm:$0xf]
        %v840 = vld [vmem:[%s432 + $0x10] sm:$0xf]
        %v841 = vld [vmem:[%s432 + $0x14] sm:$0xf]
        %v842 = vld [vmem:[%s432 + $0x18] sm:$0xf]
        %v843 = vld [vmem:[%s432 + $0x1c] sm:$0xf]
        %v844 = vld [vmem:[%s432 + $0x20] sm:$0xf]
        %v845 = vld [vmem:[%s432 + $0x24] sm:$0xf]
        %v846 = vld [vmem:[%s432 + $0x28] sm:$0xf]
        %v847 = vld [vmem:[%s432 + $0x2c] sm:$0xf]
        %v848 = vld [vmem:[%s432 + $0x30] sm:$0xf]
        %v849 = vld [vmem:[%s432 + $0x34] sm:$0xf]
        %v850 = vld [vmem:[%s432 + $0x38] sm:$0xf]
        %v851 = vld [vmem:[%s432 + $0x3c] sm:$0xf]
        %v852 = vunpack.c.l.bf16 %v836
        %v853 = vunpack.c.l.bf16 %v837
        %v854 = vunpack.c.l.bf16 %v838
        %v855 = vunpack.c.l.bf16 %v839
        %v856 = vunpack.c.l.bf16 %v840
        %v857 = vunpack.c.l.bf16 %v841
        %v858 = vunpack.c.l.bf16 %v842
        %v859 = vunpack.c.l.bf16 %v843
        %v860 = vunpack.c.l.bf16 %v844
        %v861 = vunpack.c.l.bf16 %v845
        %v862 = vunpack.c.l.bf16 %v846
        %v863 = vunpack.c.l.bf16 %v847
        %v864 = vunpack.c.l.bf16 %v848
        %v865 = vunpack.c.l.bf16 %v849
        %v866 = vunpack.c.l.bf16 %v850
        %v867 = vunpack.c.l.bf16 %v851
        %v868 = vmul.f32 %v852, %v481
        %v869 = vmul.f32 %v853, %v481
        %v870 = vmul.f32 %v854, %v481
        %v871 = vmul.f32 %v855, %v481
        %v872 = vmul.f32 %v856, %v481
        %v873 = vmul.f32 %v857, %v481
        %v874 = vmul.f32 %v858, %v481
        %v875 = vmul.f32 %v859, %v481
        %v876 = vmul.f32 %v860, %v481
        %v877 = vmul.f32 %v861, %v481
        %v878 = vmul.f32 %v862, %v481
        %v879 = vmul.f32 %v863, %v481
        %v880 = vmul.f32 %v864, %v481
        %v881 = vmul.f32 %v865, %v481
        %v882 = vmul.f32 %v866, %v481
        %v883 = vmul.f32 %v867, %v481
        %v884 = vsel %vm499, %v868, 0.0
        %885 = vadd.xlane.f32.xlu0 %v884
        %v886 = vpop.xlane.xlu0 %885
        %v887 = vsel %vm499, %v869, 0.0
        %888 = vadd.xlane.f32.xlu0 %v887
        %v889 = vpop.xlane.xlu0 %888
        %v890 = vsel %vm499, %v870, 0.0
        %891 = vadd.xlane.f32.xlu0 %v890
        %v892 = vpop.xlane.xlu0 %891
        %v893 = vsel %vm499, %v871, 0.0
        %894 = vadd.xlane.f32.xlu0 %v893
        %v895 = vpop.xlane.xlu0 %894
        %v896 = vsel %vm499, %v872, 0.0
        %897 = vadd.xlane.f32.xlu0 %v896
        %v898 = vpop.xlane.xlu0 %897
        %v899 = vsel %vm499, %v873, 0.0
        %900 = vadd.xlane.f32.xlu0 %v899
        %v901 = vpop.xlane.xlu0 %900
        %v902 = vsel %vm499, %v874, 0.0
        %903 = vadd.xlane.f32.xlu0 %v902
        %v904 = vpop.xlane.xlu0 %903
        %v905 = vsel %vm499, %v875, 0.0
        %906 = vadd.xlane.f32.xlu0 %v905
        %v907 = vpop.xlane.xlu0 %906
        %v908 = vsel %vm499, %v876, 0.0
        %909 = vadd.xlane.f32.xlu0 %v908
        %v910 = vpop.xlane.xlu0 %909
        %v911 = vsel %vm499, %v877, 0.0
        %912 = vadd.xlane.f32.xlu0 %v911
        %v913 = vpop.xlane.xlu0 %912
        %v914 = vsel %vm499, %v878, 0.0
        %915 = vadd.xlane.f32.xlu0 %v914
        %v916 = vpop.xlane.xlu0 %915
        %v917 = vsel %vm499, %v879, 0.0
        %918 = vadd.xlane.f32.xlu0 %v917
        %v919 = vpop.xlane.xlu0 %918
        %v920 = vsel %vm499, %v880, 0.0
        %921 = vadd.xlane.f32.xlu0 %v920
        %v922 = vpop.xlane.xlu0 %921
        %v923 = vsel %vm499, %v881, 0.0
        %924 = vadd.xlane.f32.xlu0 %v923
        %v925 = vpop.xlane.xlu0 %924
        %v926 = vsel %vm499, %v882, 0.0
        %927 = vadd.xlane.f32.xlu0 %v926
        %v928 = vpop.xlane.xlu0 %927
        %v929 = vsel %vm499, %v883, 0.0
        %930 = vadd.xlane.f32.xlu0 %v929
        %v931 = vpop.xlane.xlu0 %930
        %v932 = vxor.u32 %v886, 2147483648
        %v933 = vxor.u32 %v889, 2147483648
        %v934 = vxor.u32 %v892, 2147483648
        %v935 = vxor.u32 %v895, 2147483648
        %v936 = vxor.u32 %v898, 2147483648
        %v937 = vxor.u32 %v901, 2147483648
        %v938 = vxor.u32 %v904, 2147483648
        %v939 = vxor.u32 %v907, 2147483648
        %v940 = vxor.u32 %v910, 2147483648
        %v941 = vxor.u32 %v913, 2147483648
        %v942 = vxor.u32 %v916, 2147483648
        %v943 = vxor.u32 %v919, 2147483648
        %v944 = vxor.u32 %v922, 2147483648
        %v945 = vxor.u32 %v925, 2147483648
        %v946 = vxor.u32 %v928, 2147483648
        %v947 = vxor.u32 %v931, 2147483648
        %v948 = vmul.f32 %v932, 1.442695
        %v949 = vpow.pop %v948
        %v950 = vmul.f32 %v933, 1.442695
        %v951 = vpow.pop %v950
        %v952 = vmul.f32 %v934, 1.442695
        %v953 = vpow.pop %v952
        %v954 = vmul.f32 %v935, 1.442695
        %v955 = vpow.pop %v954
        %v956 = vmul.f32 %v936, 1.442695
        %v957 = vpow.pop %v956
        %v958 = vmul.f32 %v937, 1.442695
        %v959 = vpow.pop %v958
        %v960 = vmul.f32 %v938, 1.442695
        %v961 = vpow.pop %v960
        %v962 = vmul.f32 %v939, 1.442695
        %v963 = vpow.pop %v962
        %v964 = vmul.f32 %v940, 1.442695
        %v965 = vpow.pop %v964
        %v966 = vmul.f32 %v941, 1.442695
        %v967 = vpow.pop %v966
        %v968 = vmul.f32 %v942, 1.442695
        %v969 = vpow.pop %v968
        %v970 = vmul.f32 %v943, 1.442695
        %v971 = vpow.pop %v970
        %v972 = vmul.f32 %v944, 1.442695
        %v973 = vpow.pop %v972
        %v974 = vmul.f32 %v945, 1.442695
        %v975 = vpow.pop %v974
        %v976 = vmul.f32 %v946, 1.442695
        %v977 = vpow.pop %v976
        %v978 = vmul.f32 %v947, 1.442695
        %v979 = vpow.pop %v978
        %v980 = vadd.f32 %v949, 1.0
        %v981 = vadd.f32 %v951, 1.0
        %v982 = vadd.f32 %v953, 1.0
        %v983 = vadd.f32 %v955, 1.0
        %v984 = vadd.f32 %v957, 1.0
        %v985 = vadd.f32 %v959, 1.0
        %v986 = vadd.f32 %v961, 1.0
        %v987 = vadd.f32 %v963, 1.0
        %v988 = vadd.f32 %v965, 1.0
        %v989 = vadd.f32 %v967, 1.0
        %v990 = vadd.f32 %v969, 1.0
        %v991 = vadd.f32 %v971, 1.0
        %v992 = vadd.f32 %v973, 1.0
        %v993 = vadd.f32 %v975, 1.0
        %v994 = vadd.f32 %v977, 1.0
        %v995 = vadd.f32 %v979, 1.0
        %v996 = vrcp.pop %v980
        %v997 = vmul.f32 1.0, %v996
        %v998 = vrcp.pop %v981
        %v999 = vmul.f32 1.0, %v998
        %v1000 = vrcp.pop %v982
        %v1001 = vmul.f32 1.0, %v1000
        %v1002 = vrcp.pop %v983
        %v1003 = vmul.f32 1.0, %v1002
        %v1004 = vrcp.pop %v984
        %v1005 = vmul.f32 1.0, %v1004
        %v1006 = vrcp.pop %v985
        %v1007 = vmul.f32 1.0, %v1006
        %v1008 = vrcp.pop %v986
        %v1009 = vmul.f32 1.0, %v1008
        %v1010 = vrcp.pop %v987
        %v1011 = vmul.f32 1.0, %v1010
        %v1012 = vrcp.pop %v988
        %v1013 = vmul.f32 1.0, %v1012
        %v1014 = vrcp.pop %v989
        %v1015 = vmul.f32 1.0, %v1014
        %v1016 = vrcp.pop %v990
        %v1017 = vmul.f32 1.0, %v1016
        %v1018 = vrcp.pop %v991
        %v1019 = vmul.f32 1.0, %v1018
        %v1020 = vrcp.pop %v992
        %v1021 = vmul.f32 1.0, %v1020
        %v1022 = vrcp.pop %v993
        %v1023 = vmul.f32 1.0, %v1022
        %v1024 = vrcp.pop %v994
        %v1025 = vmul.f32 1.0, %v1024
        %v1026 = vrcp.pop %v995
        %v1027 = vmul.f32 1.0, %v1026
        %v1028 = vmax.f32 %v613, %v805
        %v1029 = vmax.f32 %v615, %v807
        %v1030 = vmax.f32 %v617, %v809
        %v1031 = vmax.f32 %v619, %v811
        %v1032 = vmax.f32 %v621, %v813
        %v1033 = vmax.f32 %v623, %v815
        %v1034 = vmax.f32 %v625, %v817
        %v1035 = vmax.f32 %v627, %v819
        %v1036 = vmax.f32 %v629, %v821
        %v1037 = vmax.f32 %v631, %v823
        %v1038 = vmax.f32 %v633, %v825
        %v1039 = vmax.f32 %v635, %v827
        %v1040 = vmax.f32 %v637, %v829
        %v1041 = vmax.f32 %v639, %v831
        %v1042 = vmax.f32 %v641, %v833
        %v1043 = vmax.f32 %v643, %v835
        %v1044 = vmax.f32 %v1028, %v997
        %v1045 = vmax.f32 %v1029, %v999
        %v1046 = vmax.f32 %v1030, %v1001
        %v1047 = vmax.f32 %v1031, %v1003
        %v1048 = vmax.f32 %v1032, %v1005
        %v1049 = vmax.f32 %v1033, %v1007
        %v1050 = vmax.f32 %v1034, %v1009
        %v1051 = vmax.f32 %v1035, %v1011
        %v1052 = vmax.f32 %v1036, %v1013
        %v1053 = vmax.f32 %v1037, %v1015
        %v1054 = vmax.f32 %v1038, %v1017
        %v1055 = vmax.f32 %v1039, %v1019
        %v1056 = vmax.f32 %v1040, %v1021
        %v1057 = vmax.f32 %v1041, %v1023
        %v1058 = vmax.f32 %v1042, %v1025
        %v1059 = vmax.f32 %v1043, %v1027
        %v1060 = vsub.f32 %v613, %v1044
        %v1061 = vsub.f32 %v615, %v1045
        %v1062 = vsub.f32 %v617, %v1046
        %v1063 = vsub.f32 %v619, %v1047
        %v1064 = vsub.f32 %v621, %v1048
        %v1065 = vsub.f32 %v623, %v1049
        %v1066 = vsub.f32 %v625, %v1050
        %v1067 = vsub.f32 %v627, %v1051
        %v1068 = vsub.f32 %v629, %v1052
        %v1069 = vsub.f32 %v631, %v1053
        %v1070 = vsub.f32 %v633, %v1054
        %v1071 = vsub.f32 %v635, %v1055
        %v1072 = vsub.f32 %v637, %v1056
        %v1073 = vsub.f32 %v639, %v1057
        %v1074 = vsub.f32 %v641, %v1058
        %v1075 = vsub.f32 %v643, %v1059
        %v1076 = vmul.f32 %v1060, 1.442695
        %v1077 = vpow.pop %v1076
        %v1078 = vmul.f32 %v1061, 1.442695
        %v1079 = vpow.pop %v1078
        %v1080 = vmul.f32 %v1062, 1.442695
        %v1081 = vpow.pop %v1080
        %v1082 = vmul.f32 %v1063, 1.442695
        %v1083 = vpow.pop %v1082
        %v1084 = vmul.f32 %v1064, 1.442695
        %v1085 = vpow.pop %v1084
        %v1086 = vmul.f32 %v1065, 1.442695
        %v1087 = vpow.pop %v1086
        %v1088 = vmul.f32 %v1066, 1.442695
        %v1089 = vpow.pop %v1088
        %v1090 = vmul.f32 %v1067, 1.442695
        %v1091 = vpow.pop %v1090
        %v1092 = vmul.f32 %v1068, 1.442695
        %v1093 = vpow.pop %v1092
        %v1094 = vmul.f32 %v1069, 1.442695
        %v1095 = vpow.pop %v1094
        %v1096 = vmul.f32 %v1070, 1.442695
        %v1097 = vpow.pop %v1096
        %v1098 = vmul.f32 %v1071, 1.442695
        %v1099 = vpow.pop %v1098
        %v1100 = vmul.f32 %v1072, 1.442695
        %v1101 = vpow.pop %v1100
        %v1102 = vmul.f32 %v1073, 1.442695
        %v1103 = vpow.pop %v1102
        %v1104 = vmul.f32 %v1074, 1.442695
        %v1105 = vpow.pop %v1104
        %v1106 = vmul.f32 %v1075, 1.442695
        %v1107 = vpow.pop %v1106
        %v1108 = vsub.f32 %v805, %v1044
        %v1109 = vsub.f32 %v807, %v1045
        %v1110 = vsub.f32 %v809, %v1046
        %v1111 = vsub.f32 %v811, %v1047
        %v1112 = vsub.f32 %v813, %v1048
        %v1113 = vsub.f32 %v815, %v1049
        %v1114 = vsub.f32 %v817, %v1050
        %v1115 = vsub.f32 %v819, %v1051
        %v1116 = vsub.f32 %v821, %v1052
        %v1117 = vsub.f32 %v823, %v1053
        %v1118 = vsub.f32 %v825, %v1054
        %v1119 = vsub.f32 %v827, %v1055
        %v1120 = vsub.f32 %v829, %v1056
        %v1121 = vsub.f32 %v831, %v1057
        %v1122 = vsub.f32 %v833, %v1058
        %v1123 = vsub.f32 %v835, %v1059
        %v1124 = vmul.f32 %v1108, 1.442695
        %v1125 = vpow.pop %v1124
        %v1126 = vmul.f32 %v1109, 1.442695
        %v1127 = vpow.pop %v1126
        %v1128 = vmul.f32 %v1110, 1.442695
        %v1129 = vpow.pop %v1128
        %v1130 = vmul.f32 %v1111, 1.442695
        %v1131 = vpow.pop %v1130
        %v1132 = vmul.f32 %v1112, 1.442695
        %v1133 = vpow.pop %v1132
        %v1134 = vmul.f32 %v1113, 1.442695
        %v1135 = vpow.pop %v1134
        %v1136 = vmul.f32 %v1114, 1.442695
        %v1137 = vpow.pop %v1136
        %v1138 = vmul.f32 %v1115, 1.442695
        %v1139 = vpow.pop %v1138
        %v1140 = vmul.f32 %v1116, 1.442695
        %v1141 = vpow.pop %v1140
        %v1142 = vmul.f32 %v1117, 1.442695
        %v1143 = vpow.pop %v1142
        %v1144 = vmul.f32 %v1118, 1.442695
        %v1145 = vpow.pop %v1144
        %v1146 = vmul.f32 %v1119, 1.442695
        %v1147 = vpow.pop %v1146
        %v1148 = vmul.f32 %v1120, 1.442695
        %v1149 = vpow.pop %v1148
        %v1150 = vmul.f32 %v1121, 1.442695
        %v1151 = vpow.pop %v1150
        %v1152 = vmul.f32 %v1122, 1.442695
        %v1153 = vpow.pop %v1152
        %v1154 = vmul.f32 %v1123, 1.442695
        %v1155 = vpow.pop %v1154
        %v1156 = vsub.f32 %v997, %v1044
        %v1157 = vsub.f32 %v999, %v1045
        %v1158 = vsub.f32 %v1001, %v1046
        %v1159 = vsub.f32 %v1003, %v1047
        %v1160 = vsub.f32 %v1005, %v1048
        %v1161 = vsub.f32 %v1007, %v1049
        %v1162 = vsub.f32 %v1009, %v1050
        %v1163 = vsub.f32 %v1011, %v1051
        %v1164 = vsub.f32 %v1013, %v1052
        %v1165 = vsub.f32 %v1015, %v1053
        %v1166 = vsub.f32 %v1017, %v1054
        %v1167 = vsub.f32 %v1019, %v1055
        %v1168 = vsub.f32 %v1021, %v1056
        %v1169 = vsub.f32 %v1023, %v1057
        %v1170 = vsub.f32 %v1025, %v1058
        %v1171 = vsub.f32 %v1027, %v1059
        %v1172 = vmul.f32 %v1156, 1.442695
        %v1173 = vpow.pop %v1172
        %v1174 = vmul.f32 %v1157, 1.442695
        %v1175 = vpow.pop %v1174
        %v1176 = vmul.f32 %v1158, 1.442695
        %v1177 = vpow.pop %v1176
        %v1178 = vmul.f32 %v1159, 1.442695
        %v1179 = vpow.pop %v1178
        %v1180 = vmul.f32 %v1160, 1.442695
        %v1181 = vpow.pop %v1180
        %v1182 = vmul.f32 %v1161, 1.442695
        %v1183 = vpow.pop %v1182
        %v1184 = vmul.f32 %v1162, 1.442695
        %v1185 = vpow.pop %v1184
        %v1186 = vmul.f32 %v1163, 1.442695
        %v1187 = vpow.pop %v1186
        %v1188 = vmul.f32 %v1164, 1.442695
        %v1189 = vpow.pop %v1188
        %v1190 = vmul.f32 %v1165, 1.442695
        %v1191 = vpow.pop %v1190
        %v1192 = vmul.f32 %v1166, 1.442695
        %v1193 = vpow.pop %v1192
        %v1194 = vmul.f32 %v1167, 1.442695
        %v1195 = vpow.pop %v1194
        %v1196 = vmul.f32 %v1168, 1.442695
        %v1197 = vpow.pop %v1196
        %v1198 = vmul.f32 %v1169, 1.442695
        %v1199 = vpow.pop %v1198
        %v1200 = vmul.f32 %v1170, 1.442695
        %v1201 = vpow.pop %v1200
        %v1202 = vmul.f32 %v1171, 1.442695
        %v1203 = vpow.pop %v1202
        %v1204 = vadd.f32 %v1077, %v1125
        %v1205 = vadd.f32 %v1079, %v1127
        %v1206 = vadd.f32 %v1081, %v1129
        %v1207 = vadd.f32 %v1083, %v1131
        %v1208 = vadd.f32 %v1085, %v1133
        %v1209 = vadd.f32 %v1087, %v1135
        %v1210 = vadd.f32 %v1089, %v1137
        %v1211 = vadd.f32 %v1091, %v1139
        %v1212 = vadd.f32 %v1093, %v1141
        %v1213 = vadd.f32 %v1095, %v1143
        %v1214 = vadd.f32 %v1097, %v1145
        %v1215 = vadd.f32 %v1099, %v1147
        %v1216 = vadd.f32 %v1101, %v1149
        %v1217 = vadd.f32 %v1103, %v1151
        %v1218 = vadd.f32 %v1105, %v1153
        %v1219 = vadd.f32 %v1107, %v1155
        %v1220 = vadd.f32 %v1204, %v1173
        %v1221 = vadd.f32 %v1205, %v1175
        %v1222 = vadd.f32 %v1206, %v1177
        %v1223 = vadd.f32 %v1207, %v1179
        %v1224 = vadd.f32 %v1208, %v1181
        %v1225 = vadd.f32 %v1209, %v1183
        %v1226 = vadd.f32 %v1210, %v1185
        %v1227 = vadd.f32 %v1211, %v1187
        %v1228 = vadd.f32 %v1212, %v1189
        %v1229 = vadd.f32 %v1213, %v1191
        %v1230 = vadd.f32 %v1214, %v1193
        %v1231 = vadd.f32 %v1215, %v1195
        %v1232 = vadd.f32 %v1216, %v1197
        %v1233 = vadd.f32 %v1217, %v1199
        %v1234 = vadd.f32 %v1218, %v1201
        %v1235 = vadd.f32 %v1219, %v1203
        %v1236 = vrcp.pop %v1220
        %v1237 = vrcp.pop %v1221
        %v1238 = vrcp.pop %v1222
        %v1239 = vrcp.pop %v1223
        %v1240 = vrcp.pop %v1224
        %v1241 = vrcp.pop %v1225
        %v1242 = vrcp.pop %v1226
        %v1243 = vrcp.pop %v1227
        %v1244 = vrcp.pop %v1228
        %v1245 = vrcp.pop %v1229
        %v1246 = vrcp.pop %v1230
        %v1247 = vrcp.pop %v1231
        %v1248 = vrcp.pop %v1232
        %v1249 = vrcp.pop %v1233
        %v1250 = vrcp.pop %v1234
        %v1251 = vrcp.pop %v1235
        %v1252 = vmul.f32 %v1077, %v1236
        %v1253 = vmul.f32 %v1079, %v1237
        %v1254 = vmul.f32 %v1081, %v1238
        %v1255 = vmul.f32 %v1083, %v1239
        %v1256 = vmul.f32 %v1085, %v1240
        %v1257 = vmul.f32 %v1087, %v1241
        %v1258 = vmul.f32 %v1089, %v1242
        %v1259 = vmul.f32 %v1091, %v1243
        %v1260 = vmul.f32 %v1093, %v1244
        %v1261 = vmul.f32 %v1095, %v1245
        %v1262 = vmul.f32 %v1097, %v1246
        %v1263 = vmul.f32 %v1099, %v1247
        %v1264 = vmul.f32 %v1101, %v1248
        %v1265 = vmul.f32 %v1103, %v1249
        %v1266 = vmul.f32 %v1105, %v1250
        %v1267 = vmul.f32 %v1107, %v1251
        %v1268 = vmul.f32 %v1252, %v461
        %v1269 = vmul.f32 %v1253, %v462
        %v1270 = vmul.f32 %v1254, %v463
        %v1271 = vmul.f32 %v1255, %v464
        %v1272 = vmul.f32 %v1256, %v465
        %v1273 = vmul.f32 %v1257, %v466
        %v1274 = vmul.f32 %v1258, %v467
        %v1275 = vmul.f32 %v1259, %v468
        %v1276 = vmul.f32 %v1260, %v469
        %v1277 = vmul.f32 %v1261, %v470
        %v1278 = vmul.f32 %v1262, %v471
        %v1279 = vmul.f32 %v1263, %v472
        %v1280 = vmul.f32 %v1264, %v473
        %v1281 = vmul.f32 %v1265, %v474
        %v1282 = vmul.f32 %v1266, %v475
        %v1283 = vmul.f32 %v1267, %v476
        %v1284 = vmul.f32 %v1125, %v1236
        %v1285 = vmul.f32 %v1127, %v1237
        %v1286 = vmul.f32 %v1129, %v1238
        %v1287 = vmul.f32 %v1131, %v1239
        %v1288 = vmul.f32 %v1133, %v1240
        %v1289 = vmul.f32 %v1135, %v1241
        %v1290 = vmul.f32 %v1137, %v1242
        %v1291 = vmul.f32 %v1139, %v1243
        %v1292 = vmul.f32 %v1141, %v1244
        %v1293 = vmul.f32 %v1143, %v1245
        %v1294 = vmul.f32 %v1145, %v1246
        %v1295 = vmul.f32 %v1147, %v1247
        %v1296 = vmul.f32 %v1149, %v1248
        %v1297 = vmul.f32 %v1151, %v1249
        %v1298 = vmul.f32 %v1153, %v1250
        %v1299 = vmul.f32 %v1155, %v1251
        %v1300 = vmul.f32 %v1284, %v660
        %v1301 = vmul.f32 %v1285, %v661
        %v1302 = vmul.f32 %v1286, %v662
        %v1303 = vmul.f32 %v1287, %v663
        %v1304 = vmul.f32 %v1288, %v664
        %v1305 = vmul.f32 %v1289, %v665
        %v1306 = vmul.f32 %v1290, %v666
        %v1307 = vmul.f32 %v1291, %v667
        %v1308 = vmul.f32 %v1292, %v668
        %v1309 = vmul.f32 %v1293, %v669
        %v1310 = vmul.f32 %v1294, %v670
        %v1311 = vmul.f32 %v1295, %v671
        %v1312 = vmul.f32 %v1296, %v672
        %v1313 = vmul.f32 %v1297, %v673
        %v1314 = vmul.f32 %v1298, %v674
        %v1315 = vmul.f32 %v1299, %v675
        %v1316 = vadd.f32 %v1268, %v1300
        %v1317 = vadd.f32 %v1269, %v1301
        %v1318 = vadd.f32 %v1270, %v1302
        %v1319 = vadd.f32 %v1271, %v1303
        %v1320 = vadd.f32 %v1272, %v1304
        %v1321 = vadd.f32 %v1273, %v1305
        %v1322 = vadd.f32 %v1274, %v1306
        %v1323 = vadd.f32 %v1275, %v1307
        %v1324 = vadd.f32 %v1276, %v1308
        %v1325 = vadd.f32 %v1277, %v1309
        %v1326 = vadd.f32 %v1278, %v1310
        %v1327 = vadd.f32 %v1279, %v1311
        %v1328 = vadd.f32 %v1280, %v1312
        %v1329 = vadd.f32 %v1281, %v1313
        %v1330 = vadd.f32 %v1282, %v1314
        %v1331 = vadd.f32 %v1283, %v1315
        %v1332 = vmul.f32 %v1173, %v1236
        %v1333 = vmul.f32 %v1175, %v1237
        %v1334 = vmul.f32 %v1177, %v1238
        %v1335 = vmul.f32 %v1179, %v1239
        %v1336 = vmul.f32 %v1181, %v1240
        %v1337 = vmul.f32 %v1183, %v1241
        %v1338 = vmul.f32 %v1185, %v1242
        %v1339 = vmul.f32 %v1187, %v1243
        %v1340 = vmul.f32 %v1189, %v1244
        %v1341 = vmul.f32 %v1191, %v1245
        %v1342 = vmul.f32 %v1193, %v1246
        %v1343 = vmul.f32 %v1195, %v1247
        %v1344 = vmul.f32 %v1197, %v1248
        %v1345 = vmul.f32 %v1199, %v1249
        %v1346 = vmul.f32 %v1201, %v1250
        %v1347 = vmul.f32 %v1203, %v1251
        %v1348 = vmul.f32 %v1332, %v852
        %v1349 = vmul.f32 %v1333, %v853
        %v1350 = vmul.f32 %v1334, %v854
        %v1351 = vmul.f32 %v1335, %v855
        %v1352 = vmul.f32 %v1336, %v856
        %v1353 = vmul.f32 %v1337, %v857
        %v1354 = vmul.f32 %v1338, %v858
        %v1355 = vmul.f32 %v1339, %v859
        %v1356 = vmul.f32 %v1340, %v860
        %v1357 = vmul.f32 %v1341, %v861
        %v1358 = vmul.f32 %v1342, %v862
        %v1359 = vmul.f32 %v1343, %v863
        %v1360 = vmul.f32 %v1344, %v864
        %v1361 = vmul.f32 %v1345, %v865
        %v1362 = vmul.f32 %v1346, %v866
        %v1363 = vmul.f32 %v1347, %v867
        %v1364 = vadd.f32 %v1316, %v1348
        %v1365 = vadd.f32 %v1317, %v1349
        %v1366 = vadd.f32 %v1318, %v1350
        %v1367 = vadd.f32 %v1319, %v1351
        %v1368 = vadd.f32 %v1320, %v1352
        %v1369 = vadd.f32 %v1321, %v1353
        %v1370 = vadd.f32 %v1322, %v1354
        %v1371 = vadd.f32 %v1323, %v1355
        %v1372 = vadd.f32 %v1324, %v1356
        %v1373 = vadd.f32 %v1325, %v1357
        %v1374 = vadd.f32 %v1326, %v1358
        %v1375 = vadd.f32 %v1327, %v1359
        %v1376 = vadd.f32 %v1328, %v1360
        %v1377 = vadd.f32 %v1329, %v1361
        %v1378 = vadd.f32 %v1330, %v1362
        %v1379 = vadd.f32 %v1331, %v1363
        %v1380 = vpack.c.bf16 %v1365, %v1364
        %v1381 = vpack.c.bf16 %v1367, %v1366
        %v1382 = vpack.c.bf16 %v1369, %v1368
        %v1383 = vpack.c.bf16 %v1371, %v1370
        %v1384 = vpack.c.bf16 %v1373, %v1372
        %v1385 = vpack.c.bf16 %v1375, %v1374
        %v1386 = vpack.c.bf16 %v1377, %v1376
        %v1387 = vpack.c.bf16 %v1379, %v1378
        %v1388 = vld [vmem:[%s4] sm:$0xf]
        %v1389 = vld [vmem:[%s4 + $0x4] sm:$0xf]
        %v1390 = vld [vmem:[%s4 + $0x8] sm:$0xf]
        %v1391 = vld [vmem:[%s4 + $0xc] sm:$0xf]
        %v1392 = vld [vmem:[%s4 + $0x10] sm:$0xf]
        %v1393 = vld [vmem:[%s4 + $0x14] sm:$0xf]
        %v1394 = vld [vmem:[%s4 + $0x18] sm:$0xf]
        %v1395 = vld [vmem:[%s4 + $0x1c] sm:$0xf]
        %v1396 = vld [vmem:[%s5] sm:$0x1]
        %v1398 = vlaneseq
        %v1399 = vshrl.u32 %v1398, 7
        %v1400 = vsub.s32 0, %v1399
        %v1401 = vrot.slane %v1396, %v1400
        %v1411 = vunpack.c.l.b16 %v1388
        %v1412 = vunpack.c.l.b16 %v1389
        %v1413 = vunpack.c.l.b16 %v1390
        %v1414 = vunpack.c.l.b16 %v1391
        %v1415 = vunpack.c.l.b16 %v1392
        %v1416 = vunpack.c.l.b16 %v1393
        %v1417 = vunpack.c.l.b16 %v1394
        %v1418 = vunpack.c.l.b16 %v1395
        %v1419 = vpack.c.b16 %v1412, %v1411
        %v1420 = vpack.c.b16 %v1414, %v1413
        %v1421 = vpack.c.b16 %v1416, %v1415
        %v1422 = vpack.c.b16 %v1418, %v1417
        %v1428 = vsel %vm499, %v1380, 0
        %v1431 = vsel %vm499, %v1381, 0
        %v1434 = vsel %vm499, %v1382, 0
        %v1437 = vsel %vm499, %v1383, 0
        %v1440 = vsel %vm499, %v1384, 0
        %v1443 = vsel %vm499, %v1385, 0
        %v1446 = vsel %vm499, %v1386, 0
        %v1449 = vsel %vm499, %v1387, 0
        %1451 = vmatprep.subr.bf16.mxu0 0
        %1452 = vmatpush1.bf16.msra.mxu0 %v1419
        %1453 = vmatprep.subr.bf16.mxu0 0
        %1454 = vmatpush1.bf16.msra.mxu0 %v1420
        %1455 = vmatprep.subr.bf16.mxu0 0
        %1456 = vmatpush1.bf16.msra.mxu0 %v1421
        %1457 = vmatprep.subr.bf16.mxu0 0
        %1458 = vmatpush1.bf16.msra.mxu0 %v1422
        %1459 = vmatprep.subr.bf16.mxu0 0
        %1460 = vmatpush1.bf16.msra.mxu0 0
        %1461 = vmatprep.subr.bf16.mxu0 0
        %1462 = vmatpush1.bf16.msra.mxu0 0
        %1463 = vmatprep.subr.bf16.mxu0 0
        %1464 = vmatpush1.bf16.msra.mxu0 0
        %1465 = vmatprep.subr.bf16.mxu0 0
        %1466 = vmatpush1.bf16.msra.mxu0 0
        %1467 = vmatprep.subr.bf16.mxu0 0
        %1468 = vmatpush1.bf16.msra.mxu0 0
        %1469 = vmatprep.subr.bf16.mxu0 0
        %1470 = vmatpush1.bf16.msra.mxu0 0
        %1471 = vmatprep.subr.bf16.mxu0 0
        %1472 = vmatpush1.bf16.msra.mxu0 0
        %1473 = vmatprep.subr.bf16.mxu0 0
        %1474 = vmatpush1.bf16.msra.mxu0 0
        %1475 = vmatprep.subr.bf16.mxu0 0
        %1476 = vmatpush1.bf16.msra.mxu0 0
        %1477 = vmatprep.subr.bf16.mxu0 0
        %1478 = vmatpush1.bf16.msra.mxu0 0
        %1479 = vmatprep.subr.bf16.mxu0 0
        %1480 = vmatpush1.bf16.msra.mxu0 0
        %1481 = vmatprep.subr.bf16.mxu0 0
        %1482 = vmatpush1.bf16.msra.mxu0 0
        %1483 = vmatprep.mubr.bf16.mxu0 0
        %1484 = vmatmul.mubr.bf16.gmra.mrb[0].mxu0 %v1428
        %v1485 = vpop.f32.mrb[0].mxu0
        %v1486 = vadd.f32 %v1401, %v1485
        %v1487 = vpop.f32.mrb[0].mxu0
        %v1488 = vpop.f32.mrb[0].mxu0
        %v1489 = vadd.f32 %v1401, %v1488
        %v1490 = vpop.f32.mrb[0].mxu0
        %1491 = vmatprep.mubr.bf16.mxu0 0
        %1492 = vmatmul.mubr.bf16.gmra.mrb[0].mxu0 %v1431
        %v1493 = vpop.f32.mrb[0].mxu0
        %v1494 = vadd.f32 %v1401, %v1493
        %v1495 = vpop.f32.mrb[0].mxu0
        %v1496 = vpop.f32.mrb[0].mxu0
        %v1497 = vadd.f32 %v1401, %v1496
        %v1498 = vpop.f32.mrb[0].mxu0
        %1499 = vmatprep.mubr.bf16.mxu0 0
        %1500 = vmatmul.mubr.bf16.gmra.mrb[0].mxu0 %v1434
        %v1501 = vpop.f32.mrb[0].mxu0
        %v1502 = vadd.f32 %v1401, %v1501
        %v1503 = vpop.f32.mrb[0].mxu0
        %v1504 = vpop.f32.mrb[0].mxu0
        %v1505 = vadd.f32 %v1401, %v1504
        %v1506 = vpop.f32.mrb[0].mxu0
        %1507 = vmatprep.mubr.bf16.mxu0 0
        %1508 = vmatmul.mubr.bf16.gmra.mrb[0].mxu0 %v1437
        %v1509 = vpop.f32.mrb[0].mxu0
        %v1510 = vadd.f32 %v1401, %v1509
        %v1511 = vpop.f32.mrb[0].mxu0
        %v1512 = vpop.f32.mrb[0].mxu0
        %v1513 = vadd.f32 %v1401, %v1512
        %v1514 = vpop.f32.mrb[0].mxu0
        %1515 = vmatprep.mubr.bf16.mxu0 0
        %1516 = vmatmul.mubr.bf16.gmra.mrb[0].mxu0 %v1440
        %v1517 = vpop.f32.mrb[0].mxu0
        %v1518 = vadd.f32 %v1401, %v1517
        %v1519 = vpop.f32.mrb[0].mxu0
        %v1520 = vpop.f32.mrb[0].mxu0
        %v1521 = vadd.f32 %v1401, %v1520
        %v1522 = vpop.f32.mrb[0].mxu0
        %1523 = vmatprep.mubr.bf16.mxu0 0
        %1524 = vmatmul.mubr.bf16.gmra.mrb[0].mxu0 %v1443
        %v1525 = vpop.f32.mrb[0].mxu0
        %v1526 = vadd.f32 %v1401, %v1525
        %v1527 = vpop.f32.mrb[0].mxu0
        %v1528 = vpop.f32.mrb[0].mxu0
        %v1529 = vadd.f32 %v1401, %v1528
        %v1530 = vpop.f32.mrb[0].mxu0
        %1531 = vmatprep.mubr.bf16.mxu0 0
        %1532 = vmatmul.mubr.bf16.gmra.mrb[0].mxu0 %v1446
        %v1533 = vpop.f32.mrb[0].mxu0
        %v1534 = vadd.f32 %v1401, %v1533
        %v1535 = vpop.f32.mrb[0].mxu0
        %v1536 = vpop.f32.mrb[0].mxu0
        %v1537 = vadd.f32 %v1401, %v1536
        %v1538 = vpop.f32.mrb[0].mxu0
        %1539 = vmatprep.mubr.bf16.mxu0 0
        %1540 = vmatmul.mubr.bf16.gmra.mrb[0].mxu0 %v1449
        %v1541 = vpop.f32.mrb[0].mxu0
        %v1542 = vadd.f32 %v1401, %v1541
        %v1543 = vpop.f32.mrb[0].mxu0
        %v1544 = vpop.f32.mrb[0].mxu0
        %v1545 = vadd.f32 %v1401, %v1544
        %v1546 = vpop.f32.mrb[0].mxu0
        %1547 = vdwg.mxu0
        %s1548 = sld [smem:[#allocation2]]
        %vm1549 = vcmp.ge.f32.partialorder %v1486, 0.0
        %vm1550 = vcmp.ge.f32.partialorder %v1489, 0.0
        %vm1551 = vcmp.ge.f32.partialorder %v1494, 0.0
        %vm1552 = vcmp.ge.f32.partialorder %v1497, 0.0
        %vm1553 = vcmp.ge.f32.partialorder %v1502, 0.0
        %vm1554 = vcmp.ge.f32.partialorder %v1505, 0.0
        %vm1555 = vcmp.ge.f32.partialorder %v1510, 0.0
        %vm1556 = vcmp.ge.f32.partialorder %v1513, 0.0
        %vm1557 = vcmp.ge.f32.partialorder %v1518, 0.0
        %vm1558 = vcmp.ge.f32.partialorder %v1521, 0.0
        %vm1559 = vcmp.ge.f32.partialorder %v1526, 0.0
        %vm1560 = vcmp.ge.f32.partialorder %v1529, 0.0
        %vm1561 = vcmp.ge.f32.partialorder %v1534, 0.0
        %vm1562 = vcmp.ge.f32.partialorder %v1537, 0.0
        %vm1563 = vcmp.ge.f32.partialorder %v1542, 0.0
        %vm1564 = vcmp.ge.f32.partialorder %v1545, 0.0
        %v1565 = vstv %s1548
        %v1566 = vmul.f32 %v1565, %v1486
        %v1567 = vmul.f32 %v1565, %v1489
        %v1568 = vmul.f32 %v1565, %v1494
        %v1569 = vmul.f32 %v1565, %v1497
        %v1570 = vmul.f32 %v1565, %v1502
        %v1571 = vmul.f32 %v1565, %v1505
        %v1572 = vmul.f32 %v1565, %v1510
        %v1573 = vmul.f32 %v1565, %v1513
        %v1574 = vmul.f32 %v1565, %v1518
        %v1575 = vmul.f32 %v1565, %v1521
        %v1576 = vmul.f32 %v1565, %v1526
        %v1577 = vmul.f32 %v1565, %v1529
        %v1578 = vmul.f32 %v1565, %v1534
        %v1579 = vmul.f32 %v1565, %v1537
        %v1580 = vmul.f32 %v1565, %v1542
        %v1581 = vmul.f32 %v1565, %v1545
        %v1582 = vsel %vm1549, %v1486, %v1566
        %v1583 = vsel %vm1550, %v1489, %v1567
        %v1584 = vsel %vm1551, %v1494, %v1568
        %v1585 = vsel %vm1552, %v1497, %v1569
        %v1586 = vsel %vm1553, %v1502, %v1570
        %v1587 = vsel %vm1554, %v1505, %v1571
        %v1588 = vsel %vm1555, %v1510, %v1572
        %v1589 = vsel %vm1556, %v1513, %v1573
        %v1590 = vsel %vm1557, %v1518, %v1574
        %v1591 = vsel %vm1558, %v1521, %v1575
        %v1592 = vsel %vm1559, %v1526, %v1576
        %v1593 = vsel %vm1560, %v1529, %v1577
        %v1594 = vsel %vm1561, %v1534, %v1578
        %v1595 = vsel %vm1562, %v1537, %v1579
        %v1596 = vsel %vm1563, %v1542, %v1580
        %v1597 = vsel %vm1564, %v1545, %v1581
        %v1598 = vpack.c.bf16 %v1583, %v1582
        %v1599 = vpack.c.bf16 %v1585, %v1584
        %v1600 = vpack.c.bf16 %v1587, %v1586
        %v1601 = vpack.c.bf16 %v1589, %v1588
        %v1602 = vpack.c.bf16 %v1591, %v1590
        %v1603 = vpack.c.bf16 %v1593, %v1592
        %v1604 = vpack.c.bf16 %v1595, %v1594
        %v1605 = vpack.c.bf16 %v1597, %v1596
        %v1606 = vld [vmem:[%s6] sm:$0xf]
        %v1607 = vld [vmem:[%s6 + $0x4] sm:$0xf]
        %v1608 = vld [vmem:[%s6 + $0x8] sm:$0xf]
        %v1609 = vld [vmem:[%s6 + $0xc] sm:$0xf]
        %v1610 = vld [vmem:[%s6 + $0x10] sm:$0xf]
        %v1611 = vld [vmem:[%s6 + $0x14] sm:$0xf]
        %v1612 = vld [vmem:[%s6 + $0x18] sm:$0xf]
        %v1613 = vld [vmem:[%s6 + $0x1c] sm:$0xf]
        %v1614 = vld [vmem:[%s6 + $0x20] sm:$0xf]
        %v1615 = vld [vmem:[%s6 + $0x24] sm:$0xf]
        %v1616 = vld [vmem:[%s6 + $0x28] sm:$0xf]
        %v1617 = vld [vmem:[%s6 + $0x2c] sm:$0xf]
        %v1618 = vld [vmem:[%s6 + $0x30] sm:$0xf]
        %v1619 = vld [vmem:[%s6 + $0x34] sm:$0xf]
        %v1620 = vld [vmem:[%s6 + $0x38] sm:$0xf]
        %v1621 = vld [vmem:[%s6 + $0x3c] sm:$0xf]
        %v1622 = vld [vmem:[%s7] sm:$0x1]
        %v1624 = vlaneseq
        %v1625 = vshrl.u32 %v1624, 7
        %v1626 = vsub.s32 0, %v1625
        %v1627 = vrot.slane %v1622, %v1626
        %v1645 = vunpack.c.l.b16 %v1606
        %v1646 = vunpack.c.l.b16 %v1607
        %v1647 = vunpack.c.l.b16 %v1608
        %v1648 = vunpack.c.l.b16 %v1609
        %v1649 = vunpack.c.l.b16 %v1610
        %v1650 = vunpack.c.l.b16 %v1611
        %v1651 = vunpack.c.l.b16 %v1612
        %v1652 = vunpack.c.l.b16 %v1613
        %v1653 = vunpack.c.l.b16 %v1614
        %v1654 = vunpack.c.l.b16 %v1615
        %v1655 = vunpack.c.l.b16 %v1616
        %v1656 = vunpack.c.l.b16 %v1617
        %v1657 = vunpack.c.l.b16 %v1618
        %v1658 = vunpack.c.l.b16 %v1619
        %v1659 = vunpack.c.l.b16 %v1620
        %v1660 = vunpack.c.l.b16 %v1621
        %v1661 = vpack.c.b16 %v1646, %v1645
        %v1662 = vpack.c.b16 %v1648, %v1647
        %v1663 = vpack.c.b16 %v1650, %v1649
        %v1664 = vpack.c.b16 %v1652, %v1651
        %v1665 = vpack.c.b16 %v1654, %v1653
        %v1666 = vpack.c.b16 %v1656, %v1655
        %v1667 = vpack.c.b16 %v1658, %v1657
        %v1668 = vpack.c.b16 %v1660, %v1659
        %1677 = vmatprep.subr.bf16.mxu0 0
        %1678 = vmatpush1.bf16.msra.mxu0 %v1661
        %1679 = vmatprep.subr.bf16.mxu0 0
        %1680 = vmatpush1.bf16.msra.mxu0 %v1662
        %1681 = vmatprep.subr.bf16.mxu0 0
        %1682 = vmatpush1.bf16.msra.mxu0 %v1663
        %1683 = vmatprep.subr.bf16.mxu0 0
        %1684 = vmatpush1.bf16.msra.mxu0 %v1664
        %1685 = vmatprep.subr.bf16.mxu0 0
        %1686 = vmatpush1.bf16.msra.mxu0 %v1665
        %1687 = vmatprep.subr.bf16.mxu0 0
        %1688 = vmatpush1.bf16.msra.mxu0 %v1666
        %1689 = vmatprep.subr.bf16.mxu0 0
        %1690 = vmatpush1.bf16.msra.mxu0 %v1667
        %1691 = vmatprep.subr.bf16.mxu0 0
        %1692 = vmatpush1.bf16.msra.mxu0 %v1668
        %1693 = vmatprep.subr.bf16.mxu0 0
        %1694 = vmatpush1.bf16.msra.mxu0 0
        %1695 = vmatprep.subr.bf16.mxu0 0
        %1696 = vmatpush1.bf16.msra.mxu0 0
        %1697 = vmatprep.subr.bf16.mxu0 0
        %1698 = vmatpush1.bf16.msra.mxu0 0
        %1699 = vmatprep.subr.bf16.mxu0 0
        %1700 = vmatpush1.bf16.msra.mxu0 0
        %1701 = vmatprep.subr.bf16.mxu0 0
        %1702 = vmatpush1.bf16.msra.mxu0 0
        %1703 = vmatprep.subr.bf16.mxu0 0
        %1704 = vmatpush1.bf16.msra.mxu0 0
        %1705 = vmatprep.subr.bf16.mxu0 0
        %1706 = vmatpush1.bf16.msra.mxu0 0
        %1707 = vmatprep.subr.bf16.mxu0 0
        %1708 = vmatpush1.bf16.msra.mxu0 0
        %1709 = vmatprep.mubr.bf16.mxu0 0
        %1710 = vmatmul.mubr.bf16.gmra.mrb[0].mxu0 %v1598
        %v1711 = vpop.f32.mrb[0].mxu0
        %v1712 = vadd.f32 %v1627, %v1711
        %v1713 = vpop.f32.mrb[0].mxu0
        %v1714 = vpop.f32.mrb[0].mxu0
        %v1715 = vadd.f32 %v1627, %v1714
        %v1716 = vpop.f32.mrb[0].mxu0
        %1717 = vmatprep.mubr.bf16.mxu0 0
        %1718 = vmatmul.mubr.bf16.gmra.mrb[0].mxu0 %v1599
        %v1719 = vpop.f32.mrb[0].mxu0
        %v1720 = vadd.f32 %v1627, %v1719
        %v1721 = vpop.f32.mrb[0].mxu0
        %v1722 = vpop.f32.mrb[0].mxu0
        %v1723 = vadd.f32 %v1627, %v1722
        %v1724 = vpop.f32.mrb[0].mxu0
        %1725 = vmatprep.mubr.bf16.mxu0 0
        %1726 = vmatmul.mubr.bf16.gmra.mrb[0].mxu0 %v1600
        %v1727 = vpop.f32.mrb[0].mxu0
        %v1728 = vadd.f32 %v1627, %v1727
        %v1729 = vpop.f32.mrb[0].mxu0
        %v1730 = vpop.f32.mrb[0].mxu0
        %v1731 = vadd.f32 %v1627, %v1730
        %v1732 = vpop.f32.mrb[0].mxu0
        %1733 = vmatprep.mubr.bf16.mxu0 0
        %1734 = vmatmul.mubr.bf16.gmra.mrb[0].mxu0 %v1601
        %v1735 = vpop.f32.mrb[0].mxu0
        %v1736 = vadd.f32 %v1627, %v1735
        %v1737 = vpop.f32.mrb[0].mxu0
        %v1738 = vpop.f32.mrb[0].mxu0
        %v1739 = vadd.f32 %v1627, %v1738
        %v1740 = vpop.f32.mrb[0].mxu0
        %1741 = vmatprep.mubr.bf16.mxu0 0
        %1742 = vmatmul.mubr.bf16.gmra.mrb[0].mxu0 %v1602
        %v1743 = vpop.f32.mrb[0].mxu0
        %v1744 = vadd.f32 %v1627, %v1743
        %v1745 = vpop.f32.mrb[0].mxu0
        %v1746 = vpop.f32.mrb[0].mxu0
        %v1747 = vadd.f32 %v1627, %v1746
        %v1748 = vpop.f32.mrb[0].mxu0
        %1749 = vmatprep.mubr.bf16.mxu0 0
        %1750 = vmatmul.mubr.bf16.gmra.mrb[0].mxu0 %v1603
        %v1751 = vpop.f32.mrb[0].mxu0
        %v1752 = vadd.f32 %v1627, %v1751
        %v1753 = vpop.f32.mrb[0].mxu0
        %v1754 = vpop.f32.mrb[0].mxu0
        %v1755 = vadd.f32 %v1627, %v1754
        %v1756 = vpop.f32.mrb[0].mxu0
        %1757 = vmatprep.mubr.bf16.mxu0 0
        %1758 = vmatmul.mubr.bf16.gmra.mrb[0].mxu0 %v1604
        %v1759 = vpop.f32.mrb[0].mxu0
        %v1760 = vadd.f32 %v1627, %v1759
        %v1761 = vpop.f32.mrb[0].mxu0
        %v1762 = vpop.f32.mrb[0].mxu0
        %v1763 = vadd.f32 %v1627, %v1762
        %v1764 = vpop.f32.mrb[0].mxu0
        %1765 = vmatprep.mubr.bf16.mxu0 0
        %1766 = vmatmul.mubr.bf16.gmra.mrb[0].mxu0 %v1605
        %v1767 = vpop.f32.mrb[0].mxu0
        %v1768 = vadd.f32 %v1627, %v1767
        %v1769 = vpop.f32.mrb[0].mxu0
        %v1770 = vpop.f32.mrb[0].mxu0
        %v1771 = vadd.f32 %v1627, %v1770
        %v1772 = vpop.f32.mrb[0].mxu0
        %1773 = vdwg.mxu0
        %1774 = vst [vmem:[%s395] sm:$0xff] %v1712
        %1775 = vst [vmem:[%s395 + $0x8] sm:$0xff] %v1715
        %1776 = vst [vmem:[%s395 + $0x10] sm:$0xff] %v1720
        %1777 = vst [vmem:[%s395 + $0x18] sm:$0xff] %v1723
        %1778 = vst [vmem:[%s395 + $0x20] sm:$0xff] %v1728
        %1779 = vst [vmem:[%s395 + $0x28] sm:$0xff] %v1731
        %1780 = vst [vmem:[%s395 + $0x30] sm:$0xff] %v1736
        %1781 = vst [vmem:[%s395 + $0x38] sm:$0xff] %v1739
        %1782 = vst [vmem:[%s395 + $0x40] sm:$0xff] %v1744
        %1783 = vst [vmem:[%s395 + $0x48] sm:$0xff] %v1747
        %1784 = vst [vmem:[%s395 + $0x50] sm:$0xff] %v1752
        %1785 = vst [vmem:[%s395 + $0x58] sm:$0xff] %v1755
        %1786 = vst [vmem:[%s395 + $0x60] sm:$0xff] %v1760
        %1787 = vst [vmem:[%s395 + $0x68] sm:$0xff] %v1763
        %1788 = vst [vmem:[%s395 + $0x70] sm:$0xff] %v1768
        %1789 = vst [vmem:[%s395 + $0x78] sm:$0xff] %v1771
        %s1790 = sand.u32 %s236, 1
        %s1791 = scalar_lea.sflag [#allocation4], %s1790
        %s1792 = sand.u32 %s236, 1
        %s1793 = smul.addr %s1792, 128
        %s1794 = scalar_lea.vmem [#allocation3], %s1793
        // Predicated region
        $region57: #{tpu_custom_call.1} parent=55 // pred_check
          %p1795 = pneg %p246
        $region58: #{tpu_custom_call.1} parent=55 // pred_check_branch
          %1797 = sbr.rel (%p1795) target = $region60
        $region59: #{tpu_custom_call.1} parent=55 // pred_region
          %s1798 = smul.u32 16, %s24
          %s1799 = ssub.s32 25, %s1798
          %p1800 = scmp.lt.s32.totalorder %s1799, 16
          %s1801 = scalar_select %p1800, %s1799, 16
          %s1802 = smul.u32 128, %s1801
          %s1804 = ssub.s32 2048, %s1802
          %1805 = vsyncadd %s1791, %s1804
          %p1806 = scmp.ne.s32.totalorder 0, %s1802
          %s1807 = smul.addr %s1798, 128
          %s1808 = scalar_lea.hbm %s9, %s1807
          %s1809 = smul.u32 8, %s1801
          %s1810 = sshll.u32 %s1794, 4
          %s1811 = int_to_ptr.vmem [resolvable:$true] %s1810
          %s1812 = sshll.u32 %s1809, 4
          %1816 = dma.vmem_to_hbm [thread:$0]  (%p1806), %s1811, %s1812, %s1808, %s1791, 128, 128, 8
        $region60: #{tpu_custom_call.1} parent=55 // pred_fallthru
          _
      $region56: #{tpu_custom_call.1} parent=5 // pred_fallthru
        _
      %p1817 = scmp.le.s32.totalorder 2, %s19
      // Predicated region
      $region61: #{tpu_custom_call.1} parent=5 // pred_check
        %p1818 = pneg %p1817
      $region62: #{tpu_custom_call.1} parent=5 // pred_check_branch
        %1820 = sbr.rel (%p1818) target = $region64
      $region63: #{tpu_custom_call.1} parent=5 // pred_region
        %s1821 = ssub.s32 %s19, 2
        // Predicated region
        $region65: #{tpu_custom_call.1} parent=63 // pred_check
          %p1822 = pneg %p252
        $region66: #{tpu_custom_call.1} parent=63 // pred_check_branch
          %1824 = sbr.rel (%p1822) target = $region68
        $region67: #{tpu_custom_call.1} parent=63 // pred_region
          %s1825 = sand.u32 %s237, 1
          %s1826 = scalar_lea.sflag [#allocation4], %s1825
          %s1827 = sand.u32 %s237, 1
          %s1828 = smul.addr %s1827, 128
          %s1829 = scalar_lea.vmem [#allocation3], %s1828
          %1830 = dma.done %s1826, 2048
        $region68: #{tpu_custom_call.1} parent=63 // pred_fallthru
          _
      $region64: #{tpu_custom_call.1} parent=5 // pred_fallthru
        _
    $region6: #{tpu_custom_call.1} parent=1 // loop_footer
      %s23 = sadd.s32 1, %s19
    $region7: #{tpu_custom_call.1} parent=1 // loop_footer_branch
      %18 = sbr.rel target = $region3
    $region8: #{tpu_custom_call.1} parent=1 // loop_exit
      _
    %1831 = vsyncpa [#allocation4], 1
    %s1832 = scalar_lea.sflag [#allocation4], 1
    %1833 = vsyncpa %s1832, 1

</llo_original>
